<compile_context>
chip_gen: v6e
topology: v6e:2x2x1
jax: 0.10.0
libtpu: 0.0.40
codegen_flags: <defaults>
</compile_context>

<pallas_src>
import functools

import jax
import jax.numpy as jnp
from jax import lax
from jax.experimental import pallas as pl
from jax.experimental.pallas import tpu as pltpu


def _round_up(x, m):
    return (x + m - 1) // m * m


def gru_encoder_kernel(h0_ref, x_ref, wih_ref, whh_ref, bih_ref, bhhn_ref,
                       out_ref, hn_ref, gx_ref, h_ref,
                       *, hidden_pad, sub_steps, chunk_steps, tail_steps, masked_tail):
    """One T-chunk of a single-layer GRU.

    h0_ref   : (Bp, Hp)          initial hidden state (zeros if init_state=None)
    x_ref    : (tT, Bp, Ip)      input chunk (time-major, padded)
    wih_ref  : (Ip, 3Hp)         transposed, per-gate-padded weight_ih_l0
    whh_ref  : (Hp, 3Hp)         transposed, per-gate-padded weight_hh_l0
    bih_ref  : (1, 3Hp)          b_ih with b_hr/b_hz folded in
    bhhn_ref : (1, Hp)           b_hn only (must stay inside r * (...))
    out_ref  : (tT, Bp, Hp)      output chunk
    hn_ref   : (Bp, Hp)          final hidden state (written at last chunk)
    gx_ref   : VMEM (2*SUB, Bp, 3Hp) scratch — double-buffered sub-block projection
    h_ref    : VMEM (Bp, Hp)         scratch — hidden state carried across chunks
    """
    tT, Bp, Ip = x_ref.shape
    Hp = hidden_pad
    SUB = sub_steps
    chunk = pl.program_id(0)
    n_chunks = pl.num_programs(0)

    @pl.when(chunk == 0)
    def _():
        h_ref[...] = h0_ref[...]

    # Loop-invariant loads / broadcasts hoisted once per chunk (JAX does not CSE
    # broadcast_in_dim inside the loop).
    wih = wih_ref[...]
    whh = whh_ref[...]
    bih = bih_ref[...]                                    # (1, 3Hp)
    bhh_n = jnp.broadcast_to(bhhn_ref[...], (Bp, Hp))     # (Bp, Hp)

    def run_chunk(n_steps):
        # Static sub-block schedule (n_steps is a Python int).
        starts = list(range(0, n_steps, SUB))
        sizes = [min(SUB, n_steps - s) for s in starts]

        def project(i):
            # Project sub-block i's inputs with one throughput-efficient MXU matmul
            # (amortizes the W_ih weight pushes over sz*Bp rows) into slot i % 2.
            s0, sz, slot = starts[i], sizes[i], i % 2
            xb = x_ref[pl.ds(s0, sz)]                                    # (sz, Bp, Ip)
            g = jnp.dot(xb.reshape(sz * Bp, Ip), wih,
                        preferred_element_type=jnp.float32) + bih
            gx_ref[pl.ds(slot * SUB, sz)] = g.reshape(sz, Bp, 3 * Hp)

        project(0)
        h = h_ref[...]
        for i, (s0, sz) in enumerate(zip(starts, sizes)):
            if i + 1 < len(starts):
                # Projection of the *next* sub-block is independent of the h-chain
                # below (different gx slot), so the scheduler overlaps its MXU work
                # with the latency-bound, fully-unrolled recurrence of this sub-block.
                project(i + 1)
            base = (i % 2) * SUB
            # Serial recurrence, statically unrolled so it shares a scheduling region
            # with project(i + 1).
            # TODO(synk): keep whh stationary in MXU weight registers across timesteps
            # via pltpu.matmul_push_rhs / matmul_acc_lhs / matmul_pop (and split the
            # r|z vs n gate columns across the two MXUs on v6e/v7x).
            for t in range(sz):
                gxt = gx_ref[base + t]                                   # (Bp, 3Hp)
                gh = jnp.dot(h, whh, preferred_element_type=jnp.float32)  # (Bp, 3Hp)
                r = jax.nn.sigmoid(gxt[:, 0:Hp] + gh[:, 0:Hp])
                z = jax.nn.sigmoid(gxt[:, Hp:2 * Hp] + gh[:, Hp:2 * Hp])
                n = jnp.tanh(gxt[:, 2 * Hp:3 * Hp]
                             + r * (gh[:, 2 * Hp:3 * Hp] + bhh_n))
                h = (1.0 - z) * n + z * h
                out_ref[s0 + t] = h.astype(out_ref.dtype)
        h_ref[...] = h

    if masked_tail:
        # Tail chunk runs a statically shorter loop; no per-step mask anywhere.
        @pl.when(chunk != n_chunks - 1)
        def _():
            run_chunk(chunk_steps)

        @pl.when(chunk == n_chunks - 1)
        def _():
            run_chunk(tail_steps)
    else:
        run_chunk(chunk_steps)

    @pl.when(chunk == n_chunks - 1)
    def _():
        hn_ref[...] = h_ref[...].astype(hn_ref.dtype)


def prepare_params(params, input_size, hidden_size):
    """One-time weight prep: transpose + per-gate lane/sublane padding + bias folding."""
    I, H = input_size, hidden_size
    Ip = _round_up(I, 128)
    Hp = _round_up(H, 128)

    def pad_gate_matrix(w, rows, rows_pad):
        wt = w.T.astype(jnp.float32)                               # (rows, 3H)
        gates = [wt[:, g * H:(g + 1) * H] for g in range(3)]
        gates = [jnp.pad(g, ((0, rows_pad - rows), (0, Hp - H))) for g in gates]
        return jnp.concatenate(gates, axis=1)                      # (rows_pad, 3Hp)

    b_ih = params["b_ih"].astype(jnp.float32)
    b_hh = params["b_hh"].astype(jnp.float32)
    # Fold b_hr / b_hz into the input-side bias (added linearly inside the sigmoids);
    # only b_hn must stay on the hidden side because it is multiplied by r.
    b_comb = jnp.concatenate([
        b_ih[0:H] + b_hh[0:H],              # r
        b_ih[H:2 * H] + b_hh[H:2 * H],      # z
        b_ih[2 * H:3 * H],                  # n (input part only)
    ])

    def pad_gate_bias(b):
        gates = [jnp.pad(b[g * H:(g + 1) * H], (0, Hp - H)) for g in range(3)]
        return jnp.concatenate(gates).reshape(1, 3 * Hp)

    return {
        "wih_t": pad_gate_matrix(params["w_ih"], I, Ip),           # (Ip, 3Hp)
        "whh_t": pad_gate_matrix(params["w_hh"], H, Hp),           # (Hp, 3Hp)
        "bih": pad_gate_bias(b_comb),                              # (1, 3Hp)
        "bhh_n": jnp.pad(b_hh[2 * H:3 * H], (0, Hp - H)).reshape(1, Hp),  # (1, Hp)
        "input_size": I, "hidden_size": H, "Ip": Ip, "Hp": Hp,
    }


def _vmem_budget_bytes():
    """Generation-aware VMEM budget (75% of physical; conservative fallback)."""
    try:
        cap = int(pltpu.get_tpu_info().vmem_capacity_bytes)
    except Exception:
        cap = 64 * 1024 * 1024      # v7x-sized fallback; safe on all generations
    return (cap * 3) // 4


def _select_tiles(T, Bp, Ip, Hp, vmem_budget):
    """Pick the largest T-chunk that fits the VMEM budget (worst-case double-buffered)."""
    SUB = 16

    def bytes_needed(tT):
        sub = min(SUB, tT)
        x_b = 2 * tT * Bp * Ip * 4                                    # x double-buffered
        out_b = 2 * tT * Bp * Hp * 4                                  # out double-buffered
        w_b = 2 * ((Ip + Hp) * 3 * Hp + 4 * Hp + 2 * Bp * Hp) * 4     # weights/biases/h0/hn (worst case x2)
        gx_b = 2 * sub * Bp * 3 * Hp * 4                              # projection double buffer
        h_b = Bp * Hp * 4
        return x_b + out_b + w_b + gx_b + h_b

    tT = 8
    for cand in (128, 64, 32, 16, 8):
        if bytes_needed(cand) <= vmem_budget:
            tT = cand
            break
    tT = max(1, min(tT, T))
    return tT, min(SUB, tT)


def encoder_rnn_forward(input_var, prepared, init_state=None, max_chunk_steps=None):
    """EncoderRNN.forward equivalent (input_dropout_p=0 -> identity, GRU, 1 layer).

    input_var : (B, T, I) float32 (PyTorch batch_first input)
    init_state: optional (1, B, H) initial hidden state
    returns   : output (B, T, H), hidden (1, B, H)
    """
    B, T, I = input_var.shape
    H, Hp, Ip = prepared["hidden_size"], prepared["Hp"], prepared["Ip"]
    assert I == prepared["input_size"]

    Bp = _round_up(B, 8)
    vmem_limit = _vmem_budget_bytes()
    tT, SUB = _select_tiles(T, Bp, Ip, Hp, vmem_limit)
    if max_chunk_steps is not None:
        tT = max(1, min(tT, max_chunk_steps))
        SUB = min(SUB, tT)
    n_chunks = -(-T // tT)
    T_pad = n_chunks * tT
    tail_steps = T - (n_chunks - 1) * tT
    masked_tail = tail_steps != tT

    # Glue: time-major + zero padding (real lanes exact; padded hidden columns stay 0).
    # TODO(synk): read batch-first x directly with a (B, tT, I) BlockSpec and reorder
    # in-kernel to avoid these wrapper HBM round-trips (matters most on v5e).
    x_tm = jnp.transpose(input_var, (1, 0, 2)).astype(jnp.float32)       # (T, B, I)
    x_tm = jnp.pad(x_tm, ((0, T_pad - T), (0, Bp - B), (0, Ip - I)))     # (T_pad, Bp, Ip)

    if init_state is None:
        h0 = jnp.zeros((Bp, Hp), jnp.float32)
    else:
        h0 = jnp.asarray(init_state, jnp.float32).reshape(B, H)
        h0 = jnp.pad(h0, ((0, Bp - B), (0, Hp - H)))

    kernel = functools.partial(
        gru_encoder_kernel, hidden_pad=Hp, sub_steps=SUB,
        chunk_steps=tT, tail_steps=tail_steps, masked_tail=masked_tail)

    def _const_spec(shape, single_buffer):
        index_map = lambda c, _n=len(shape): (0,) * _n
        if single_buffer and hasattr(pl, "Buffered"):
            return pl.BlockSpec(shape, index_map, pipeline_mode=pl.Buffered(1))
        return pl.BlockSpec(shape, index_map)

    def build_and_run(single_buffer_weights):
        # TODO(synk): when Bp >= 16, add a leading "parallel" batch-block grid axis so
        # v7x's second TensorCore runs an independent batch shard of the recurrence.
        return pl.pallas_call(
            kernel,
            out_shape=(
                jax.ShapeDtypeStruct((T_pad, Bp, Hp), jnp.float32),
                jax.ShapeDtypeStruct((Bp, Hp), jnp.float32),
            ),
            grid_spec=pltpu.PrefetchScalarGridSpec(
                num_scalar_prefetch=0,
                grid=(n_chunks,),
                in_specs=[
                    pl.BlockSpec((Bp, Hp), lambda c: (0, 0)),            # h0
                    pl.BlockSpec((tT, Bp, Ip), lambda c: (c, 0, 0)),     # x chunk (streamed)
                    _const_spec((Ip, 3 * Hp), single_buffer_weights),    # wih
                    _const_spec((Hp, 3 * Hp), single_buffer_weights),    # whh
                    _const_spec((1, 3 * Hp), single_buffer_weights),     # bih (+b_hr,b_hz)
                    _const_spec((1, Hp), single_buffer_weights),         # bhh_n
                ],
                out_specs=(
                    pl.BlockSpec((tT, Bp, Hp), lambda c: (c, 0, 0)),
                    pl.BlockSpec((Bp, Hp), lambda c: (0, 0)),
                ),
                scratch_shapes=[
                    pltpu.VMEM((2 * SUB, Bp, 3 * Hp), jnp.float32),  # gx double buffer
                    pltpu.VMEM((Bp, Hp), jnp.float32),               # hidden-state carry
                ],
            ),
            compiler_params=pltpu.CompilerParams(
                dimension_semantics=("arbitrary",),
                vmem_limit_bytes=vmem_limit),
        )(h0, x_tm, prepared["wih_t"], prepared["whh_t"],
          prepared["bih"], prepared["bhh_n"])

    try:
        out_tm, h_n = build_and_run(True)
    except Exception:
        # pl.Buffered(1) single-buffering unsupported on this JAX build; fall back to
        # default double-buffered constant operands (same results, more VMEM).
        out_tm, h_n = build_and_run(False)

    output = jnp.transpose(out_tm[:T, :B, :H], (1, 0, 2))    # (B, T, H)
    hidden = h_n[None, :B, :H]                               # (1, B, H)
    return output, hidden


def init_params(key, input_size, hidden_size):
    """Deterministic PyTorch-style GRU parameter init (uniform +-1/sqrt(H))."""
    k1, k2, k3, k4 = jax.random.split(key, 4)
    bound = 1.0 / jnp.sqrt(jnp.float32(hidden_size))
    shape_ih = (3 * hidden_size, input_size)
    shape_hh = (3 * hidden_size, hidden_size)
    return {
        "w_ih": jax.random.uniform(k1, shape_ih, jnp.float32, -bound, bound),
        "w_hh": jax.random.uniform(k2, shape_hh, jnp.float32, -bound, bound),
        "b_ih": jax.random.uniform(k3, (3 * hidden_size,), jnp.float32, -bound, bound),
        "b_hh": jax.random.uniform(k4, (3 * hidden_size,), jnp.float32, -bound, bound),
    }


def gru_reference(x, params):
    """Pure-JAX reference (PyTorch GRU semantics) for correctness checking."""
    B, T, I = x.shape
    H = params["w_hh"].shape[1]
    wih_t, whh_t = params["w_ih"].T, params["w_hh"].T
    bih, bhh = params["b_ih"], params["b_hh"]

    def step(h, x_t):
        gx = x_t @ wih_t + bih
        gh = h @ whh_t + bhh
        r = jax.nn.sigmoid(gx[:, 0:H] + gh[:, 0:H])
        z = jax.nn.sigmoid(gx[:, H:2 * H] + gh[:, H:2 * H])
        n = jnp.tanh(gx[:, 2 * H:3 * H] + r * gh[:, 2 * H:3 * H])
        h_new = (1.0 - z) * n + z * h
        return h_new, h_new

    h0 = jnp.zeros((B, H), jnp.float32)
    h_final, out_tm = lax.scan(step, h0, jnp.transpose(x, (1, 0, 2)))
    return jnp.transpose(out_tm, (1, 0, 2)), h_final[None]


if __name__ == "__main__":
    key = jax.random.PRNGKey(0)
    k_x1, k_x2, k_p = jax.random.split(key, 3)

    # Test 1: small single-chunk case (B=2, T=8, I=H=32).
    B, T, I, H = 2, 8, 32, 32
    x = jax.random.normal(k_x1, (B, T, I), jnp.float32)
    params = init_params(k_p, I, H)
    prepared = prepare_params(params, I, H)   # one-time weight transpose/pad/bias-fold

    output, hidden = encoder_rnn_forward(x, prepared)
    jax.block_until_ready((output, hidden))

    ref_out, ref_hid = gru_reference(x, params)
    assert output.shape == (B, T, H)
    assert hidden.shape == (1, B, H)
    assert jnp.allclose(output, ref_out, atol=1e-5, rtol=1e-5)
    assert jnp.allclose(hidden, ref_hid, atol=1e-5, rtol=1e-5)

    # Test 2: multi-chunk + uneven tail path (forced tiny chunk for coverage).
    B2, T2 = 3, 20
    x2 = jax.random.normal(k_x2, (B2, T2, I), jnp.float32)
    out2, hid2 = encoder_rnn_forward(x2, prepared, max_chunk_steps=8)
    jax.block_until_ready((out2, hid2))
    ref_out2, ref_hid2 = gru_reference(x2, params)
    assert jnp.allclose(out2, ref_out2, atol=1e-5, rtol=1e-5)
    assert jnp.allclose(hid2, ref_hid2, atol=1e-5, rtol=1e-5)

    print("KERNEL_OK")
</pallas_src>

<mosaic_0001>
module attributes {stable_mosaic.version = 11 : i64} {
  func.func @gru_encoder_kernel(%arg0: i32, %arg1: memref<8x128xf32, #tpu.memory_space<vmem>>, %arg2: memref<8x8x128xf32, #tpu.memory_space<vmem>>, %arg3: memref<128x384xf32, #tpu.memory_space<vmem>>, %arg4: memref<128x384xf32, #tpu.memory_space<vmem>>, %arg5: memref<1x384xf32, #tpu.memory_space<vmem>>, %arg6: memref<1x128xf32, #tpu.memory_space<vmem>>, %arg7: memref<8x8x128xf32, #tpu.memory_space<vmem>>, %arg8: memref<8x128xf32, #tpu.memory_space<vmem>>, %arg9: memref<16x8x384xf32, #tpu.memory_space<vmem>>, %arg10: memref<8x128xf32, #tpu.memory_space<vmem>>) attributes {dimension_semantics = [#tpu.dimension_semantics<arbitrary>], iteration_bounds = array<i64: 1>, scalar_prefetch = 0 : i64, scratch_operands = 2 : i64, tpu.core_type = #tpu.core_type<tc>, window_params = [{pipeline_mode = #tpu.pipeline_mode<synchronous>, transform_indices = @transform_0, window_bounds = array<i64: 8, 128>}, {transform_indices = @transform_1, window_bounds = array<i64: 8, 8, 128>}, {pipeline_mode = #tpu.pipeline_mode<synchronous>, transform_indices = @transform_2, window_bounds = array<i64: 128, 384>}, {pipeline_mode = #tpu.pipeline_mode<synchronous>, transform_indices = @transform_3, window_bounds = array<i64: 128, 384>}, {pipeline_mode = #tpu.pipeline_mode<synchronous>, transform_indices = @transform_4, window_bounds = array<i64: 1, 384>}, {pipeline_mode = #tpu.pipeline_mode<synchronous>, transform_indices = @transform_5, window_bounds = array<i64: 1, 128>}, {transform_indices = @transform_6, window_bounds = array<i64: 8, 8, 128>}, {pipeline_mode = #tpu.pipeline_mode<synchronous>, transform_indices = @transform_7, window_bounds = array<i64: 8, 128>}]} {
    %c0_i32 = arith.constant 0 : i32
    %0 = arith.cmpi eq, %arg0, %c0_i32 : i32
    %1 = arith.extui %0 : i1 to i32
    %c0_i32_0 = arith.constant 0 : i32
    %2 = arith.cmpi ne, %1, %c0_i32_0 : i32
    scf.if %2 {
      %c0_93 = arith.constant 0 : index
      %c0_94 = arith.constant 0 : index
      %285 = vector.load %arg1[%c0_93, %c0_94] : memref<8x128xf32, #tpu.memory_space<vmem>>, vector<8x128xf32>
      %c0_95 = arith.constant 0 : index
      %c0_96 = arith.constant 0 : index
      %286 = vector.load %arg10[%c0_95, %c0_96] : memref<8x128xf32, #tpu.memory_space<vmem>>, vector<8x128xf32>
      tpu.vector_store %arg10[%c0_95, %c0_96], %285 {strides = array<i32>} : memref<8x128xf32, #tpu.memory_space<vmem>>, vector<8x128xf32>,
    } else {
    }
    %c0 = arith.constant 0 : index
    %c0_1 = arith.constant 0 : index
    %3 = vector.load %arg3[%c0, %c0_1] : memref<128x384xf32, #tpu.memory_space<vmem>>, vector<128x384xf32>
    %c0_2 = arith.constant 0 : index
    %c0_3 = arith.constant 0 : index
    %4 = vector.load %arg4[%c0_2, %c0_3] : memref<128x384xf32, #tpu.memory_space<vmem>>, vector<128x384xf32>
    %c0_4 = arith.constant 0 : index
    %c0_5 = arith.constant 0 : index
    %5 = vector.load %arg5[%c0_4, %c0_5] : memref<1x384xf32, #tpu.memory_space<vmem>>, vector<1x384xf32>
    %c0_6 = arith.constant 0 : index
    %c0_7 = arith.constant 0 : index
    %6 = vector.load %arg6[%c0_6, %c0_7] : memref<1x128xf32, #tpu.memory_space<vmem>>, vector<1x128xf32>
    %7 = vector.shape_cast %6 : vector<1x128xf32> to vector<1x128xf32>
    %8 = vector.broadcast %7 : vector<1x128xf32> to vector<8x128xf32>
    %c0_8 = arith.constant 0 : index
    %c0_9 = arith.constant 0 : index
    %c0_10 = arith.constant 0 : index
    %9 = vector.load %arg2[%c0_8, %c0_9, %c0_10] : memref<8x8x128xf32, #tpu.memory_space<vmem>>, vector<8x8x128xf32>
    %10 = vector.shape_cast %9 : vector<8x8x128xf32> to vector<64x128xf32>
    %cst = arith.constant dense<0.000000e+00> : vector<64x384xf32>
    %11 = tpu.matmul %10, %3, %cst {dimension_numbers = #tpu.dot_dimension_numbers<[1], [0], [0], [1], [0, 0, 1, 1], [], []>} : vector<64x128xf32>, vector<128x384xf32>, vector<64x384xf32> -> vector<64x384xf32>
    %12 = vector.broadcast %5 : vector<1x384xf32> to vector<64x384xf32>
    %13 = arith.addf %11, %12 : vector<64x384xf32>
    %14 = vector.shape_cast %13 : vector<64x384xf32> to vector<8x8x384xf32>
    %c0_11 = arith.constant 0 : index
    %c0_12 = arith.constant 0 : index
    %c0_13 = arith.constant 0 : index
    %15 = vector.load %arg9[%c0_11, %c0_12, %c0_13] : memref<16x8x384xf32, #tpu.memory_space<vmem>>, vector<8x8x384xf32>
    tpu.vector_store %arg9[%c0_11, %c0_12, %c0_13], %14 {strides = array<i32>} : memref<16x8x384xf32, #tpu.memory_space<vmem>>, vector<8x8x384xf32>,
    %c0_14 = arith.constant 0 : index
    %c0_15 = arith.constant 0 : index
    %16 = vector.load %arg10[%c0_14, %c0_15] : memref<8x128xf32, #tpu.memory_space<vmem>>, vector<8x128xf32>
    %c0_16 = arith.constant 0 : index
    %c0_17 = arith.constant 0 : index
    %c0_18 = arith.constant 0 : index
    %17 = vector.load %arg9[%c0_16, %c0_17, %c0_18] : memref<16x8x384xf32, #tpu.memory_space<vmem>>, vector<1x8x384xf32>
    %18 = vector.shape_cast %17 : vector<1x8x384xf32> to vector<8x384xf32>
    %cst_19 = arith.constant dense<0.000000e+00> : vector<8x384xf32>
    %19 = tpu.matmul %16, %4, %cst_19 {dimension_numbers = #tpu.dot_dimension_numbers<[1], [0], [0], [1], [0, 0, 1, 1], [], []>} : vector<8x128xf32>, vector<128x384xf32>, vector<8x384xf32> -> vector<8x384xf32>
    %20 = vector.extract_strided_slice %18 {offsets = [0, 0], sizes = [8, 128], strides = [1, 1]} : vector<8x384xf32> to vector<8x128xf32>
    %21 = vector.extract_strided_slice %19 {offsets = [0, 0], sizes = [8, 128], strides = [1, 1]} : vector<8x384xf32> to vector<8x128xf32>
    %22 = arith.addf %20, %21 : vector<8x128xf32>
    %23 = arith.negf %22 : vector<8x128xf32>
    %24 = math.exp %23 : vector<8x128xf32>
    %cst_20 = arith.constant 1.000000e+00 : f32
    %25 = vector.broadcast %cst_20 : f32 to vector<8x128xf32>
    %26 = arith.addf %25, %24 : vector<8x128xf32>
    %27 = arith.divf %25, %26 : vector<8x128xf32>
    %28 = vector.extract_strided_slice %18 {offsets = [0, 128], sizes = [8, 128], strides = [1, 1]} : vector<8x384xf32> to vector<8x128xf32>
    %29 = vector.extract_strided_slice %19 {offsets = [0, 128], sizes = [8, 128], strides = [1, 1]} : vector<8x384xf32> to vector<8x128xf32>
    %30 = arith.addf %28, %29 : vector<8x128xf32>
    %31 = arith.negf %30 : vector<8x128xf32>
    %32 = math.exp %31 : vector<8x128xf32>
    %cst_21 = arith.constant 1.000000e+00 : f32
    %33 = vector.broadcast %cst_21 : f32 to vector<8x128xf32>
    %34 = arith.addf %33, %32 : vector<8x128xf32>
    %35 = arith.divf %33, %34 : vector<8x128xf32>
    %36 = vector.extract_strided_slice %18 {offsets = [0, 256], sizes = [8, 128], strides = [1, 1]} : vector<8x384xf32> to vector<8x128xf32>
    %37 = vector.extract_strided_slice %19 {offsets = [0, 256], sizes = [8, 128], strides = [1, 1]} : vector<8x384xf32> to vector<8x128xf32>
    %38 = arith.addf %37, %8 : vector<8x128xf32>
    %39 = arith.mulf %27, %38 : vector<8x128xf32>
    %40 = arith.addf %36, %39 : vector<8x128xf32>
    %41 = math.tanh %40 : vector<8x128xf32>
    %cst_22 = arith.constant 1.000000e+00 : f32
    %42 = vector.broadcast %cst_22 : f32 to vector<8x128xf32>
    %43 = arith.subf %42, %35 : vector<8x128xf32>
    %44 = arith.mulf %43, %41 : vector<8x128xf32>
    %45 = arith.mulf %35, %16 : vector<8x128xf32>
    %46 = arith.addf %44, %45 : vector<8x128xf32>
    %c0_23 = arith.constant 0 : index
    %c0_24 = arith.constant 0 : index
    %c0_25 = arith.constant 0 : index
    %47 = vector.load %arg7[%c0_23, %c0_24, %c0_25] : memref<8x8x128xf32, #tpu.memory_space<vmem>>, vector<1x8x128xf32>
    %48 = vector.shape_cast %47 : vector<1x8x128xf32> to vector<8x128xf32>
    %49 = vector.shape_cast %46 : vector<8x128xf32> to vector<1x8x128xf32>
    tpu.vector_store %arg7[%c0_23, %c0_24, %c0_25], %49 {strides = array<i32>} : memref<8x8x128xf32, #tpu.memory_space<vmem>>, vector<1x8x128xf32>,
    %c1 = arith.constant 1 : index
    %c0_26 = arith.constant 0 : index
    %c0_27 = arith.constant 0 : index
    %50 = vector.load %arg9[%c1, %c0_26, %c0_27] : memref<16x8x384xf32, #tpu.memory_space<vmem>>, vector<1x8x384xf32>
    %51 = vector.shape_cast %50 : vector<1x8x384xf32> to vector<8x384xf32>
    %cst_28 = arith.constant dense<0.000000e+00> : vector<8x384xf32>
    %52 = tpu.matmul %46, %4, %cst_28 {dimension_numbers = #tpu.dot_dimension_numbers<[1], [0], [0], [1], [0, 0, 1, 1], [], []>} : vector<8x128xf32>, vector<128x384xf32>, vector<8x384xf32> -> vector<8x384xf32>
    %53 = vector.extract_strided_slice %51 {offsets = [0, 0], sizes = [8, 128], strides = [1, 1]} : vector<8x384xf32> to vector<8x128xf32>
    %54 = vector.extract_strided_slice %52 {offsets = [0, 0], sizes = [8, 128], strides = [1, 1]} : vector<8x384xf32> to vector<8x128xf32>
    %55 = arith.addf %53, %54 : vector<8x128xf32>
    %56 = arith.negf %55 : vector<8x128xf32>
    %57 = math.exp %56 : vector<8x128xf32>
    %cst_29 = arith.constant 1.000000e+00 : f32
    %58 = vector.broadcast %cst_29 : f32 to vector<8x128xf32>
    %59 = arith.addf %58, %57 : vector<8x128xf32>
    %60 = arith.divf %58, %59 : vector<8x128xf32>
    %61 = vector.extract_strided_slice %51 {offsets = [0, 128], sizes = [8, 128], strides = [1, 1]} : vector<8x384xf32> to vector<8x128xf32>
    %62 = vector.extract_strided_slice %52 {offsets = [0, 128], sizes = [8, 128], strides = [1, 1]} : vector<8x384xf32> to vector<8x128xf32>
    %63 = arith.addf %61, %62 : vector<8x128xf32>
    %64 = arith.negf %63 : vector<8x128xf32>
    %65 = math.exp %64 : vector<8x128xf32>
    %cst_30 = arith.constant 1.000000e+00 : f32
    %66 = vector.broadcast %cst_30 : f32 to vector<8x128xf32>
    %67 = arith.addf %66, %65 : vector<8x128xf32>
    %68 = arith.divf %66, %67 : vector<8x128xf32>
    %69 = vector.extract_strided_slice %51 {offsets = [0, 256], sizes = [8, 128], strides = [1, 1]} : vector<8x384xf32> to vector<8x128xf32>
    %70 = vector.extract_strided_slice %52 {offsets = [0, 256], sizes = [8, 128], strides = [1, 1]} : vector<8x384xf32> to vector<8x128xf32>
    %71 = arith.addf %70, %8 : vector<8x128xf32>
    %72 = arith.mulf %60, %71 : vector<8x128xf32>
    %73 = arith.addf %69, %72 : vector<8x128xf32>
    %74 = math.tanh %73 : vector<8x128xf32>
    %cst_31 = arith.constant 1.000000e+00 : f32
    %75 = vector.broadcast %cst_31 : f32 to vector<8x128xf32>
    %76 = arith.subf %75, %68 : vector<8x128xf32>
    %77 = arith.mulf %76, %74 : vector<8x128xf32>
    %78 = arith.mulf %68, %46 : vector<8x128xf32>
    %79 = arith.addf %77, %78 : vector<8x128xf32>
    %c1_32 = arith.constant 1 : index
    %c0_33 = arith.constant 0 : index
    %c0_34 = arith.constant 0 : index
    %80 = vector.load %arg7[%c1_32, %c0_33, %c0_34] : memref<8x8x128xf32, #tpu.memory_space<vmem>>, vector<1x8x128xf32>
    %81 = vector.shape_cast %80 : vector<1x8x128xf32> to vector<8x128xf32>
    %82 = vector.shape_cast %79 : vector<8x128xf32> to vector<1x8x128xf32>
    tpu.vector_store %arg7[%c1_32, %c0_33, %c0_34], %82 {strides = array<i32>} : memref<8x8x128xf32, #tpu.memory_space<vmem>>, vector<1x8x128xf32>,
    %c2 = arith.constant 2 : index
    %c0_35 = arith.constant 0 : index
    %c0_36 = arith.constant 0 : index
    %83 = vector.load %arg9[%c2, %c0_35, %c0_36] : memref<16x8x384xf32, #tpu.memory_space<vmem>>, vector<1x8x384xf32>
    %84 = vector.shape_cast %83 : vector<1x8x384xf32> to vector<8x384xf32>
    %cst_37 = arith.constant dense<0.000000e+00> : vector<8x384xf32>
    %85 = tpu.matmul %79, %4, %cst_37 {dimension_numbers = #tpu.dot_dimension_numbers<[1], [0], [0], [1], [0, 0, 1, 1], [], []>} : vector<8x128xf32>, vector<128x384xf32>, vector<8x384xf32> -> vector<8x384xf32>
    %86 = vector.extract_strided_slice %84 {offsets = [0, 0], sizes = [8, 128], strides = [1, 1]} : vector<8x384xf32> to vector<8x128xf32>
    %87 = vector.extract_strided_slice %85 {offsets = [0, 0], sizes = [8, 128], strides = [1, 1]} : vector<8x384xf32> to vector<8x128xf32>
    %88 = arith.addf %86, %87 : vector<8x128xf32>
    %89 = arith.negf %88 : vector<8x128xf32>
    %90 = math.exp %89 : vector<8x128xf32>
    %cst_38 = arith.constant 1.000000e+00 : f32
    %91 = vector.broadcast %cst_38 : f32 to vector<8x128xf32>
    %92 = arith.addf %91, %90 : vector<8x128xf32>
    %93 = arith.divf %91, %92 : vector<8x128xf32>
    %94 = vector.extract_strided_slice %84 {offsets = [0, 128], sizes = [8, 128], strides = [1, 1]} : vector<8x384xf32> to vector<8x128xf32>
    %95 = vector.extract_strided_slice %85 {offsets = [0, 128], sizes = [8, 128], strides = [1, 1]} : vector<8x384xf32> to vector<8x128xf32>
    %96 = arith.addf %94, %95 : vector<8x128xf32>
    %97 = arith.negf %96 : vector<8x128xf32>
    %98 = math.exp %97 : vector<8x128xf32>
    %cst_39 = arith.constant 1.000000e+00 : f32
    %99 = vector.broadcast %cst_39 : f32 to vector<8x128xf32>
    %100 = arith.addf %99, %98 : vector<8x128xf32>
    %101 = arith.divf %99, %100 : vector<8x128xf32>
    %102 = vector.extract_strided_slice %84 {offsets = [0, 256], sizes = [8, 128], strides = [1, 1]} : vector<8x384xf32> to vector<8x128xf32>
    %103 = vector.extract_strided_slice %85 {offsets = [0, 256], sizes = [8, 128], strides = [1, 1]} : vector<8x384xf32> to vector<8x128xf32>
    %104 = arith.addf %103, %8 : vector<8x128xf32>
    %105 = arith.mulf %93, %104 : vector<8x128xf32>
    %106 = arith.addf %102, %105 : vector<8x128xf32>
    %107 = math.tanh %106 : vector<8x128xf32>
    %cst_40 = arith.constant 1.000000e+00 : f32
    %108 = vector.broadcast %cst_40 : f32 to vector<8x128xf32>
    %109 = arith.subf %108, %101 : vector<8x128xf32>
    %110 = arith.mulf %109, %107 : vector<8x128xf32>
    %111 = arith.mulf %101, %79 : vector<8x128xf32>
    %112 = arith.addf %110, %111 : vector<8x128xf32>
    %c2_41 = arith.constant 2 : index
    %c0_42 = arith.constant 0 : index
    %c0_43 = arith.constant 0 : index
    %113 = vector.load %arg7[%c2_41, %c0_42, %c0_43] : memref<8x8x128xf32, #tpu.memory_space<vmem>>, vector<1x8x128xf32>
    %114 = vector.shape_cast %113 : vector<1x8x128xf32> to vector<8x128xf32>
    %115 = vector.shape_cast %112 : vector<8x128xf32> to vector<1x8x128xf32>
    tpu.vector_store %arg7[%c2_41, %c0_42, %c0_43], %115 {strides = array<i32>} : memref<8x8x128xf32, #tpu.memory_space<vmem>>, vector<1x8x128xf32>,
    %c3 = arith.constant 3 : index
    %c0_44 = arith.constant 0 : index
    %c0_45 = arith.constant 0 : index
    %116 = vector.load %arg9[%c3, %c0_44, %c0_45] : memref<16x8x384xf32, #tpu.memory_space<vmem>>, vector<1x8x384xf32>
    %117 = vector.shape_cast %116 : vector<1x8x384xf32> to vector<8x384xf32>
    %cst_46 = arith.constant dense<0.000000e+00> : vector<8x384xf32>
    %118 = tpu.matmul %112, %4, %cst_46 {dimension_numbers = #tpu.dot_dimension_numbers<[1], [0], [0], [1], [0, 0, 1, 1], [], []>} : vector<8x128xf32>, vector<128x384xf32>, vector<8x384xf32> -> vector<8x384xf32>
    %119 = vector.extract_strided_slice %117 {offsets = [0, 0], sizes = [8, 128], strides = [1, 1]} : vector<8x384xf32> to vector<8x128xf32>
    %120 = vector.extract_strided_slice %118 {offsets = [0, 0], sizes = [8, 128], strides = [1, 1]} : vector<8x384xf32> to vector<8x128xf32>
    %121 = arith.addf %119, %120 : vector<8x128xf32>
    %122 = arith.negf %121 : vector<8x128xf32>
    %123 = math.exp %122 : vector<8x128xf32>
    %cst_47 = arith.constant 1.000000e+00 : f32
    %124 = vector.broadcast %cst_47 : f32 to vector<8x128xf32>
    %125 = arith.addf %124, %123 : vector<8x128xf32>
    %126 = arith.divf %124, %125 : vector<8x128xf32>
    %127 = vector.extract_strided_slice %117 {offsets = [0, 128], sizes = [8, 128], strides = [1, 1]} : vector<8x384xf32> to vector<8x128xf32>
    %128 = vector.extract_strided_slice %118 {offsets = [0, 128], sizes = [8, 128], strides = [1, 1]} : vector<8x384xf32> to vector<8x128xf32>
    %129 = arith.addf %127, %128 : vector<8x128xf32>
    %130 = arith.negf %129 : vector<8x128xf32>
    %131 = math.exp %130 : vector<8x128xf32>
    %cst_48 = arith.constant 1.000000e+00 : f32
    %132 = vector.broadcast %cst_48 : f32 to vector<8x128xf32>
    %133 = arith.addf %132, %131 : vector<8x128xf32>
    %134 = arith.divf %132, %133 : vector<8x128xf32>
    %135 = vector.extract_strided_slice %117 {offsets = [0, 256], sizes = [8, 128], strides = [1, 1]} : vector<8x384xf32> to vector<8x128xf32>
    %136 = vector.extract_strided_slice %118 {offsets = [0, 256], sizes = [8, 128], strides = [1, 1]} : vector<8x384xf32> to vector<8x128xf32>
    %137 = arith.addf %136, %8 : vector<8x128xf32>
    %138 = arith.mulf %126, %137 : vector<8x128xf32>
    %139 = arith.addf %135, %138 : vector<8x128xf32>
    %140 = math.tanh %139 : vector<8x128xf32>
    %cst_49 = arith.constant 1.000000e+00 : f32
    %141 = vector.broadcast %cst_49 : f32 to vector<8x128xf32>
    %142 = arith.subf %141, %134 : vector<8x128xf32>
    %143 = arith.mulf %142, %140 : vector<8x128xf32>
    %144 = arith.mulf %134, %112 : vector<8x128xf32>
    %145 = arith.addf %143, %144 : vector<8x128xf32>
    %c3_50 = arith.constant 3 : index
    %c0_51 = arith.constant 0 : index
    %c0_52 = arith.constant 0 : index
    %146 = vector.load %arg7[%c3_50, %c0_51, %c0_52] : memref<8x8x128xf32, #tpu.memory_space<vmem>>, vector<1x8x128xf32>
    %147 = vector.shape_cast %146 : vector<1x8x128xf32> to vector<8x128xf32>
    %148 = vector.shape_cast %145 : vector<8x128xf32> to vector<1x8x128xf32>
    tpu.vector_store %arg7[%c3_50, %c0_51, %c0_52], %148 {strides = array<i32>} : memref<8x8x128xf32, #tpu.memory_space<vmem>>, vector<1x8x128xf32>,
    %c4 = arith.constant 4 : index
    %c0_53 = arith.constant 0 : index
    %c0_54 = arith.constant 0 : index
    %149 = vector.load %arg9[%c4, %c0_53, %c0_54] : memref<16x8x384xf32, #tpu.memory_space<vmem>>, vector<1x8x384xf32>
    %150 = vector.shape_cast %149 : vector<1x8x384xf32> to vector<8x384xf32>
    %cst_55 = arith.constant dense<0.000000e+00> : vector<8x384xf32>
    %151 = tpu.matmul %145, %4, %cst_55 {dimension_numbers = #tpu.dot_dimension_numbers<[1], [0], [0], [1], [0, 0, 1, 1], [], []>} : vector<8x128xf32>, vector<128x384xf32>, vector<8x384xf32> -> vector<8x384xf32>
    %152 = vector.extract_strided_slice %150 {offsets = [0, 0], sizes = [8, 128], strides = [1, 1]} : vector<8x384xf32> to vector<8x128xf32>
    %153 = vector.extract_strided_slice %151 {offsets = [0, 0], sizes = [8, 128], strides = [1, 1]} : vector<8x384xf32> to vector<8x128xf32>
    %154 = arith.addf %152, %153 : vector<8x128xf32>
    %155 = arith.negf %154 : vector<8x128xf32>
    %156 = math.exp %155 : vector<8x128xf32>
    %cst_56 = arith.constant 1.000000e+00 : f32
    %157 = vector.broadcast %cst_56 : f32 to vector<8x128xf32>
    %158 = arith.addf %157, %156 : vector<8x128xf32>
    %159 = arith.divf %157, %158 : vector<8x128xf32>
    %160 = vector.extract_strided_slice %150 {offsets = [0, 128], sizes = [8, 128], strides = [1, 1]} : vector<8x384xf32> to vector<8x128xf32>
    %161 = vector.extract_strided_slice %151 {offsets = [0, 128], sizes = [8, 128], strides = [1, 1]} : vector<8x384xf32> to vector<8x128xf32>
    %162 = arith.addf %160, %161 : vector<8x128xf32>
    %163 = arith.negf %162 : vector<8x128xf32>
    %164 = math.exp %163 : vector<8x128xf32>
    %cst_57 = arith.constant 1.000000e+00 : f32
    %165 = vector.broadcast %cst_57 : f32 to vector<8x128xf32>
    %166 = arith.addf %165, %164 : vector<8x128xf32>
    %167 = arith.divf %165, %166 : vector<8x128xf32>
    %168 = vector.extract_strided_slice %150 {offsets = [0, 256], sizes = [8, 128], strides = [1, 1]} : vector<8x384xf32> to vector<8x128xf32>
    %169 = vector.extract_strided_slice %151 {offsets = [0, 256], sizes = [8, 128], strides = [1, 1]} : vector<8x384xf32> to vector<8x128xf32>
    %170 = arith.addf %169, %8 : vector<8x128xf32>
    %171 = arith.mulf %159, %170 : vector<8x128xf32>
    %172 = arith.addf %168, %171 : vector<8x128xf32>
    %173 = math.tanh %172 : vector<8x128xf32>
    %cst_58 = arith.constant 1.000000e+00 : f32
    %174 = vector.broadcast %cst_58 : f32 to vector<8x128xf32>
    %175 = arith.subf %174, %167 : vector<8x128xf32>
    %176 = arith.mulf %175, %173 : vector<8x128xf32>
    %177 = arith.mulf %167, %145 : vector<8x128xf32>
    %178 = arith.addf %176, %177 : vector<8x128xf32>
    %c4_59 = arith.constant 4 : index
    %c0_60 = arith.constant 0 : index
    %c0_61 = arith.constant 0 : index
    %179 = vector.load %arg7[%c4_59, %c0_60, %c0_61] : memref<8x8x128xf32, #tpu.memory_space<vmem>>, vector<1x8x128xf32>
    %180 = vector.shape_cast %179 : vector<1x8x128xf32> to vector<8x128xf32>
    %181 = vector.shape_cast %178 : vector<8x128xf32> to vector<1x8x128xf32>
    tpu.vector_store %arg7[%c4_59, %c0_60, %c0_61], %181 {strides = array<i32>} : memref<8x8x128xf32, #tpu.memory_space<vmem>>, vector<1x8x128xf32>,
    %c5 = arith.constant 5 : index
    %c0_62 = arith.constant 0 : index
    %c0_63 = arith.constant 0 : index
    %182 = vector.load %arg9[%c5, %c0_62, %c0_63] : memref<16x8x384xf32, #tpu.memory_space<vmem>>, vector<1x8x384xf32>
    %183 = vector.shape_cast %182 : vector<1x8x384xf32> to vector<8x384xf32>
    %cst_64 = arith.constant dense<0.000000e+00> : vector<8x384xf32>
    %184 = tpu.matmul %178, %4, %cst_64 {dimension_numbers = #tpu.dot_dimension_numbers<[1], [0], [0], [1], [0, 0, 1, 1], [], []>} : vector<8x128xf32>, vector<128x384xf32>, vector<8x384xf32> -> vector<8x384xf32>
    %185 = vector.extract_strided_slice %183 {offsets = [0, 0], sizes = [8, 128], strides = [1, 1]} : vector<8x384xf32> to vector<8x128xf32>
    %186 = vector.extract_strided_slice %184 {offsets = [0, 0], sizes = [8, 128], strides = [1, 1]} : vector<8x384xf32> to vector<8x128xf32>
    %187 = arith.addf %185, %186 : vector<8x128xf32>
    %188 = arith.negf %187 : vector<8x128xf32>
    %189 = math.exp %188 : vector<8x128xf32>
    %cst_65 = arith.constant 1.000000e+00 : f32
    %190 = vector.broadcast %cst_65 : f32 to vector<8x128xf32>
    %191 = arith.addf %190, %189 : vector<8x128xf32>
    %192 = arith.divf %190, %191 : vector<8x128xf32>
    %193 = vector.extract_strided_slice %183 {offsets = [0, 128], sizes = [8, 128], strides = [1, 1]} : vector<8x384xf32> to vector<8x128xf32>
    %194 = vector.extract_strided_slice %184 {offsets = [0, 128], sizes = [8, 128], strides = [1, 1]} : vector<8x384xf32> to vector<8x128xf32>
    %195 = arith.addf %193, %194 : vector<8x128xf32>
    %196 = arith.negf %195 : vector<8x128xf32>
    %197 = math.exp %196 : vector<8x128xf32>
    %cst_66 = arith.constant 1.000000e+00 : f32
    %198 = vector.broadcast %cst_66 : f32 to vector<8x128xf32>
    %199 = arith.addf %198, %197 : vector<8x128xf32>
    %200 = arith.divf %198, %199 : vector<8x128xf32>
    %201 = vector.extract_strided_slice %183 {offsets = [0, 256], sizes = [8, 128], strides = [1, 1]} : vector<8x384xf32> to vector<8x128xf32>
    %202 = vector.extract_strided_slice %184 {offsets = [0, 256], sizes = [8, 128], strides = [1, 1]} : vector<8x384xf32> to vector<8x128xf32>
    %203 = arith.addf %202, %8 : vector<8x128xf32>
    %204 = arith.mulf %192, %203 : vector<8x128xf32>
    %205 = arith.addf %201, %204 : vector<8x128xf32>
    %206 = math.tanh %205 : vector<8x128xf32>
    %cst_67 = arith.constant 1.000000e+00 : f32
    %207 = vector.broadcast %cst_67 : f32 to vector<8x128xf32>
    %208 = arith.subf %207, %200 : vector<8x128xf32>
    %209 = arith.mulf %208, %206 : vector<8x128xf32>
    %210 = arith.mulf %200, %178 : vector<8x128xf32>
    %211 = arith.addf %209, %210 : vector<8x128xf32>
    %c5_68 = arith.constant 5 : index
    %c0_69 = arith.constant 0 : index
    %c0_70 = arith.constant 0 : index
    %212 = vector.load %arg7[%c5_68, %c0_69, %c0_70] : memref<8x8x128xf32, #tpu.memory_space<vmem>>, vector<1x8x128xf32>
    %213 = vector.shape_cast %212 : vector<1x8x128xf32> to vector<8x128xf32>
    %214 = vector.shape_cast %211 : vector<8x128xf32> to vector<1x8x128xf32>
    tpu.vector_store %arg7[%c5_68, %c0_69, %c0_70], %214 {strides = array<i32>} : memref<8x8x128xf32, #tpu.memory_space<vmem>>, vector<1x8x128xf32>,
    %c6 = arith.constant 6 : index
    %c0_71 = arith.constant 0 : index
    %c0_72 = arith.constant 0 : index
    %215 = vector.load %arg9[%c6, %c0_71, %c0_72] : memref<16x8x384xf32, #tpu.memory_space<vmem>>, vector<1x8x384xf32>
    %216 = vector.shape_cast %215 : vector<1x8x384xf32> to vector<8x384xf32>
    %cst_73 = arith.constant dense<0.000000e+00> : vector<8x384xf32>
    %217 = tpu.matmul %211, %4, %cst_73 {dimension_numbers = #tpu.dot_dimension_numbers<[1], [0], [0], [1], [0, 0, 1, 1], [], []>} : vector<8x128xf32>, vector<128x384xf32>, vector<8x384xf32> -> vector<8x384xf32>
    %218 = vector.extract_strided_slice %216 {offsets = [0, 0], sizes = [8, 128], strides = [1, 1]} : vector<8x384xf32> to vector<8x128xf32>
    %219 = vector.extract_strided_slice %217 {offsets = [0, 0], sizes = [8, 128], strides = [1, 1]} : vector<8x384xf32> to vector<8x128xf32>
    %220 = arith.addf %218, %219 : vector<8x128xf32>
    %221 = arith.negf %220 : vector<8x128xf32>
    %222 = math.exp %221 : vector<8x128xf32>
    %cst_74 = arith.constant 1.000000e+00 : f32
    %223 = vector.broadcast %cst_74 : f32 to vector<8x128xf32>
    %224 = arith.addf %223, %222 : vector<8x128xf32>
    %225 = arith.divf %223, %224 : vector<8x128xf32>
    %226 = vector.extract_strided_slice %216 {offsets = [0, 128], sizes = [8, 128], strides = [1, 1]} : vector<8x384xf32> to vector<8x128xf32>
    %227 = vector.extract_strided_slice %217 {offsets = [0, 128], sizes = [8, 128], strides = [1, 1]} : vector<8x384xf32> to vector<8x128xf32>
    %228 = arith.addf %226, %227 : vector<8x128xf32>
    %229 = arith.negf %228 : vector<8x128xf32>
    %230 = math.exp %229 : vector<8x128xf32>
    %cst_75 = arith.constant 1.000000e+00 : f32
    %231 = vector.broadcast %cst_75 : f32 to vector<8x128xf32>
    %232 = arith.addf %231, %230 : vector<8x128xf32>
    %233 = arith.divf %231, %232 : vector<8x128xf32>
    %234 = vector.extract_strided_slice %216 {offsets = [0, 256], sizes = [8, 128], strides = [1, 1]} : vector<8x384xf32> to vector<8x128xf32>
    %235 = vector.extract_strided_slice %217 {offsets = [0, 256], sizes = [8, 128], strides = [1, 1]} : vector<8x384xf32> to vector<8x128xf32>
    %236 = arith.addf %235, %8 : vector<8x128xf32>
    %237 = arith.mulf %225, %236 : vector<8x128xf32>
    %238 = arith.addf %234, %237 : vector<8x128xf32>
    %239 = math.tanh %238 : vector<8x128xf32>
    %cst_76 = arith.constant 1.000000e+00 : f32
    %240 = vector.broadcast %cst_76 : f32 to vector<8x128xf32>
    %241 = arith.subf %240, %233 : vector<8x128xf32>
    %242 = arith.mulf %241, %239 : vector<8x128xf32>
    %243 = arith.mulf %233, %211 : vector<8x128xf32>
    %244 = arith.addf %242, %243 : vector<8x128xf32>
    %c6_77 = arith.constant 6 : index
    %c0_78 = arith.constant 0 : index
    %c0_79 = arith.constant 0 : index
    %245 = vector.load %arg7[%c6_77, %c0_78, %c0_79] : memref<8x8x128xf32, #tpu.memory_space<vmem>>, vector<1x8x128xf32>
    %246 = vector.shape_cast %245 : vector<1x8x128xf32> to vector<8x128xf32>
    %247 = vector.shape_cast %244 : vector<8x128xf32> to vector<1x8x128xf32>
    tpu.vector_store %arg7[%c6_77, %c0_78, %c0_79], %247 {strides = array<i32>} : memref<8x8x128xf32, #tpu.memory_space<vmem>>, vector<1x8x128xf32>,
    %c7 = arith.constant 7 : index
    %c0_80 = arith.constant 0 : index
    %c0_81 = arith.constant 0 : index
    %248 = vector.load %arg9[%c7, %c0_80, %c0_81] : memref<16x8x384xf32, #tpu.memory_space<vmem>>, vector<1x8x384xf32>
    %249 = vector.shape_cast %248 : vector<1x8x384xf32> to vector<8x384xf32>
    %cst_82 = arith.constant dense<0.000000e+00> : vector<8x384xf32>
    %250 = tpu.matmul %244, %4, %cst_82 {dimension_numbers = #tpu.dot_dimension_numbers<[1], [0], [0], [1], [0, 0, 1, 1], [], []>} : vector<8x128xf32>, vector<128x384xf32>, vector<8x384xf32> -> vector<8x384xf32>
    %251 = vector.extract_strided_slice %249 {offsets = [0, 0], sizes = [8, 128], strides = [1, 1]} : vector<8x384xf32> to vector<8x128xf32>
    %252 = vector.extract_strided_slice %250 {offsets = [0, 0], sizes = [8, 128], strides = [1, 1]} : vector<8x384xf32> to vector<8x128xf32>
    %253 = arith.addf %251, %252 : vector<8x128xf32>
    %254 = arith.negf %253 : vector<8x128xf32>
    %255 = math.exp %254 : vector<8x128xf32>
    %cst_83 = arith.constant 1.000000e+00 : f32
    %256 = vector.broadcast %cst_83 : f32 to vector<8x128xf32>
    %257 = arith.addf %256, %255 : vector<8x128xf32>
    %258 = arith.divf %256, %257 : vector<8x128xf32>
    %259 = vector.extract_strided_slice %249 {offsets = [0, 128], sizes = [8, 128], strides = [1, 1]} : vector<8x384xf32> to vector<8x128xf32>
    %260 = vector.extract_strided_slice %250 {offsets = [0, 128], sizes = [8, 128], strides = [1, 1]} : vector<8x384xf32> to vector<8x128xf32>
    %261 = arith.addf %259, %260 : vector<8x128xf32>
    %262 = arith.negf %261 : vector<8x128xf32>
    %263 = math.exp %262 : vector<8x128xf32>
    %cst_84 = arith.constant 1.000000e+00 : f32
    %264 = vector.broadcast %cst_84 : f32 to vector<8x128xf32>
    %265 = arith.addf %264, %263 : vector<8x128xf32>
    %266 = arith.divf %264, %265 : vector<8x128xf32>
    %267 = vector.extract_strided_slice %249 {offsets = [0, 256], sizes = [8, 128], strides = [1, 1]} : vector<8x384xf32> to vector<8x128xf32>
    %268 = vector.extract_strided_slice %250 {offsets = [0, 256], sizes = [8, 128], strides = [1, 1]} : vector<8x384xf32> to vector<8x128xf32>
    %269 = arith.addf %268, %8 : vector<8x128xf32>
    %270 = arith.mulf %258, %269 : vector<8x128xf32>
    %271 = arith.addf %267, %270 : vector<8x128xf32>
    %272 = math.tanh %271 : vector<8x128xf32>
    %cst_85 = arith.constant 1.000000e+00 : f32
    %273 = vector.broadcast %cst_85 : f32 to vector<8x128xf32>
    %274 = arith.subf %273, %266 : vector<8x128xf32>
    %275 = arith.mulf %274, %272 : vector<8x128xf32>
    %276 = arith.mulf %266, %244 : vector<8x128xf32>
    %277 = arith.addf %275, %276 : vector<8x128xf32>
    %c7_86 = arith.constant 7 : index
    %c0_87 = arith.constant 0 : index
    %c0_88 = arith.constant 0 : index
    %278 = vector.load %arg7[%c7_86, %c0_87, %c0_88] : memref<8x8x128xf32, #tpu.memory_space<vmem>>, vector<1x8x128xf32>
    %279 = vector.shape_cast %278 : vector<1x8x128xf32> to vector<8x128xf32>
    %280 = vector.shape_cast %277 : vector<8x128xf32> to vector<1x8x128xf32>
    tpu.vector_store %arg7[%c7_86, %c0_87, %c0_88], %280 {strides = array<i32>} : memref<8x8x128xf32, #tpu.memory_space<vmem>>, vector<1x8x128xf32>,
    %c0_89 = arith.constant 0 : index
    %c0_90 = arith.constant 0 : index
    %281 = vector.load %arg10[%c0_89, %c0_90] : memref<8x128xf32, #tpu.memory_space<vmem>>, vector<8x128xf32>
    tpu.vector_store %arg10[%c0_89, %c0_90], %277 {strides = array<i32>} : memref<8x128xf32, #tpu.memory_space<vmem>>, vector<8x128xf32>,
    %c0_i32_91 = arith.constant 0 : i32
    %282 = arith.cmpi eq, %arg0, %c0_i32_91 : i32
    %283 = arith.extui %282 : i1 to i32
    %c0_i32_92 = arith.constant 0 : i32
    %284 = arith.cmpi ne, %283, %c0_i32_92 : i32
    scf.if %284 {
      %c0_93 = arith.constant 0 : index
      %c0_94 = arith.constant 0 : index
      %285 = vector.load %arg10[%c0_93, %c0_94] : memref<8x128xf32, #tpu.memory_space<vmem>>, vector<8x128xf32>
      %c0_95 = arith.constant 0 : index
      %c0_96 = arith.constant 0 : index
      %286 = vector.load %arg8[%c0_95, %c0_96] : memref<8x128xf32, #tpu.memory_space<vmem>>, vector<8x128xf32>
      tpu.vector_store %arg8[%c0_95, %c0_96], %285 {strides = array<i32>} : memref<8x128xf32, #tpu.memory_space<vmem>>, vector<8x128xf32>,
    } else {
    }
    return
  }
  func.func @transform_0(%arg0: i32) -> (i32, i32) {
    %c0_i32 = arith.constant 0 : i32
    %c0_i32_0 = arith.constant 0 : i32
    %c0_i32_1 = arith.constant 0 : i32
    return %c0_i32, %c0_i32_0 : i32, i32
  }
  func.func @transform_1(%arg0: i32) -> (i32, i32, i32) {
    %c0_i32 = arith.constant 0 : i32
    %c0_i32_0 = arith.constant 0 : i32
    %c0_i32_1 = arith.constant 0 : i32
    return %arg0, %c0_i32, %c0_i32_0 : i32, i32, i32
  }
  func.func @transform_2(%arg0: i32) -> (i32, i32) {
    %c0_i32 = arith.constant 0 : i32
    %c0_i32_0 = arith.constant 0 : i32
    %c0_i32_1 = arith.constant 0 : i32
    return %c0_i32, %c0_i32_0 : i32, i32
  }
  func.func @transform_3(%arg0: i32) -> (i32, i32) {
    %c0_i32 = arith.constant 0 : i32
    %c0_i32_0 = arith.constant 0 : i32
    %c0_i32_1 = arith.constant 0 : i32
    return %c0_i32, %c0_i32_0 : i32, i32
  }
  func.func @transform_4(%arg0: i32) -> (i32, i32) {
    %c0_i32 = arith.constant 0 : i32
    %c0_i32_0 = arith.constant 0 : i32
    %c0_i32_1 = arith.constant 0 : i32
    return %c0_i32, %c0_i32_0 : i32, i32
  }
  func.func @transform_5(%arg0: i32) -> (i32, i32) {
    %c0_i32 = arith.constant 0 : i32
    %c0_i32_0 = arith.constant 0 : i32
    %c0_i32_1 = arith.constant 0 : i32
    return %c0_i32, %c0_i32_0 : i32, i32
  }
  func.func @transform_6(%arg0: i32) -> (i32, i32, i32) {
    %c0_i32 = arith.constant 0 : i32
    %c0_i32_0 = arith.constant 0 : i32
    %c0_i32_1 = arith.constant 0 : i32
    return %arg0, %c0_i32, %c0_i32_0 : i32, i32, i32
  }
  func.func @transform_7(%arg0: i32) -> (i32, i32) {
    %c0_i32 = arith.constant 0 : i32
    %c0_i32_0 = arith.constant 0 : i32
    %c0_i32_1 = arith.constant 0 : i32
    return %c0_i32, %c0_i32_0 : i32, i32
  }
}

module attributes {stable_mosaic.version = 11 : i64} {
  func.func @gru_encoder_kernel(%arg0: i32, %arg1: memref<8x128xf32, #tpu.memory_space<vmem>>, %arg2: memref<8x8x128xf32, #tpu.memory_space<vmem>>, %arg3: memref<128x384xf32, #tpu.memory_space<vmem>>, %arg4: memref<128x384xf32, #tpu.memory_space<vmem>>, %arg5: memref<1x384xf32, #tpu.memory_space<vmem>>, %arg6: memref<1x128xf32, #tpu.memory_space<vmem>>, %arg7: memref<8x8x128xf32, #tpu.memory_space<vmem>>, %arg8: memref<8x128xf32, #tpu.memory_space<vmem>>, %arg9: memref<16x8x384xf32, #tpu.memory_space<vmem>>, %arg10: memref<8x128xf32, #tpu.memory_space<vmem>>) attributes {dimension_semantics = [#tpu.dimension_semantics<arbitrary>], iteration_bounds = array<i64: 1>, scalar_prefetch = 0 : i64, scratch_operands = 2 : i64, tpu.core_type = #tpu.core_type<tc>, window_params = [{pipeline_mode = #tpu.pipeline_mode<synchronous>, transform_indices = @transform_0, window_bounds = array<i64: 8, 128>}, {transform_indices = @transform_1, window_bounds = array<i64: 8, 8, 128>}, {pipeline_mode = #tpu.pipeline_mode<synchronous>, transform_indices = @transform_2, window_bounds = array<i64: 128, 384>}, {pipeline_mode = #tpu.pipeline_mode<synchronous>, transform_indices = @transform_3, window_bounds = array<i64: 128, 384>}, {pipeline_mode = #tpu.pipeline_mode<synchronous>, transform_indices = @transform_4, window_bounds = array<i64: 1, 384>}, {pipeline_mode = #tpu.pipeline_mode<synchronous>, transform_indices = @transform_5, window_bounds = array<i64: 1, 128>}, {transform_indices = @transform_6, window_bounds = array<i64: 8, 8, 128>}, {pipeline_mode = #tpu.pipeline_mode<synchronous>, transform_indices = @transform_7, window_bounds = array<i64: 8, 128>}]} {
    %c0_i32 = arith.constant 0 : i32
    %0 = arith.cmpi eq, %arg0, %c0_i32 : i32
    %1 = arith.extui %0 : i1 to i32
    %c0_i32_0 = arith.constant 0 : i32
    %2 = arith.cmpi ne, %1, %c0_i32_0 : i32
    scf.if %2 {
      %c0_93 = arith.constant 0 : index
      %c0_94 = arith.constant 0 : index
      %285 = vector.load %arg1[%c0_93, %c0_94] : memref<8x128xf32, #tpu.memory_space<vmem>>, vector<8x128xf32>
      %c0_95 = arith.constant 0 : index
      %c0_96 = arith.constant 0 : index
      %286 = vector.load %arg10[%c0_95, %c0_96] : memref<8x128xf32, #tpu.memory_space<vmem>>, vector<8x128xf32>
      tpu.vector_store %arg10[%c0_95, %c0_96], %285 {strides = array<i32>} : memref<8x128xf32, #tpu.memory_space<vmem>>, vector<8x128xf32>,
    } else {
    }
    %c0 = arith.constant 0 : index
    %c0_1 = arith.constant 0 : index
    %3 = vector.load %arg3[%c0, %c0_1] : memref<128x384xf32, #tpu.memory_space<vmem>>, vector<128x384xf32>
    %c0_2 = arith.constant 0 : index
    %c0_3 = arith.constant 0 : index
    %4 = vector.load %arg4[%c0_2, %c0_3] : memref<128x384xf32, #tpu.memory_space<vmem>>, vector<128x384xf32>
    %c0_4 = arith.constant 0 : index
    %c0_5 = arith.constant 0 : index
    %5 = vector.load %arg5[%c0_4, %c0_5] : memref<1x384xf32, #tpu.memory_space<vmem>>, vector<1x384xf32>
    %c0_6 = arith.constant 0 : index
    %c0_7 = arith.constant 0 : index
    %6 = vector.load %arg6[%c0_6, %c0_7] : memref<1x128xf32, #tpu.memory_space<vmem>>, vector<1x128xf32>
    %7 = vector.shape_cast %6 : vector<1x128xf32> to vector<1x128xf32>
    %8 = vector.broadcast %7 : vector<1x128xf32> to vector<8x128xf32>
    %c0_8 = arith.constant 0 : index
    %c0_9 = arith.constant 0 : index
    %c0_10 = arith.constant 0 : index
    %9 = vector.load %arg2[%c0_8, %c0_9, %c0_10] : memref<8x8x128xf32, #tpu.memory_space<vmem>>, vector<8x8x128xf32>
    %10 = vector.shape_cast %9 : vector<8x8x128xf32> to vector<64x128xf32>
    %cst = arith.constant dense<0.000000e+00> : vector<64x384xf32>
    %11 = tpu.matmul %10, %3, %cst {dimension_numbers = #tpu.dot_dimension_numbers<[1], [0], [0], [1], [0, 0, 1, 1], [], []>} : vector<64x128xf32>, vector<128x384xf32>, vector<64x384xf32> -> vector<64x384xf32>
    %12 = vector.broadcast %5 : vector<1x384xf32> to vector<64x384xf32>
    %13 = arith.addf %11, %12 : vector<64x384xf32>
    %14 = vector.shape_cast %13 : vector<64x384xf32> to vector<8x8x384xf32>
    %c0_11 = arith.constant 0 : index
    %c0_12 = arith.constant 0 : index
    %c0_13 = arith.constant 0 : index
    %15 = vector.load %arg9[%c0_11, %c0_12, %c0_13] : memref<16x8x384xf32, #tpu.memory_space<vmem>>, vector<8x8x384xf32>
    tpu.vector_store %arg9[%c0_11, %c0_12, %c0_13], %14 {strides = array<i32>} : memref<16x8x384xf32, #tpu.memory_space<vmem>>, vector<8x8x384xf32>,
    %c0_14 = arith.constant 0 : index
    %c0_15 = arith.constant 0 : index
    %16 = vector.load %arg10[%c0_14, %c0_15] : memref<8x128xf32, #tpu.memory_space<vmem>>, vector<8x128xf32>
    %c0_16 = arith.constant 0 : index
    %c0_17 = arith.constant 0 : index
    %c0_18 = arith.constant 0 : index
    %17 = vector.load %arg9[%c0_16, %c0_17, %c0_18] : memref<16x8x384xf32, #tpu.memory_space<vmem>>, vector<1x8x384xf32>
    %18 = vector.shape_cast %17 : vector<1x8x384xf32> to vector<8x384xf32>
    %cst_19 = arith.constant dense<0.000000e+00> : vector<8x384xf32>
    %19 = tpu.matmul %16, %4, %cst_19 {dimension_numbers = #tpu.dot_dimension_numbers<[1], [0], [0], [1], [0, 0, 1, 1], [], []>} : vector<8x128xf32>, vector<128x384xf32>, vector<8x384xf32> -> vector<8x384xf32>
    %20 = vector.extract_strided_slice %18 {offsets = [0, 0], sizes = [8, 128], strides = [1, 1]} : vector<8x384xf32> to vector<8x128xf32>
    %21 = vector.extract_strided_slice %19 {offsets = [0, 0], sizes = [8, 128], strides = [1, 1]} : vector<8x384xf32> to vector<8x128xf32>
    %22 = arith.addf %20, %21 : vector<8x128xf32>
    %23 = arith.negf %22 : vector<8x128xf32>
    %24 = math.exp %23 : vector<8x128xf32>
    %cst_20 = arith.constant 1.000000e+00 : f32
    %25 = vector.broadcast %cst_20 : f32 to vector<8x128xf32>
    %26 = arith.addf %25, %24 : vector<8x128xf32>
    %27 = arith.divf %25, %26 : vector<8x128xf32>
    %28 = vector.extract_strided_slice %18 {offsets = [0, 128], sizes = [8, 128], strides = [1, 1]} : vector<8x384xf32> to vector<8x128xf32>
    %29 = vector.extract_strided_slice %19 {offsets = [0, 128], sizes = [8, 128], strides = [1, 1]} : vector<8x384xf32> to vector<8x128xf32>
    %30 = arith.addf %28, %29 : vector<8x128xf32>
    %31 = arith.negf %30 : vector<8x128xf32>
    %32 = math.exp %31 : vector<8x128xf32>
    %cst_21 = arith.constant 1.000000e+00 : f32
    %33 = vector.broadcast %cst_21 : f32 to vector<8x128xf32>
    %34 = arith.addf %33, %32 : vector<8x128xf32>
    %35 = arith.divf %33, %34 : vector<8x128xf32>
    %36 = vector.extract_strided_slice %18 {offsets = [0, 256], sizes = [8, 128], strides = [1, 1]} : vector<8x384xf32> to vector<8x128xf32>
    %37 = vector.extract_strided_slice %19 {offsets = [0, 256], sizes = [8, 128], strides = [1, 1]} : vector<8x384xf32> to vector<8x128xf32>
    %38 = arith.addf %37, %8 : vector<8x128xf32>
    %39 = arith.mulf %27, %38 : vector<8x128xf32>
    %40 = arith.addf %36, %39 : vector<8x128xf32>
    %41 = math.tanh %40 : vector<8x128xf32>
    %cst_22 = arith.constant 1.000000e+00 : f32
    %42 = vector.broadcast %cst_22 : f32 to vector<8x128xf32>
    %43 = arith.subf %42, %35 : vector<8x128xf32>
    %44 = arith.mulf %43, %41 : vector<8x128xf32>
    %45 = arith.mulf %35, %16 : vector<8x128xf32>
    %46 = arith.addf %44, %45 : vector<8x128xf32>
    %c0_23 = arith.constant 0 : index
    %c0_24 = arith.constant 0 : index
    %c0_25 = arith.constant 0 : index
    %47 = vector.load %arg7[%c0_23, %c0_24, %c0_25] : memref<8x8x128xf32, #tpu.memory_space<vmem>>, vector<1x8x128xf32>
    %48 = vector.shape_cast %47 : vector<1x8x128xf32> to vector<8x128xf32>
    %49 = vector.shape_cast %46 : vector<8x128xf32> to vector<1x8x128xf32>
    tpu.vector_store %arg7[%c0_23, %c0_24, %c0_25], %49 {strides = array<i32>} : memref<8x8x128xf32, #tpu.memory_space<vmem>>, vector<1x8x128xf32>,
    %c1 = arith.constant 1 : index
    %c0_26 = arith.constant 0 : index
    %c0_27 = arith.constant 0 : index
    %50 = vector.load %arg9[%c1, %c0_26, %c0_27] : memref<16x8x384xf32, #tpu.memory_space<vmem>>, vector<1x8x384xf32>
    %51 = vector.shape_cast %50 : vector<1x8x384xf32> to vector<8x384xf32>
    %cst_28 = arith.constant dense<0.000000e+00> : vector<8x384xf32>
    %52 = tpu.matmul %46, %4, %cst_28 {dimension_numbers = #tpu.dot_dimension_numbers<[1], [0], [0], [1], [0, 0, 1, 1], [], []>} : vector<8x128xf32>, vector<128x384xf32>, vector<8x384xf32> -> vector<8x384xf32>
    %53 = vector.extract_strided_slice %51 {offsets = [0, 0], sizes = [8, 128], strides = [1, 1]} : vector<8x384xf32> to vector<8x128xf32>
    %54 = vector.extract_strided_slice %52 {offsets = [0, 0], sizes = [8, 128], strides = [1, 1]} : vector<8x384xf32> to vector<8x128xf32>
    %55 = arith.addf %53, %54 : vector<8x128xf32>
    %56 = arith.negf %55 : vector<8x128xf32>
    %57 = math.exp %56 : vector<8x128xf32>
    %cst_29 = arith.constant 1.000000e+00 : f32
    %58 = vector.broadcast %cst_29 : f32 to vector<8x128xf32>
    %59 = arith.addf %58, %57 : vector<8x128xf32>
    %60 = arith.divf %58, %59 : vector<8x128xf32>
    %61 = vector.extract_strided_slice %51 {offsets = [0, 128], sizes = [8, 128], strides = [1, 1]} : vector<8x384xf32> to vector<8x128xf32>
    %62 = vector.extract_strided_slice %52 {offsets = [0, 128], sizes = [8, 128], strides = [1, 1]} : vector<8x384xf32> to vector<8x128xf32>
    %63 = arith.addf %61, %62 : vector<8x128xf32>
    %64 = arith.negf %63 : vector<8x128xf32>
    %65 = math.exp %64 : vector<8x128xf32>
    %cst_30 = arith.constant 1.000000e+00 : f32
    %66 = vector.broadcast %cst_30 : f32 to vector<8x128xf32>
    %67 = arith.addf %66, %65 : vector<8x128xf32>
    %68 = arith.divf %66, %67 : vector<8x128xf32>
    %69 = vector.extract_strided_slice %51 {offsets = [0, 256], sizes = [8, 128], strides = [1, 1]} : vector<8x384xf32> to vector<8x128xf32>
    %70 = vector.extract_strided_slice %52 {offsets = [0, 256], sizes = [8, 128], strides = [1, 1]} : vector<8x384xf32> to vector<8x128xf32>
    %71 = arith.addf %70, %8 : vector<8x128xf32>
    %72 = arith.mulf %60, %71 : vector<8x128xf32>
    %73 = arith.addf %69, %72 : vector<8x128xf32>
    %74 = math.tanh %73 : vector<8x128xf32>
    %cst_31 = arith.constant 1.000000e+00 : f32
    %75 = vector.broadcast %cst_31 : f32 to vector<8x128xf32>
    %76 = arith.subf %75, %68 : vector<8x128xf32>
    %77 = arith.mulf %76, %74 : vector<8x128xf32>
    %78 = arith.mulf %68, %46 : vector<8x128xf32>
    %79 = arith.addf %77, %78 : vector<8x128xf32>
    %c1_32 = arith.constant 1 : index
    %c0_33 = arith.constant 0 : index
    %c0_34 = arith.constant 0 : index
    %80 = vector.load %arg7[%c1_32, %c0_33, %c0_34] : memref<8x8x128xf32, #tpu.memory_space<vmem>>, vector<1x8x128xf32>
    %81 = vector.shape_cast %80 : vector<1x8x128xf32> to vector<8x128xf32>
    %82 = vector.shape_cast %79 : vector<8x128xf32> to vector<1x8x128xf32>
    tpu.vector_store %arg7[%c1_32, %c0_33, %c0_34], %82 {strides = array<i32>} : memref<8x8x128xf32, #tpu.memory_space<vmem>>, vector<1x8x128xf32>,
    %c2 = arith.constant 2 : index
    %c0_35 = arith.constant 0 : index
    %c0_36 = arith.constant 0 : index
    %83 = vector.load %arg9[%c2, %c0_35, %c0_36] : memref<16x8x384xf32, #tpu.memory_space<vmem>>, vector<1x8x384xf32>
    %84 = vector.shape_cast %83 : vector<1x8x384xf32> to vector<8x384xf32>
    %cst_37 = arith.constant dense<0.000000e+00> : vector<8x384xf32>
    %85 = tpu.matmul %79, %4, %cst_37 {dimension_numbers = #tpu.dot_dimension_numbers<[1], [0], [0], [1], [0, 0, 1, 1], [], []>} : vector<8x128xf32>, vector<128x384xf32>, vector<8x384xf32> -> vector<8x384xf32>
    %86 = vector.extract_strided_slice %84 {offsets = [0, 0], sizes = [8, 128], strides = [1, 1]} : vector<8x384xf32> to vector<8x128xf32>
    %87 = vector.extract_strided_slice %85 {offsets = [0, 0], sizes = [8, 128], strides = [1, 1]} : vector<8x384xf32> to vector<8x128xf32>
    %88 = arith.addf %86, %87 : vector<8x128xf32>
    %89 = arith.negf %88 : vector<8x128xf32>
    %90 = math.exp %89 : vector<8x128xf32>
    %cst_38 = arith.constant 1.000000e+00 : f32
    %91 = vector.broadcast %cst_38 : f32 to vector<8x128xf32>
    %92 = arith.addf %91, %90 : vector<8x128xf32>
    %93 = arith.divf %91, %92 : vector<8x128xf32>
    %94 = vector.extract_strided_slice %84 {offsets = [0, 128], sizes = [8, 128], strides = [1, 1]} : vector<8x384xf32> to vector<8x128xf32>
    %95 = vector.extract_strided_slice %85 {offsets = [0, 128], sizes = [8, 128], strides = [1, 1]} : vector<8x384xf32> to vector<8x128xf32>
    %96 = arith.addf %94, %95 : vector<8x128xf32>
    %97 = arith.negf %96 : vector<8x128xf32>
    %98 = math.exp %97 : vector<8x128xf32>
    %cst_39 = arith.constant 1.000000e+00 : f32
    %99 = vector.broadcast %cst_39 : f32 to vector<8x128xf32>
    %100 = arith.addf %99, %98 : vector<8x128xf32>
    %101 = arith.divf %99, %100 : vector<8x128xf32>
    %102 = vector.extract_strided_slice %84 {offsets = [0, 256], sizes = [8, 128], strides = [1, 1]} : vector<8x384xf32> to vector<8x128xf32>
    %103 = vector.extract_strided_slice %85 {offsets = [0, 256], sizes = [8, 128], strides = [1, 1]} : vector<8x384xf32> to vector<8x128xf32>
    %104 = arith.addf %103, %8 : vector<8x128xf32>
    %105 = arith.mulf %93, %104 : vector<8x128xf32>
    %106 = arith.addf %102, %105 : vector<8x128xf32>
    %107 = math.tanh %106 : vector<8x128xf32>
    %cst_40 = arith.constant 1.000000e+00 : f32
    %108 = vector.broadcast %cst_40 : f32 to vector<8x128xf32>
    %109 = arith.subf %108, %101 : vector<8x128xf32>
    %110 = arith.mulf %109, %107 : vector<8x128xf32>
    %111 = arith.mulf %101, %79 : vector<8x128xf32>
    %112 = arith.addf %110, %111 : vector<8x128xf32>
    %c2_41 = arith.constant 2 : index
    %c0_42 = arith.constant 0 : index
    %c0_43 = arith.constant 0 : index
    %113 = vector.load %arg7[%c2_41, %c0_42, %c0_43] : memref<8x8x128xf32, #tpu.memory_space<vmem>>, vector<1x8x128xf32>
    %114 = vector.shape_cast %113 : vector<1x8x128xf32> to vector<8x128xf32>
    %115 = vector.shape_cast %112 : vector<8x128xf32> to vector<1x8x128xf32>
    tpu.vector_store %arg7[%c2_41, %c0_42, %c0_43], %115 {strides = array<i32>} : memref<8x8x128xf32, #tpu.memory_space<vmem>>, vector<1x8x128xf32>,
    %c3 = arith.constant 3 : index
    %c0_44 = arith.constant 0 : index
    %c0_45 = arith.constant 0 : index
    %116 = vector.load %arg9[%c3, %c0_44, %c0_45] : memref<16x8x384xf32, #tpu.memory_space<vmem>>, vector<1x8x384xf32>
    %117 = vector.shape_cast %116 : vector<1x8x384xf32> to vector<8x384xf32>
    %cst_46 = arith.constant dense<0.000000e+00> : vector<8x384xf32>
    %118 = tpu.matmul %112, %4, %cst_46 {dimension_numbers = #tpu.dot_dimension_numbers<[1], [0], [0], [1], [0, 0, 1, 1], [], []>} : vector<8x128xf32>, vector<128x384xf32>, vector<8x384xf32> -> vector<8x384xf32>
    %119 = vector.extract_strided_slice %117 {offsets = [0, 0], sizes = [8, 128], strides = [1, 1]} : vector<8x384xf32> to vector<8x128xf32>
    %120 = vector.extract_strided_slice %118 {offsets = [0, 0], sizes = [8, 128], strides = [1, 1]} : vector<8x384xf32> to vector<8x128xf32>
    %121 = arith.addf %119, %120 : vector<8x128xf32>
    %122 = arith.negf %121 : vector<8x128xf32>
    %123 = math.exp %122 : vector<8x128xf32>
    %cst_47 = arith.constant 1.000000e+00 : f32
    %124 = vector.broadcast %cst_47 : f32 to vector<8x128xf32>
    %125 = arith.addf %124, %123 : vector<8x128xf32>
    %126 = arith.divf %124, %125 : vector<8x128xf32>
    %127 = vector.extract_strided_slice %117 {offsets = [0, 128], sizes = [8, 128], strides = [1, 1]} : vector<8x384xf32> to vector<8x128xf32>
    %128 = vector.extract_strided_slice %118 {offsets = [0, 128], sizes = [8, 128], strides = [1, 1]} : vector<8x384xf32> to vector<8x128xf32>
    %129 = arith.addf %127, %128 : vector<8x128xf32>
    %130 = arith.negf %129 : vector<8x128xf32>
    %131 = math.exp %130 : vector<8x128xf32>
    %cst_48 = arith.constant 1.000000e+00 : f32
    %132 = vector.broadcast %cst_48 : f32 to vector<8x128xf32>
    %133 = arith.addf %132, %131 : vector<8x128xf32>
    %134 = arith.divf %132, %133 : vector<8x128xf32>
    %135 = vector.extract_strided_slice %117 {offsets = [0, 256], sizes = [8, 128], strides = [1, 1]} : vector<8x384xf32> to vector<8x128xf32>
    %136 = vector.extract_strided_slice %118 {offsets = [0, 256], sizes = [8, 128], strides = [1, 1]} : vector<8x384xf32> to vector<8x128xf32>
    %137 = arith.addf %136, %8 : vector<8x128xf32>
    %138 = arith.mulf %126, %137 : vector<8x128xf32>
    %139 = arith.addf %135, %138 : vector<8x128xf32>
    %140 = math.tanh %139 : vector<8x128xf32>
    %cst_49 = arith.constant 1.000000e+00 : f32
    %141 = vector.broadcast %cst_49 : f32 to vector<8x128xf32>
    %142 = arith.subf %141, %134 : vector<8x128xf32>
    %143 = arith.mulf %142, %140 : vector<8x128xf32>
    %144 = arith.mulf %134, %112 : vector<8x128xf32>
    %145 = arith.addf %143, %144 : vector<8x128xf32>
    %c3_50 = arith.constant 3 : index
    %c0_51 = arith.constant 0 : index
    %c0_52 = arith.constant 0 : index
    %146 = vector.load %arg7[%c3_50, %c0_51, %c0_52] : memref<8x8x128xf32, #tpu.memory_space<vmem>>, vector<1x8x128xf32>
    %147 = vector.shape_cast %146 : vector<1x8x128xf32> to vector<8x128xf32>
    %148 = vector.shape_cast %145 : vector<8x128xf32> to vector<1x8x128xf32>
    tpu.vector_store %arg7[%c3_50, %c0_51, %c0_52], %148 {strides = array<i32>} : memref<8x8x128xf32, #tpu.memory_space<vmem>>, vector<1x8x128xf32>,
    %c4 = arith.constant 4 : index
    %c0_53 = arith.constant 0 : index
    %c0_54 = arith.constant 0 : index
    %149 = vector.load %arg9[%c4, %c0_53, %c0_54] : memref<16x8x384xf32, #tpu.memory_space<vmem>>, vector<1x8x384xf32>
    %150 = vector.shape_cast %149 : vector<1x8x384xf32> to vector<8x384xf32>
    %cst_55 = arith.constant dense<0.000000e+00> : vector<8x384xf32>
    %151 = tpu.matmul %145, %4, %cst_55 {dimension_numbers = #tpu.dot_dimension_numbers<[1], [0], [0], [1], [0, 0, 1, 1], [], []>} : vector<8x128xf32>, vector<128x384xf32>, vector<8x384xf32> -> vector<8x384xf32>
    %152 = vector.extract_strided_slice %150 {offsets = [0, 0], sizes = [8, 128], strides = [1, 1]} : vector<8x384xf32> to vector<8x128xf32>
    %153 = vector.extract_strided_slice %151 {offsets = [0, 0], sizes = [8, 128], strides = [1, 1]} : vector<8x384xf32> to vector<8x128xf32>
    %154 = arith.addf %152, %153 : vector<8x128xf32>
    %155 = arith.negf %154 : vector<8x128xf32>
    %156 = math.exp %155 : vector<8x128xf32>
    %cst_56 = arith.constant 1.000000e+00 : f32
    %157 = vector.broadcast %cst_56 : f32 to vector<8x128xf32>
    %158 = arith.addf %157, %156 : vector<8x128xf32>
    %159 = arith.divf %157, %158 : vector<8x128xf32>
    %160 = vector.extract_strided_slice %150 {offsets = [0, 128], sizes = [8, 128], strides = [1, 1]} : vector<8x384xf32> to vector<8x128xf32>
    %161 = vector.extract_strided_slice %151 {offsets = [0, 128], sizes = [8, 128], strides = [1, 1]} : vector<8x384xf32> to vector<8x128xf32>
    %162 = arith.addf %160, %161 : vector<8x128xf32>
    %163 = arith.negf %162 : vector<8x128xf32>
    %164 = math.exp %163 : vector<8x128xf32>
    %cst_57 = arith.constant 1.000000e+00 : f32
    %165 = vector.broadcast %cst_57 : f32 to vector<8x128xf32>
    %166 = arith.addf %165, %164 : vector<8x128xf32>
    %167 = arith.divf %165, %166 : vector<8x128xf32>
    %168 = vector.extract_strided_slice %150 {offsets = [0, 256], sizes = [8, 128], strides = [1, 1]} : vector<8x384xf32> to vector<8x128xf32>
    %169 = vector.extract_strided_slice %151 {offsets = [0, 256], sizes = [8, 128], strides = [1, 1]} : vector<8x384xf32> to vector<8x128xf32>
    %170 = arith.addf %169, %8 : vector<8x128xf32>
    %171 = arith.mulf %159, %170 : vector<8x128xf32>
    %172 = arith.addf %168, %171 : vector<8x128xf32>
    %173 = math.tanh %172 : vector<8x128xf32>
    %cst_58 = arith.constant 1.000000e+00 : f32
    %174 = vector.broadcast %cst_58 : f32 to vector<8x128xf32>
    %175 = arith.subf %174, %167 : vector<8x128xf32>
    %176 = arith.mulf %175, %173 : vector<8x128xf32>
    %177 = arith.mulf %167, %145 : vector<8x128xf32>
    %178 = arith.addf %176, %177 : vector<8x128xf32>
    %c4_59 = arith.constant 4 : index
    %c0_60 = arith.constant 0 : index
    %c0_61 = arith.constant 0 : index
    %179 = vector.load %arg7[%c4_59, %c0_60, %c0_61] : memref<8x8x128xf32, #tpu.memory_space<vmem>>, vector<1x8x128xf32>
    %180 = vector.shape_cast %179 : vector<1x8x128xf32> to vector<8x128xf32>
    %181 = vector.shape_cast %178 : vector<8x128xf32> to vector<1x8x128xf32>
    tpu.vector_store %arg7[%c4_59, %c0_60, %c0_61], %181 {strides = array<i32>} : memref<8x8x128xf32, #tpu.memory_space<vmem>>, vector<1x8x128xf32>,
    %c5 = arith.constant 5 : index
    %c0_62 = arith.constant 0 : index
    %c0_63 = arith.constant 0 : index
    %182 = vector.load %arg9[%c5, %c0_62, %c0_63] : memref<16x8x384xf32, #tpu.memory_space<vmem>>, vector<1x8x384xf32>
    %183 = vector.shape_cast %182 : vector<1x8x384xf32> to vector<8x384xf32>
    %cst_64 = arith.constant dense<0.000000e+00> : vector<8x384xf32>
    %184 = tpu.matmul %178, %4, %cst_64 {dimension_numbers = #tpu.dot_dimension_numbers<[1], [0], [0], [1], [0, 0, 1, 1], [], []>} : vector<8x128xf32>, vector<128x384xf32>, vector<8x384xf32> -> vector<8x384xf32>
    %185 = vector.extract_strided_slice %183 {offsets = [0, 0], sizes = [8, 128], strides = [1, 1]} : vector<8x384xf32> to vector<8x128xf32>
    %186 = vector.extract_strided_slice %184 {offsets = [0, 0], sizes = [8, 128], strides = [1, 1]} : vector<8x384xf32> to vector<8x128xf32>
    %187 = arith.addf %185, %186 : vector<8x128xf32>
    %188 = arith.negf %187 : vector<8x128xf32>
    %189 = math.exp %188 : vector<8x128xf32>
    %cst_65 = arith.constant 1.000000e+00 : f32
    %190 = vector.broadcast %cst_65 : f32 to vector<8x128xf32>
    %191 = arith.addf %190, %189 : vector<8x128xf32>
    %192 = arith.divf %190, %191 : vector<8x128xf32>
    %193 = vector.extract_strided_slice %183 {offsets = [0, 128], sizes = [8, 128], strides = [1, 1]} : vector<8x384xf32> to vector<8x128xf32>
    %194 = vector.extract_strided_slice %184 {offsets = [0, 128], sizes = [8, 128], strides = [1, 1]} : vector<8x384xf32> to vector<8x128xf32>
    %195 = arith.addf %193, %194 : vector<8x128xf32>
    %196 = arith.negf %195 : vector<8x128xf32>
    %197 = math.exp %196 : vector<8x128xf32>
    %cst_66 = arith.constant 1.000000e+00 : f32
    %198 = vector.broadcast %cst_66 : f32 to vector<8x128xf32>
    %199 = arith.addf %198, %197 : vector<8x128xf32>
    %200 = arith.divf %198, %199 : vector<8x128xf32>
    %201 = vector.extract_strided_slice %183 {offsets = [0, 256], sizes = [8, 128], strides = [1, 1]} : vector<8x384xf32> to vector<8x128xf32>
    %202 = vector.extract_strided_slice %184 {offsets = [0, 256], sizes = [8, 128], strides = [1, 1]} : vector<8x384xf32> to vector<8x128xf32>
    %203 = arith.addf %202, %8 : vector<8x128xf32>
    %204 = arith.mulf %192, %203 : vector<8x128xf32>
    %205 = arith.addf %201, %204 : vector<8x128xf32>
    %206 = math.tanh %205 : vector<8x128xf32>
    %cst_67 = arith.constant 1.000000e+00 : f32
    %207 = vector.broadcast %cst_67 : f32 to vector<8x128xf32>
    %208 = arith.subf %207, %200 : vector<8x128xf32>
    %209 = arith.mulf %208, %206 : vector<8x128xf32>
    %210 = arith.mulf %200, %178 : vector<8x128xf32>
    %211 = arith.addf %209, %210 : vector<8x128xf32>
    %c5_68 = arith.constant 5 : index
    %c0_69 = arith.constant 0 : index
    %c0_70 = arith.constant 0 : index
    %212 = vector.load %arg7[%c5_68, %c0_69, %c0_70] : memref<8x8x128xf32, #tpu.memory_space<vmem>>, vector<1x8x128xf32>
    %213 = vector.shape_cast %212 : vector<1x8x128xf32> to vector<8x128xf32>
    %214 = vector.shape_cast %211 : vector<8x128xf32> to vector<1x8x128xf32>
    tpu.vector_store %arg7[%c5_68, %c0_69, %c0_70], %214 {strides = array<i32>} : memref<8x8x128xf32, #tpu.memory_space<vmem>>, vector<1x8x128xf32>,
    %c6 = arith.constant 6 : index
    %c0_71 = arith.constant 0 : index
    %c0_72 = arith.constant 0 : index
    %215 = vector.load %arg9[%c6, %c0_71, %c0_72] : memref<16x8x384xf32, #tpu.memory_space<vmem>>, vector<1x8x384xf32>
    %216 = vector.shape_cast %215 : vector<1x8x384xf32> to vector<8x384xf32>
    %cst_73 = arith.constant dense<0.000000e+00> : vector<8x384xf32>
    %217 = tpu.matmul %211, %4, %cst_73 {dimension_numbers = #tpu.dot_dimension_numbers<[1], [0], [0], [1], [0, 0, 1, 1], [], []>} : vector<8x128xf32>, vector<128x384xf32>, vector<8x384xf32> -> vector<8x384xf32>
    %218 = vector.extract_strided_slice %216 {offsets = [0, 0], sizes = [8, 128], strides = [1, 1]} : vector<8x384xf32> to vector<8x128xf32>
    %219 = vector.extract_strided_slice %217 {offsets = [0, 0], sizes = [8, 128], strides = [1, 1]} : vector<8x384xf32> to vector<8x128xf32>
    %220 = arith.addf %218, %219 : vector<8x128xf32>
    %221 = arith.negf %220 : vector<8x128xf32>
    %222 = math.exp %221 : vector<8x128xf32>
    %cst_74 = arith.constant 1.000000e+00 : f32
    %223 = vector.broadcast %cst_74 : f32 to vector<8x128xf32>
    %224 = arith.addf %223, %222 : vector<8x128xf32>
    %225 = arith.divf %223, %224 : vector<8x128xf32>
    %226 = vector.extract_strided_slice %216 {offsets = [0, 128], sizes = [8, 128], strides = [1, 1]} : vector<8x384xf32> to vector<8x128xf32>
    %227 = vector.extract_strided_slice %217 {offsets = [0, 128], sizes = [8, 128], strides = [1, 1]} : vector<8x384xf32> to vector<8x128xf32>
    %228 = arith.addf %226, %227 : vector<8x128xf32>
    %229 = arith.negf %228 : vector<8x128xf32>
    %230 = math.exp %229 : vector<8x128xf32>
    %cst_75 = arith.constant 1.000000e+00 : f32
    %231 = vector.broadcast %cst_75 : f32 to vector<8x128xf32>
    %232 = arith.addf %231, %230 : vector<8x128xf32>
    %233 = arith.divf %231, %232 : vector<8x128xf32>
    %234 = vector.extract_strided_slice %216 {offsets = [0, 256], sizes = [8, 128], strides = [1, 1]} : vector<8x384xf32> to vector<8x128xf32>
    %235 = vector.extract_strided_slice %217 {offsets = [0, 256], sizes = [8, 128], strides = [1, 1]} : vector<8x384xf32> to vector<8x128xf32>
    %236 = arith.addf %235, %8 : vector<8x128xf32>
    %237 = arith.mulf %225, %236 : vector<8x128xf32>
    %238 = arith.addf %234, %237 : vector<8x128xf32>
    %239 = math.tanh %238 : vector<8x128xf32>
    %cst_76 = arith.constant 1.000000e+00 : f32
    %240 = vector.broadcast %cst_76 : f32 to vector<8x128xf32>
    %241 = arith.subf %240, %233 : vector<8x128xf32>
    %242 = arith.mulf %241, %239 : vector<8x128xf32>
    %243 = arith.mulf %233, %211 : vector<8x128xf32>
    %244 = arith.addf %242, %243 : vector<8x128xf32>
    %c6_77 = arith.constant 6 : index
    %c0_78 = arith.constant 0 : index
    %c0_79 = arith.constant 0 : index
    %245 = vector.load %arg7[%c6_77, %c0_78, %c0_79] : memref<8x8x128xf32, #tpu.memory_space<vmem>>, vector<1x8x128xf32>
    %246 = vector.shape_cast %245 : vector<1x8x128xf32> to vector<8x128xf32>
    %247 = vector.shape_cast %244 : vector<8x128xf32> to vector<1x8x128xf32>
    tpu.vector_store %arg7[%c6_77, %c0_78, %c0_79], %247 {strides = array<i32>} : memref<8x8x128xf32, #tpu.memory_space<vmem>>, vector<1x8x128xf32>,
    %c7 = arith.constant 7 : index
    %c0_80 = arith.constant 0 : index
    %c0_81 = arith.constant 0 : index
    %248 = vector.load %arg9[%c7, %c0_80, %c0_81] : memref<16x8x384xf32, #tpu.memory_space<vmem>>, vector<1x8x384xf32>
    %249 = vector.shape_cast %248 : vector<1x8x384xf32> to vector<8x384xf32>
    %cst_82 = arith.constant dense<0.000000e+00> : vector<8x384xf32>
    %250 = tpu.matmul %244, %4, %cst_82 {dimension_numbers = #tpu.dot_dimension_numbers<[1], [0], [0], [1], [0, 0, 1, 1], [], []>} : vector<8x128xf32>, vector<128x384xf32>, vector<8x384xf32> -> vector<8x384xf32>
    %251 = vector.extract_strided_slice %249 {offsets = [0, 0], sizes = [8, 128], strides = [1, 1]} : vector<8x384xf32> to vector<8x128xf32>
    %252 = vector.extract_strided_slice %250 {offsets = [0, 0], sizes = [8, 128], strides = [1, 1]} : vector<8x384xf32> to vector<8x128xf32>
    %253 = arith.addf %251, %252 : vector<8x128xf32>
    %254 = arith.negf %253 : vector<8x128xf32>
    %255 = math.exp %254 : vector<8x128xf32>
    %cst_83 = arith.constant 1.000000e+00 : f32
    %256 = vector.broadcast %cst_83 : f32 to vector<8x128xf32>
    %257 = arith.addf %256, %255 : vector<8x128xf32>
    %258 = arith.divf %256, %257 : vector<8x128xf32>
    %259 = vector.extract_strided_slice %249 {offsets = [0, 128], sizes = [8, 128], strides = [1, 1]} : vector<8x384xf32> to vector<8x128xf32>
    %260 = vector.extract_strided_slice %250 {offsets = [0, 128], sizes = [8, 128], strides = [1, 1]} : vector<8x384xf32> to vector<8x128xf32>
    %261 = arith.addf %259, %260 : vector<8x128xf32>
    %262 = arith.negf %261 : vector<8x128xf32>
    %263 = math.exp %262 : vector<8x128xf32>
    %cst_84 = arith.constant 1.000000e+00 : f32
    %264 = vector.broadcast %cst_84 : f32 to vector<8x128xf32>
    %265 = arith.addf %264, %263 : vector<8x128xf32>
    %266 = arith.divf %264, %265 : vector<8x128xf32>
    %267 = vector.extract_strided_slice %249 {offsets = [0, 256], sizes = [8, 128], strides = [1, 1]} : vector<8x384xf32> to vector<8x128xf32>
    %268 = vector.extract_strided_slice %250 {offsets = [0, 256], sizes = [8, 128], strides = [1, 1]} : vector<8x384xf32> to vector<8x128xf32>
    %269 = arith.addf %268, %8 : vector<8x128xf32>
    %270 = arith.mulf %258, %269 : vector<8x128xf32>
    %271 = arith.addf %267, %270 : vector<8x128xf32>
    %272 = math.tanh %271 : vector<8x128xf32>
    %cst_85 = arith.constant 1.000000e+00 : f32
    %273 = vector.broadcast %cst_85 : f32 to vector<8x128xf32>
    %274 = arith.subf %273, %266 : vector<8x128xf32>
    %275 = arith.mulf %274, %272 : vector<8x128xf32>
    %276 = arith.mulf %266, %244 : vector<8x128xf32>
    %277 = arith.addf %275, %276 : vector<8x128xf32>
    %c7_86 = arith.constant 7 : index
    %c0_87 = arith.constant 0 : index
    %c0_88 = arith.constant 0 : index
    %278 = vector.load %arg7[%c7_86, %c0_87, %c0_88] : memref<8x8x128xf32, #tpu.memory_space<vmem>>, vector<1x8x128xf32>
    %279 = vector.shape_cast %278 : vector<1x8x128xf32> to vector<8x128xf32>
    %280 = vector.shape_cast %277 : vector<8x128xf32> to vector<1x8x128xf32>
    tpu.vector_store %arg7[%c7_86, %c0_87, %c0_88], %280 {strides = array<i32>} : memref<8x8x128xf32, #tpu.memory_space<vmem>>, vector<1x8x128xf32>,
    %c0_89 = arith.constant 0 : index
    %c0_90 = arith.constant 0 : index
    %281 = vector.load %arg10[%c0_89, %c0_90] : memref<8x128xf32, #tpu.memory_space<vmem>>, vector<8x128xf32>
    tpu.vector_store %arg10[%c0_89, %c0_90], %277 {strides = array<i32>} : memref<8x128xf32, #tpu.memory_space<vmem>>, vector<8x128xf32>,
    %c0_i32_91 = arith.constant 0 : i32
    %282 = arith.cmpi eq, %arg0, %c0_i32_91 : i32
    %283 = arith.extui %282 : i1 to i32
    %c0_i32_92 = arith.constant 0 : i32
    %284 = arith.cmpi ne, %283, %c0_i32_92 : i32
    scf.if %284 {
      %c0_93 = arith.constant 0 : index
      %c0_94 = arith.constant 0 : index
      %285 = vector.load %arg10[%c0_93, %c0_94] : memref<8x128xf32, #tpu.memory_space<vmem>>, vector<8x128xf32>
      %c0_95 = arith.constant 0 : index
      %c0_96 = arith.constant 0 : index
      %286 = vector.load %arg8[%c0_95, %c0_96] : memref<8x128xf32, #tpu.memory_space<vmem>>, vector<8x128xf32>
      tpu.vector_store %arg8[%c0_95, %c0_96], %285 {strides = array<i32>} : memref<8x128xf32, #tpu.memory_space<vmem>>, vector<8x128xf32>,
    } else {
    }
    return
  }
  func.func @transform_0(%arg0: i32) -> (i32, i32) {
    %c0_i32 = arith.constant 0 : i32
    %c0_i32_0 = arith.constant 0 : i32
    %c0_i32_1 = arith.constant 0 : i32
    return %c0_i32, %c0_i32_0 : i32, i32
  }
  func.func @transform_1(%arg0: i32) -> (i32, i32, i32) {
    %c0_i32 = arith.constant 0 : i32
    %c0_i32_0 = arith.constant 0 : i32
    %c0_i32_1 = arith.constant 0 : i32
    return %arg0, %c0_i32, %c0_i32_0 : i32, i32, i32
  }
  func.func @transform_2(%arg0: i32) -> (i32, i32) {
    %c0_i32 = arith.constant 0 : i32
    %c0_i32_0 = arith.constant 0 : i32
    %c0_i32_1 = arith.constant 0 : i32
    return %c0_i32, %c0_i32_0 : i32, i32
  }
  func.func @transform_3(%arg0: i32) -> (i32, i32) {
    %c0_i32 = arith.constant 0 : i32
    %c0_i32_0 = arith.constant 0 : i32
    %c0_i32_1 = arith.constant 0 : i32
    return %c0_i32, %c0_i32_0 : i32, i32
  }
  func.func @transform_4(%arg0: i32) -> (i32, i32) {
    %c0_i32 = arith.constant 0 : i32
    %c0_i32_0 = arith.constant 0 : i32
    %c0_i32_1 = arith.constant 0 : i32
    return %c0_i32, %c0_i32_0 : i32, i32
  }
  func.func @transform_5(%arg0: i32) -> (i32, i32) {
    %c0_i32 = arith.constant 0 : i32
    %c0_i32_0 = arith.constant 0 : i32
    %c0_i32_1 = arith.constant 0 : i32
    return %c0_i32, %c0_i32_0 : i32, i32
  }
  func.func @transform_6(%arg0: i32) -> (i32, i32, i32) {
    %c0_i32 = arith.constant 0 : i32
    %c0_i32_0 = arith.constant 0 : i32
    %c0_i32_1 = arith.constant 0 : i32
    return %arg0, %c0_i32, %c0_i32_0 : i32, i32, i32
  }
  func.func @transform_7(%arg0: i32) -> (i32, i32) {
    %c0_i32 = arith.constant 0 : i32
    %c0_i32_0 = arith.constant 0 : i32
    %c0_i32_1 = arith.constant 0 : i32
    return %c0_i32, %c0_i32_0 : i32, i32
  }
}

</mosaic_0001>

<llo_original>
// kernel: tpu_custom_call.1
$region0: #{tpu_custom_call.1}
  #allocation0 [shape = 'u32[]', space=smem, size = 0x4, offset = 0x4, fixed_abs, tag = 'smem constant byte address 0x4 - core index']
  #allocation1 [shape = 'u32[144,128]{1,0:T(1,128)}', space=vmem, size = 0x12000, scoped, tag = 'internal scratch']
  #allocation2 [shape = 'f32[16,8,384]{2,1,0:T(8,128)}', space=vmem, size = 0x30000, scoped, tag = 'scratch operand']
  #allocation3 [shape = 'f32[8,128]{1,0:T(8,128)}', space=vmem, size = 0x1000, scoped, tag = 'scratch operand']
  %s0 = inlined_call_operand.hbm [shape: f32[8,128], index: 0, kind: input, shape index: {}]
  %s1 = inlined_call_operand.hbm [shape: f32[8,8,128], index: 1, kind: input, shape index: {}]
  %s2 = inlined_call_operand.hbm [shape: f32[128,384], index: 2, kind: input, shape index: {}]
  %s3 = inlined_call_operand.hbm [shape: f32[128,384], index: 3, kind: input, shape index: {}]
  %s4 = inlined_call_operand.vmem [shape: f32[1,384], index: 4, kind: input, shape index: {}]
  %s5 = inlined_call_operand.vmem [shape: f32[1,128], index: 5, kind: input, shape index: {}]
  %s6 = inlined_call_operand.hbm [shape: f32[8,8,128], index: 6, kind: output, shape index: {0}]
  %s7 = inlined_call_operand.hbm [shape: f32[8,128], index: 7, kind: output, shape index: {1}]
  %8 = xla_tuple %s6, %s7
  %s9 = sld [smem:[#allocation0]]
  $region66: #{tpu_custom_call.1} parent=0
    _
  %s11 = ssub.s32 1, %s9
  %s12 = scalar_select 0, %s11, %s9
  $region1: #{tpu_custom_call.1} parent=0
    #allocation4 [shape = 'u8[4096]{0}', space=vmem, size = 0x1000, scoped, tag = 'input window, operand 0, single buffered']
    #allocation5 [shape = 's32[1]{0}', space=sflag, size = 0x4, scoped, tag = 'scoped memory for tpu_custom_call.1']
    #allocation6 [shape = 's32[1]{0}', space=sflag, size = 0x4, scoped, tag = 'scoped memory for tpu_custom_call.1']
    #allocation7 [shape = 'u8[32768]{0}', space=vmem, size = 0x8000, scoped, tag = 'input window, operand 1, single buffered']
    #allocation8 [shape = 's32[1]{0}', space=sflag, size = 0x4, scoped, tag = 'scoped memory for tpu_custom_call.1']
    #allocation9 [shape = 'u8[196608]{0}', space=vmem, size = 0x30000, scoped, tag = 'input window, operand 2, single buffered']
    #allocation10 [shape = 'u8[196608]{0}', space=vmem, size = 0x30000, scoped, tag = 'input window, operand 3, single buffered']
    #allocation11 [shape = 's32[1]{0}', space=sflag, size = 0x4, scoped, tag = 'scoped memory for tpu_custom_call.1']
    #allocation12 [shape = 'u8[32768]{0}', space=vmem, size = 0x8000, scoped, tag = 'output window, operand 0, single buffered']
    #allocation13 [shape = 'u8[4096]{0}', space=vmem, size = 0x1000, scoped, tag = 'output window, operand 1, single buffered']
    #allocation14 [shape = 's32[1]{0}', space=sflag, size = 0x4, scoped, tag = 'scoped memory for tpu_custom_call.1']
    %13 = vsyncpa [#allocation5], 0
    %14 = vsyncpa [#allocation8], 0
    %15 = vsyncpa [#allocation11], 0
    %16 = vsyncpa [#allocation6], 0
    %17 = vsyncpa [#allocation14], 0
    // Predicated region
    $region2: #{tpu_custom_call.1} parent=1 // pred_check
      _
    $region3: #{tpu_custom_call.1} parent=1 // pred_check_branch
      %19 = sbr.rel (0) target = $region5
    $region4: #{tpu_custom_call.1} parent=1 // pred_region
      %s21 = ssub.s32 128, 128
      %22 = vsyncadd [#allocation5], %s21
      %s24 = sshll.u32 [#allocation4], 4
      %s25 = int_to_ptr.vmem [resolvable:$true] %s24
      %27 = dma.hbm_to_vmem [thread:$0]  %s0, 128, %s25, [#allocation5]
    $region5: #{tpu_custom_call.1} parent=1 // pred_fallthru
      _
    // Predicated region
    $region6: #{tpu_custom_call.1} parent=1 // pred_check
      _
    $region7: #{tpu_custom_call.1} parent=1 // pred_check_branch
      %29 = sbr.rel (0) target = $region9
    $region8: #{tpu_custom_call.1} parent=1 // pred_region
      %s31 = ssub.s32 1024, 1024
      %32 = vsyncadd [#allocation8], %s31
      %s33 = sshll.u32 [#allocation7], 4
      %s34 = int_to_ptr.vmem [resolvable:$true] %s33
      %39 = dma.hbm_to_vmem [thread:$0]  %s1, 1024, %s34, [#allocation8], 128, 128, 8
    $region9: #{tpu_custom_call.1} parent=1 // pred_fallthru
      _
    // Predicated region
    $region10: #{tpu_custom_call.1} parent=1 // pred_check
      _
    $region11: #{tpu_custom_call.1} parent=1 // pred_check_branch
      %41 = sbr.rel (0) target = $region13
    $region12: #{tpu_custom_call.1} parent=1 // pred_region
      %s43 = ssub.s32 6144, 6144
      %44 = vsyncadd [#allocation8], %s43
      %s45 = sshll.u32 [#allocation9], 4
      %s46 = int_to_ptr.vmem [resolvable:$true] %s45
      %51 = dma.hbm_to_vmem [thread:$0]  %s2, 6144, %s46, [#allocation8], 384, 384, 24
    $region13: #{tpu_custom_call.1} parent=1 // pred_fallthru
      _
    // Predicated region
    $region14: #{tpu_custom_call.1} parent=1 // pred_check
      _
    $region15: #{tpu_custom_call.1} parent=1 // pred_check_branch
      %53 = sbr.rel (0) target = $region17
    $region16: #{tpu_custom_call.1} parent=1 // pred_region
      %s55 = ssub.s32 6144, 6144
      %56 = vsyncadd [#allocation11], %s55
      %s57 = sshll.u32 [#allocation10], 4
      %s58 = int_to_ptr.vmem [resolvable:$true] %s57
      %63 = dma.hbm_to_vmem [thread:$0]  %s3, 6144, %s58, [#allocation11], 384, 384, 24
    $region17: #{tpu_custom_call.1} parent=1 // pred_fallthru
      _
    // Predicated region
    $region18: #{tpu_custom_call.1} parent=1 // pred_check
      _
    $region19: #{tpu_custom_call.1} parent=1 // pred_check_branch
      %65 = sbr.rel (0) target = $region21
    $region20: #{tpu_custom_call.1} parent=1 // pred_region
      _
    $region21: #{tpu_custom_call.1} parent=1 // pred_fallthru
      _
    // Predicated region
    $region22: #{tpu_custom_call.1} parent=1 // pred_check
      _
    $region23: #{tpu_custom_call.1} parent=1 // pred_check_branch
      %67 = sbr.rel (0) target = $region25
    $region24: #{tpu_custom_call.1} parent=1 // pred_region
      _
    $region25: #{tpu_custom_call.1} parent=1 // pred_fallthru
      _
    // Predicated region
    $region26: #{tpu_custom_call.1} parent=1 // pred_check
      _
    $region27: #{tpu_custom_call.1} parent=1 // pred_check_branch
      %69 = sbr.rel (0) target = $region29
    $region28: #{tpu_custom_call.1} parent=1 // pred_region
      %70 = dma.done [#allocation5], 128
    $region29: #{tpu_custom_call.1} parent=1 // pred_fallthru
      _
    // Predicated region
    $region30: #{tpu_custom_call.1} parent=1 // pred_check
      _
    $region31: #{tpu_custom_call.1} parent=1 // pred_check_branch
      %72 = sbr.rel (0) target = $region33
    $region32: #{tpu_custom_call.1} parent=1 // pred_region
      %73 = dma.done [#allocation8], 1024
    $region33: #{tpu_custom_call.1} parent=1 // pred_fallthru
      _
    // Predicated region
    $region34: #{tpu_custom_call.1} parent=1 // pred_check
      _
    $region35: #{tpu_custom_call.1} parent=1 // pred_check_branch
      %75 = sbr.rel (0) target = $region37
    $region36: #{tpu_custom_call.1} parent=1 // pred_region
      %76 = dma.done [#allocation8], 6144
    $region37: #{tpu_custom_call.1} parent=1 // pred_fallthru
      _
    // Predicated region
    $region38: #{tpu_custom_call.1} parent=1 // pred_check
      _
    $region39: #{tpu_custom_call.1} parent=1 // pred_check_branch
      %78 = sbr.rel (0) target = $region41
    $region40: #{tpu_custom_call.1} parent=1 // pred_region
      %79 = dma.done [#allocation11], 6144
    $region41: #{tpu_custom_call.1} parent=1 // pred_fallthru
      _
    %p80 = scmp.eq.s32.totalorder 0, 0
    // Predicated region
    $region42: #{tpu_custom_call.1} parent=1 // pred_check
      %p81 = pneg %p80
    $region43: #{tpu_custom_call.1} parent=1 // pred_check_branch
      %83 = sbr.rel (%p81) target = $region45
    $region44: #{tpu_custom_call.1} parent=1 // pred_region
      %v84 = vld [vmem:[#allocation4] sm:$0xff]
      %85 = vst [vmem:[#allocation3] sm:$0xff] %v84
    $region45: #{tpu_custom_call.1} parent=1 // pred_fallthru
      _
    %v86 = vld [vmem:[#allocation9] sm:$0xff]
    %v87 = vld [vmem:[#allocation9 + $0x8] sm:$0xff]
    %v88 = vld [vmem:[#allocation9 + $0x10] sm:$0xff]
    %v89 = vld [vmem:[#allocation9 + $0x18] sm:$0xff]
    %v90 = vld [vmem:[#allocation9 + $0x20] sm:$0xff]
    %v91 = vld [vmem:[#allocation9 + $0x28] sm:$0xff]
    %v92 = vld [vmem:[#allocation9 + $0x30] sm:$0xff]
    %v93 = vld [vmem:[#allocation9 + $0x38] sm:$0xff]
    %v94 = vld [vmem:[#allocation9 + $0x40] sm:$0xff]
    %v95 = vld [vmem:[#allocation9 + $0x48] sm:$0xff]
    %v96 = vld [vmem:[#allocation9 + $0x50] sm:$0xff]
    %v97 = vld [vmem:[#allocation9 + $0x58] sm:$0xff]
    %v98 = vld [vmem:[#allocation9 + $0x60] sm:$0xff]
    %v99 = vld [vmem:[#allocation9 + $0x68] sm:$0xff]
    %v100 = vld [vmem:[#allocation9 + $0x70] sm:$0xff]
    %v101 = vld [vmem:[#allocation9 + $0x78] sm:$0xff]
    %v102 = vld [vmem:[#allocation9 + $0x80] sm:$0xff]
    %v103 = vld [vmem:[#allocation9 + $0x88] sm:$0xff]
    %v104 = vld [vmem:[#allocation9 + $0x90] sm:$0xff]
    %v105 = vld [vmem:[#allocation9 + $0x98] sm:$0xff]
    %v106 = vld [vmem:[#allocation9 + $0xa0] sm:$0xff]
    %v107 = vld [vmem:[#allocation9 + $0xa8] sm:$0xff]
    %v108 = vld [vmem:[#allocation9 + $0xb0] sm:$0xff]
    %v109 = vld [vmem:[#allocation9 + $0xb8] sm:$0xff]
    %v110 = vld [vmem:[#allocation9 + $0xc0] sm:$0xff]
    %v111 = vld [vmem:[#allocation9 + $0xc8] sm:$0xff]
    %v112 = vld [vmem:[#allocation9 + $0xd0] sm:$0xff]
    %v113 = vld [vmem:[#allocation9 + $0xd8] sm:$0xff]
    %v114 = vld [vmem:[#allocation9 + $0xe0] sm:$0xff]
    %v115 = vld [vmem:[#allocation9 + $0xe8] sm:$0xff]
    %v116 = vld [vmem:[#allocation9 + $0xf0] sm:$0xff]
    %v117 = vld [vmem:[#allocation9 + $0xf8] sm:$0xff]
    %v118 = vld [vmem:[#allocation9 + $0x100] sm:$0xff]
    %v119 = vld [vmem:[#allocation9 + $0x108] sm:$0xff]
    %v120 = vld [vmem:[#allocation9 + $0x110] sm:$0xff]
    %v121 = vld [vmem:[#allocation9 + $0x118] sm:$0xff]
    %v122 = vld [vmem:[#allocation9 + $0x120] sm:$0xff]
    %v123 = vld [vmem:[#allocation9 + $0x128] sm:$0xff]
    %v124 = vld [vmem:[#allocation9 + $0x130] sm:$0xff]
    %v125 = vld [vmem:[#allocation9 + $0x138] sm:$0xff]
    %v126 = vld [vmem:[#allocation9 + $0x140] sm:$0xff]
    %v127 = vld [vmem:[#allocation9 + $0x148] sm:$0xff]
    %v128 = vld [vmem:[#allocation9 + $0x150] sm:$0xff]
    %v129 = vld [vmem:[#allocation9 + $0x158] sm:$0xff]
    %v130 = vld [vmem:[#allocation9 + $0x160] sm:$0xff]
    %v131 = vld [vmem:[#allocation9 + $0x168] sm:$0xff]
    %v132 = vld [vmem:[#allocation9 + $0x170] sm:$0xff]
    %v133 = vld [vmem:[#allocation9 + $0x178] sm:$0xff]
    %v134 = vld [vmem:[#allocation10] sm:$0xff]
    %v135 = vld [vmem:[#allocation10 + $0x8] sm:$0xff]
    %v136 = vld [vmem:[#allocation10 + $0x10] sm:$0xff]
    %v137 = vld [vmem:[#allocation10 + $0x18] sm:$0xff]
    %v138 = vld [vmem:[#allocation10 + $0x20] sm:$0xff]
    %v139 = vld [vmem:[#allocation10 + $0x28] sm:$0xff]
    %v140 = vld [vmem:[#allocation10 + $0x30] sm:$0xff]
    %v141 = vld [vmem:[#allocation10 + $0x38] sm:$0xff]
    %v142 = vld [vmem:[#allocation10 + $0x40] sm:$0xff]
    %v143 = vld [vmem:[#allocation10 + $0x48] sm:$0xff]
    %v144 = vld [vmem:[#allocation10 + $0x50] sm:$0xff]
    %v145 = vld [vmem:[#allocation10 + $0x58] sm:$0xff]
    %v146 = vld [vmem:[#allocation10 + $0x60] sm:$0xff]
    %v147 = vld [vmem:[#allocation10 + $0x68] sm:$0xff]
    %v148 = vld [vmem:[#allocation10 + $0x70] sm:$0xff]
    %v149 = vld [vmem:[#allocation10 + $0x78] sm:$0xff]
    %v150 = vld [vmem:[#allocation10 + $0x80] sm:$0xff]
    %v151 = vld [vmem:[#allocation10 + $0x88] sm:$0xff]
    %v152 = vld [vmem:[#allocation10 + $0x90] sm:$0xff]
    %v153 = vld [vmem:[#allocation10 + $0x98] sm:$0xff]
    %v154 = vld [vmem:[#allocation10 + $0xa0] sm:$0xff]
    %v155 = vld [vmem:[#allocation10 + $0xa8] sm:$0xff]
    %v156 = vld [vmem:[#allocation10 + $0xb0] sm:$0xff]
    %v157 = vld [vmem:[#allocation10 + $0xb8] sm:$0xff]
    %v158 = vld [vmem:[#allocation10 + $0xc0] sm:$0xff]
    %v159 = vld [vmem:[#allocation10 + $0xc8] sm:$0xff]
    %v160 = vld [vmem:[#allocation10 + $0xd0] sm:$0xff]
    %v161 = vld [vmem:[#allocation10 + $0xd8] sm:$0xff]
    %v162 = vld [vmem:[#allocation10 + $0xe0] sm:$0xff]
    %v163 = vld [vmem:[#allocation10 + $0xe8] sm:$0xff]
    %v164 = vld [vmem:[#allocation10 + $0xf0] sm:$0xff]
    %v165 = vld [vmem:[#allocation10 + $0xf8] sm:$0xff]
    %v166 = vld [vmem:[#allocation10 + $0x100] sm:$0xff]
    %v167 = vld [vmem:[#allocation10 + $0x108] sm:$0xff]
    %v168 = vld [vmem:[#allocation10 + $0x110] sm:$0xff]
    %v169 = vld [vmem:[#allocation10 + $0x118] sm:$0xff]
    %v170 = vld [vmem:[#allocation10 + $0x120] sm:$0xff]
    %v171 = vld [vmem:[#allocation10 + $0x128] sm:$0xff]
    %v172 = vld [vmem:[#allocation10 + $0x130] sm:$0xff]
    %v173 = vld [vmem:[#allocation10 + $0x138] sm:$0xff]
    %v174 = vld [vmem:[#allocation10 + $0x140] sm:$0xff]
    %v175 = vld [vmem:[#allocation10 + $0x148] sm:$0xff]
    %v176 = vld [vmem:[#allocation10 + $0x150] sm:$0xff]
    %v177 = vld [vmem:[#allocation10 + $0x158] sm:$0xff]
    %v178 = vld [vmem:[#allocation10 + $0x160] sm:$0xff]
    %v179 = vld [vmem:[#allocation10 + $0x168] sm:$0xff]
    %v180 = vld [vmem:[#allocation10 + $0x170] sm:$0xff]
    %v181 = vld [vmem:[#allocation10 + $0x178] sm:$0xff]
    %v182 = vld [vmem:[%s4] sm:$0x7]
    %v183 = vld [vmem:[%s5] sm:$0x1]
    %v185 = vlaneseq
    %v186 = vshrl.u32 %v185, 7
    %v187 = vsub.s32 0, %v186
    %v188 = vrot.slane %v183, %v187
    %v190 = vld [vmem:[#allocation7] sm:$0xff]
    %v191 = vld [vmem:[#allocation7 + $0x8] sm:$0xff]
    %v192 = vld [vmem:[#allocation7 + $0x10] sm:$0xff]
    %v193 = vld [vmem:[#allocation7 + $0x18] sm:$0xff]
    %v194 = vld [vmem:[#allocation7 + $0x20] sm:$0xff]
    %v195 = vld [vmem:[#allocation7 + $0x28] sm:$0xff]
    %v196 = vld [vmem:[#allocation7 + $0x30] sm:$0xff]
    %v197 = vld [vmem:[#allocation7 + $0x38] sm:$0xff]
    %v199 = vlaneseq
    %v200 = vshrl.u32 %v199, 7
    %v201 = vsub.s32 0, %v200
    %v202 = vrot.slane %v182, %v201
    %v203 = vlaneseq
    %v204 = vshrl.u32 %v203, 7
    %v205 = vsub.s32 1, %v204
    %v206 = vrot.slane %v182, %v205
    %v207 = vlaneseq
    %v208 = vshrl.u32 %v207, 7
    %v209 = vsub.s32 2, %v208
    %v210 = vrot.slane %v182, %v209
    %214 = vmatprep.subr.mxu0 %v132
    %215 = vmatpush1.msra.mxu0 %v131
    %216 = vmatprep.subr.mxu0 %v129
    %217 = vmatpush1.msra.mxu0 %v128
    %218 = vmatprep.subr.mxu0 %v126
    %219 = vmatpush1.msra.mxu0 %v125
    %220 = vmatprep.subr.mxu0 %v123
    %221 = vmatpush1.msra.mxu0 %v122
    %222 = vmatprep.subr.mxu0 %v120
    %223 = vmatpush1.msra.mxu0 %v119
    %224 = vmatprep.subr.mxu0 %v117
    %225 = vmatpush1.msra.mxu0 %v116
    %226 = vmatprep.subr.mxu0 %v114
    %227 = vmatpush1.msra.mxu0 %v113
    %228 = vmatprep.subr.mxu0 %v111
    %229 = vmatpush1.msra.mxu0 %v110
    %230 = vmatprep.subr.mxu0 %v108
    %231 = vmatpush1.msra.mxu0 %v107
    %232 = vmatprep.subr.mxu0 %v105
    %233 = vmatpush1.msra.mxu0 %v104
    %234 = vmatprep.subr.mxu0 %v102
    %235 = vmatpush1.msra.mxu0 %v101
    %236 = vmatprep.subr.mxu0 %v99
    %237 = vmatpush1.msra.mxu0 %v98
    %238 = vmatprep.subr.mxu0 %v96
    %239 = vmatpush1.msra.mxu0 %v95
    %240 = vmatprep.subr.mxu0 %v93
    %241 = vmatpush1.msra.mxu0 %v92
    %242 = vmatprep.subr.mxu0 %v90
    %243 = vmatpush1.msra.mxu0 %v89
    %244 = vmatprep.subr.mxu0 %v87
    %245 = vmatpush1.msra.mxu0 %v86
    %246 = vmatprep.subr.mxu0 0.0
    %247 = vmatpush2.msra.mxu0 0.0
    %248 = vmatprep.subr.mxu0 0.0
    %249 = vmatpush2.msra.mxu0 0.0
    %250 = vmatprep.subr.mxu0 0.0
    %251 = vmatpush2.msra.mxu0 0.0
    %252 = vmatprep.subr.mxu0 0.0
    %253 = vmatpush2.msra.mxu0 0.0
    %254 = vmatprep.subr.mxu0 0.0
    %255 = vmatpush2.msra.mxu0 0.0
    %256 = vmatprep.subr.mxu0 0.0
    %257 = vmatpush2.msra.mxu0 0.0
    %258 = vmatprep.subr.mxu0 0.0
    %259 = vmatpush2.msra.mxu0 0.0
    %260 = vmatprep.subr.mxu0 0.0
    %261 = vmatpush2.msra.mxu0 0.0
    %262 = vmatprep.subr.mxu0 0.0
    %263 = vmatpush2.msra.mxu0 0.0
    %264 = vmatprep.subr.mxu0 0.0
    %265 = vmatpush2.msra.mxu0 0.0
    %266 = vmatprep.subr.mxu0 0.0
    %267 = vmatpush2.msra.mxu0 0.0
    %268 = vmatprep.subr.mxu0 0.0
    %269 = vmatpush2.msra.mxu0 0.0
    %270 = vmatprep.subr.mxu0 0.0
    %271 = vmatpush2.msra.mxu0 0.0
    %272 = vmatprep.subr.mxu0 0.0
    %273 = vmatpush2.msra.mxu0 0.0
    %274 = vmatprep.subr.mxu0 0.0
    %275 = vmatpush2.msra.mxu0 0.0
    %276 = vmatprep.subr.mxu0 0.0
    %277 = vmatpush2.msra.mxu0 0.0
    %278 = vmatprep.mubr.f32.mxu0 0.0
    %279 = vmatmul.mubr.f32.gmra.mxu0 %v190
    %v280 = vpop.f32.mrf.mxu0
    %v281 = vadd.f32 %v202, %v280
    %v282 = vpop.f32.mrf.mxu0
    %v283 = vadd.f32 %v206, %v282
    %284 = vmatprep.mubr.f32.mxu0 0.0
    %285 = vmatmul.mubr.f32.gmra.mxu0 %v191
    %v286 = vpop.f32.mrf.mxu0
    %v287 = vadd.f32 %v202, %v286
    %v288 = vpop.f32.mrf.mxu0
    %v289 = vadd.f32 %v206, %v288
    %290 = vmatprep.mubr.f32.mxu0 0.0
    %291 = vmatmul.mubr.f32.gmra.mxu0 %v192
    %v292 = vpop.f32.mrf.mxu0
    %v293 = vadd.f32 %v202, %v292
    %v294 = vpop.f32.mrf.mxu0
    %v295 = vadd.f32 %v206, %v294
    %296 = vmatprep.mubr.f32.mxu0 0.0
    %297 = vmatmul.mubr.f32.gmra.mxu0 %v193
    %v298 = vpop.f32.mrf.mxu0
    %v299 = vadd.f32 %v202, %v298
    %v300 = vpop.f32.mrf.mxu0
    %v301 = vadd.f32 %v206, %v300
    %302 = vmatprep.mubr.f32.mxu0 0.0
    %303 = vmatmul.mubr.f32.gmra.mxu0 %v194
    %v304 = vpop.f32.mrf.mxu0
    %v305 = vadd.f32 %v202, %v304
    %v306 = vpop.f32.mrf.mxu0
    %v307 = vadd.f32 %v206, %v306
    %308 = vmatprep.mubr.f32.mxu0 0.0
    %309 = vmatmul.mubr.f32.gmra.mxu0 %v195
    %v310 = vpop.f32.mrf.mxu0
    %v311 = vadd.f32 %v202, %v310
    %v312 = vpop.f32.mrf.mxu0
    %v313 = vadd.f32 %v206, %v312
    %314 = vmatprep.mubr.f32.mxu0 0.0
    %315 = vmatmul.mubr.f32.gmra.mxu0 %v196
    %v316 = vpop.f32.mrf.mxu0
    %v317 = vadd.f32 %v202, %v316
    %v318 = vpop.f32.mrf.mxu0
    %v319 = vadd.f32 %v206, %v318
    %320 = vmatprep.mubr.f32.mxu0 0.0
    %321 = vmatmul.mubr.f32.gmra.mxu0 %v197
    %v322 = vpop.f32.mrf.mxu0
    %v323 = vadd.f32 %v202, %v322
    %v324 = vpop.f32.mrf.mxu0
    %v325 = vadd.f32 %v206, %v324
    %326 = vdwg.mxu0
    %327 = vmatprep.subr.mxu0 0.0
    %328 = vmatpush1.msra.mxu0 %v133
    %329 = vmatprep.subr.mxu0 0.0
    %330 = vmatpush1.msra.mxu0 %v130
    %331 = vmatprep.subr.mxu0 0.0
    %332 = vmatpush1.msra.mxu0 %v127
    %333 = vmatprep.subr.mxu0 0.0
    %334 = vmatpush1.msra.mxu0 %v124
    %335 = vmatprep.subr.mxu0 0.0
    %336 = vmatpush1.msra.mxu0 %v121
    %337 = vmatprep.subr.mxu0 0.0
    %338 = vmatpush1.msra.mxu0 %v118
    %339 = vmatprep.subr.mxu0 0.0
    %340 = vmatpush1.msra.mxu0 %v115
    %341 = vmatprep.subr.mxu0 0.0
    %342 = vmatpush1.msra.mxu0 %v112
    %343 = vmatprep.subr.mxu0 0.0
    %344 = vmatpush1.msra.mxu0 %v109
    %345 = vmatprep.subr.mxu0 0.0
    %346 = vmatpush1.msra.mxu0 %v106
    %347 = vmatprep.subr.mxu0 0.0
    %348 = vmatpush1.msra.mxu0 %v103
    %349 = vmatprep.subr.mxu0 0.0
    %350 = vmatpush1.msra.mxu0 %v100
    %351 = vmatprep.subr.mxu0 0.0
    %352 = vmatpush1.msra.mxu0 %v97
    %353 = vmatprep.subr.mxu0 0.0
    %354 = vmatpush1.msra.mxu0 %v94
    %355 = vmatprep.subr.mxu0 0.0
    %356 = vmatpush1.msra.mxu0 %v91
    %357 = vmatprep.subr.mxu0 0.0
    %358 = vmatpush1.msra.mxu0 %v88
    %359 = vmatprep.subr.mxu0 0.0
    %360 = vmatpush2.msra.mxu0 0.0
    %361 = vmatprep.subr.mxu0 0.0
    %362 = vmatpush2.msra.mxu0 0.0
    %363 = vmatprep.subr.mxu0 0.0
    %364 = vmatpush2.msra.mxu0 0.0
    %365 = vmatprep.subr.mxu0 0.0
    %366 = vmatpush2.msra.mxu0 0.0
    %367 = vmatprep.subr.mxu0 0.0
    %368 = vmatpush2.msra.mxu0 0.0
    %369 = vmatprep.subr.mxu0 0.0
    %370 = vmatpush2.msra.mxu0 0.0
    %371 = vmatprep.subr.mxu0 0.0
    %372 = vmatpush2.msra.mxu0 0.0
    %373 = vmatprep.subr.mxu0 0.0
    %374 = vmatpush2.msra.mxu0 0.0
    %375 = vmatprep.subr.mxu0 0.0
    %376 = vmatpush2.msra.mxu0 0.0
    %377 = vmatprep.subr.mxu0 0.0
    %378 = vmatpush2.msra.mxu0 0.0
    %379 = vmatprep.subr.mxu0 0.0
    %380 = vmatpush2.msra.mxu0 0.0
    %381 = vmatprep.subr.mxu0 0.0
    %382 = vmatpush2.msra.mxu0 0.0
    %383 = vmatprep.subr.mxu0 0.0
    %384 = vmatpush2.msra.mxu0 0.0
    %385 = vmatprep.subr.mxu0 0.0
    %386 = vmatpush2.msra.mxu0 0.0
    %387 = vmatprep.subr.mxu0 0.0
    %388 = vmatpush2.msra.mxu0 0.0
    %389 = vmatprep.subr.mxu0 0.0
    %390 = vmatpush2.msra.mxu0 0.0
    %391 = vmatprep.mubr.f32.mxu0 0.0
    %392 = vmatmul.mubr.f32.gmra.mxu0 %v190
    %v393 = vpop.f32.mrf.mxu0
    %v394 = vadd.f32 %v210, %v393
    %v395 = vpop.f32.mrf.mxu0
    %396 = vmatprep.mubr.f32.mxu0 0.0
    %397 = vmatmul.mubr.f32.gmra.mxu0 %v191
    %v398 = vpop.f32.mrf.mxu0
    %v399 = vadd.f32 %v210, %v398
    %v400 = vpop.f32.mrf.mxu0
    %401 = vmatprep.mubr.f32.mxu0 0.0
    %402 = vmatmul.mubr.f32.gmra.mxu0 %v192
    %v403 = vpop.f32.mrf.mxu0
    %v404 = vadd.f32 %v210, %v403
    %v405 = vpop.f32.mrf.mxu0
    %406 = vmatprep.mubr.f32.mxu0 0.0
    %407 = vmatmul.mubr.f32.gmra.mxu0 %v193
    %v408 = vpop.f32.mrf.mxu0
    %v409 = vadd.f32 %v210, %v408
    %v410 = vpop.f32.mrf.mxu0
    %411 = vmatprep.mubr.f32.mxu0 0.0
    %412 = vmatmul.mubr.f32.gmra.mxu0 %v194
    %v413 = vpop.f32.mrf.mxu0
    %v414 = vadd.f32 %v210, %v413
    %v415 = vpop.f32.mrf.mxu0
    %416 = vmatprep.mubr.f32.mxu0 0.0
    %417 = vmatmul.mubr.f32.gmra.mxu0 %v195
    %v418 = vpop.f32.mrf.mxu0
    %v419 = vadd.f32 %v210, %v418
    %v420 = vpop.f32.mrf.mxu0
    %421 = vmatprep.mubr.f32.mxu0 0.0
    %422 = vmatmul.mubr.f32.gmra.mxu0 %v196
    %v423 = vpop.f32.mrf.mxu0
    %v424 = vadd.f32 %v210, %v423
    %v425 = vpop.f32.mrf.mxu0
    %426 = vmatprep.mubr.f32.mxu0 0.0
    %427 = vmatmul.mubr.f32.gmra.mxu0 %v197
    %v428 = vpop.f32.mrf.mxu0
    %v429 = vadd.f32 %v210, %v428
    %v430 = vpop.f32.mrf.mxu0
    %431 = vdwg.mxu0
    %432 = vst [vmem:[#allocation2] sm:$0xff] %v281
    %433 = vst [vmem:[#allocation2 + $0x8] sm:$0xff] %v283
    %434 = vst [vmem:[#allocation2 + $0x10] sm:$0xff] %v394
    %435 = vst [vmem:[#allocation2 + $0x18] sm:$0xff] %v287
    %436 = vst [vmem:[#allocation2 + $0x20] sm:$0xff] %v289
    %437 = vst [vmem:[#allocation2 + $0x28] sm:$0xff] %v399
    %438 = vst [vmem:[#allocation2 + $0x30] sm:$0xff] %v293
    %439 = vst [vmem:[#allocation2 + $0x38] sm:$0xff] %v295
    %440 = vst [vmem:[#allocation2 + $0x40] sm:$0xff] %v404
    %441 = vst [vmem:[#allocation2 + $0x48] sm:$0xff] %v299
    %442 = vst [vmem:[#allocation2 + $0x50] sm:$0xff] %v301
    %443 = vst [vmem:[#allocation2 + $0x58] sm:$0xff] %v409
    %444 = vst [vmem:[#allocation2 + $0x60] sm:$0xff] %v305
    %445 = vst [vmem:[#allocation2 + $0x68] sm:$0xff] %v307
    %446 = vst [vmem:[#allocation2 + $0x70] sm:$0xff] %v414
    %447 = vst [vmem:[#allocation2 + $0x78] sm:$0xff] %v311
    %448 = vst [vmem:[#allocation2 + $0x80] sm:$0xff] %v313
    %449 = vst [vmem:[#allocation2 + $0x88] sm:$0xff] %v419
    %450 = vst [vmem:[#allocation2 + $0x90] sm:$0xff] %v317
    %451 = vst [vmem:[#allocation2 + $0x98] sm:$0xff] %v319
    %452 = vst [vmem:[#allocation2 + $0xa0] sm:$0xff] %v424
    %453 = vst [vmem:[#allocation2 + $0xa8] sm:$0xff] %v323
    %454 = vst [vmem:[#allocation2 + $0xb0] sm:$0xff] %v325
    %455 = vst [vmem:[#allocation2 + $0xb8] sm:$0xff] %v429
    %v456 = vld [vmem:[#allocation3] sm:$0xff]
    %v457 = vld [vmem:[#allocation2] sm:$0xff]
    %v458 = vld [vmem:[#allocation2 + $0x8] sm:$0xff]
    %v459 = vld [vmem:[#allocation2 + $0x10] sm:$0xff]
    %460 = vmatprep.subr.mxu0 %v180
    %461 = vmatpush1.msra.mxu0 %v179
    %462 = vmatprep.subr.mxu0 %v177
    %463 = vmatpush1.msra.mxu0 %v176
    %464 = vmatprep.subr.mxu0 %v174
    %465 = vmatpush1.msra.mxu0 %v173
    %466 = vmatprep.subr.mxu0 %v171
    %467 = vmatpush1.msra.mxu0 %v170
    %468 = vmatprep.subr.mxu0 %v168
    %469 = vmatpush1.msra.mxu0 %v167
    %470 = vmatprep.subr.mxu0 %v165
    %471 = vmatpush1.msra.mxu0 %v164
    %472 = vmatprep.subr.mxu0 %v162
    %473 = vmatpush1.msra.mxu0 %v161
    %474 = vmatprep.subr.mxu0 %v159
    %475 = vmatpush1.msra.mxu0 %v158
    %476 = vmatprep.subr.mxu0 %v156
    %477 = vmatpush1.msra.mxu0 %v155
    %478 = vmatprep.subr.mxu0 %v153
    %479 = vmatpush1.msra.mxu0 %v152
    %480 = vmatprep.subr.mxu0 %v150
    %481 = vmatpush1.msra.mxu0 %v149
    %482 = vmatprep.subr.mxu0 %v147
    %483 = vmatpush1.msra.mxu0 %v146
    %484 = vmatprep.subr.mxu0 %v144
    %485 = vmatpush1.msra.mxu0 %v143
    %486 = vmatprep.subr.mxu0 %v141
    %487 = vmatpush1.msra.mxu0 %v140
    %488 = vmatprep.subr.mxu0 %v138
    %489 = vmatpush1.msra.mxu0 %v137
    %490 = vmatprep.subr.mxu0 %v135
    %491 = vmatpush1.msra.mxu0 %v134
    %492 = vmatprep.subr.mxu0 0.0
    %493 = vmatpush2.msra.mxu0 0.0
    %494 = vmatprep.subr.mxu0 0.0
    %495 = vmatpush2.msra.mxu0 0.0
    %496 = vmatprep.subr.mxu0 0.0
    %497 = vmatpush2.msra.mxu0 0.0
    %498 = vmatprep.subr.mxu0 0.0
    %499 = vmatpush2.msra.mxu0 0.0
    %500 = vmatprep.subr.mxu0 0.0
    %501 = vmatpush2.msra.mxu0 0.0
    %502 = vmatprep.subr.mxu0 0.0
    %503 = vmatpush2.msra.mxu0 0.0
    %504 = vmatprep.subr.mxu0 0.0
    %505 = vmatpush2.msra.mxu0 0.0
    %506 = vmatprep.subr.mxu0 0.0
    %507 = vmatpush2.msra.mxu0 0.0
    %508 = vmatprep.subr.mxu0 0.0
    %509 = vmatpush2.msra.mxu0 0.0
    %510 = vmatprep.subr.mxu0 0.0
    %511 = vmatpush2.msra.mxu0 0.0
    %512 = vmatprep.subr.mxu0 0.0
    %513 = vmatpush2.msra.mxu0 0.0
    %514 = vmatprep.subr.mxu0 0.0
    %515 = vmatpush2.msra.mxu0 0.0
    %516 = vmatprep.subr.mxu0 0.0
    %517 = vmatpush2.msra.mxu0 0.0
    %518 = vmatprep.subr.mxu0 0.0
    %519 = vmatpush2.msra.mxu0 0.0
    %520 = vmatprep.subr.mxu0 0.0
    %521 = vmatpush2.msra.mxu0 0.0
    %522 = vmatprep.subr.mxu0 0.0
    %523 = vmatpush2.msra.mxu0 0.0
    %524 = vmatprep.mubr.f32.mxu0 0.0
    %525 = vmatmul.mubr.f32.gmra.mxu0 %v456
    %v526 = vpop.f32.mrf.mxu0
    %v527 = vadd.f32 0.0, %v526
    %v528 = vpop.f32.mrf.mxu0
    %v529 = vadd.f32 0.0, %v528
    %530 = vdwg.mxu0
    %531 = vmatprep.subr.mxu0 0.0
    %532 = vmatpush1.msra.mxu0 %v181
    %533 = vmatprep.subr.mxu0 0.0
    %534 = vmatpush1.msra.mxu0 %v178
    %535 = vmatprep.subr.mxu0 0.0
    %536 = vmatpush1.msra.mxu0 %v175
    %537 = vmatprep.subr.mxu0 0.0
    %538 = vmatpush1.msra.mxu0 %v172
    %539 = vmatprep.subr.mxu0 0.0
    %540 = vmatpush1.msra.mxu0 %v169
    %541 = vmatprep.subr.mxu0 0.0
    %542 = vmatpush1.msra.mxu0 %v166
    %543 = vmatprep.subr.mxu0 0.0
    %544 = vmatpush1.msra.mxu0 %v163
    %545 = vmatprep.subr.mxu0 0.0
    %546 = vmatpush1.msra.mxu0 %v160
    %547 = vmatprep.subr.mxu0 0.0
    %548 = vmatpush1.msra.mxu0 %v157
    %549 = vmatprep.subr.mxu0 0.0
    %550 = vmatpush1.msra.mxu0 %v154
    %551 = vmatprep.subr.mxu0 0.0
    %552 = vmatpush1.msra.mxu0 %v151
    %553 = vmatprep.subr.mxu0 0.0
    %554 = vmatpush1.msra.mxu0 %v148
    %555 = vmatprep.subr.mxu0 0.0
    %556 = vmatpush1.msra.mxu0 %v145
    %557 = vmatprep.subr.mxu0 0.0
    %558 = vmatpush1.msra.mxu0 %v142
    %559 = vmatprep.subr.mxu0 0.0
    %560 = vmatpush1.msra.mxu0 %v139
    %561 = vmatprep.subr.mxu0 0.0
    %562 = vmatpush1.msra.mxu0 %v136
    %563 = vmatprep.subr.mxu0 0.0
    %564 = vmatpush2.msra.mxu0 0.0
    %565 = vmatprep.subr.mxu0 0.0
    %566 = vmatpush2.msra.mxu0 0.0
    %567 = vmatprep.subr.mxu0 0.0
    %568 = vmatpush2.msra.mxu0 0.0
    %569 = vmatprep.subr.mxu0 0.0
    %570 = vmatpush2.msra.mxu0 0.0
    %571 = vmatprep.subr.mxu0 0.0
    %572 = vmatpush2.msra.mxu0 0.0
    %573 = vmatprep.subr.mxu0 0.0
    %574 = vmatpush2.msra.mxu0 0.0
    %575 = vmatprep.subr.mxu0 0.0
    %576 = vmatpush2.msra.mxu0 0.0
    %577 = vmatprep.subr.mxu0 0.0
    %578 = vmatpush2.msra.mxu0 0.0
    %579 = vmatprep.subr.mxu0 0.0
    %580 = vmatpush2.msra.mxu0 0.0
    %581 = vmatprep.subr.mxu0 0.0
    %582 = vmatpush2.msra.mxu0 0.0
    %583 = vmatprep.subr.mxu0 0.0
    %584 = vmatpush2.msra.mxu0 0.0
    %585 = vmatprep.subr.mxu0 0.0
    %586 = vmatpush2.msra.mxu0 0.0
    %587 = vmatprep.subr.mxu0 0.0
    %588 = vmatpush2.msra.mxu0 0.0
    %589 = vmatprep.subr.mxu0 0.0
    %590 = vmatpush2.msra.mxu0 0.0
    %591 = vmatprep.subr.mxu0 0.0
    %592 = vmatpush2.msra.mxu0 0.0
    %593 = vmatprep.subr.mxu0 0.0
    %594 = vmatpush2.msra.mxu0 0.0
    %595 = vmatprep.mubr.f32.mxu0 0.0
    %596 = vmatmul.mubr.f32.gmra.mxu0 %v456
    %v597 = vpop.f32.mrf.mxu0
    %v598 = vadd.f32 0.0, %v597
    %v599 = vpop.f32.mrf.mxu0
    %600 = vdwg.mxu0
    %v601 = vadd.f32 %v457, %v527
    %v602 = vxor.u32 %v601, 2147483648
    %v603 = vmul.f32 %v602, 1.442695
    %v604 = vpow.pop %v603
    %v605 = vadd.f32 %v604, 1.0
    %v606 = vrcp.pop %v605
    %v607 = vmul.f32 1.0, %v606
    %v608 = vadd.f32 %v458, %v529
    %v609 = vxor.u32 %v608, 2147483648
    %v610 = vmul.f32 %v609, 1.442695
    %v611 = vpow.pop %v610
    %v612 = vadd.f32 %v611, 1.0
    %v613 = vrcp.pop %v612
    %v614 = vmul.f32 1.0, %v613
    %v615 = vadd.f32 %v598, %v188
    %v616 = vmul.f32 %v607, %v615
    %v617 = vadd.f32 %v459, %v616
    %v618 = vtanh.pop %v617
    %v619 = vsub.f32 1.0, %v614
    %v620 = vmul.f32 %v619, %v618
    %v621 = vmul.f32 %v614, %v456
    %v622 = vadd.f32 %v620, %v621
    %623 = vst [vmem:[#allocation12] sm:$0xff] %v622
    %s624 = scalar_lea.vmem [#allocation2], 24
    %v625 = vld [vmem:[%s624] sm:$0xff]
    %v626 = vld [vmem:[%s624 + $0x8] sm:$0xff]
    %v627 = vld [vmem:[%s624 + $0x10] sm:$0xff]
    %628 = vmatprep.subr.mxu0 %v180
    %629 = vmatpush1.msra.mxu0 %v179
    %630 = vmatprep.subr.mxu0 %v177
    %631 = vmatpush1.msra.mxu0 %v176
    %632 = vmatprep.subr.mxu0 %v174
    %633 = vmatpush1.msra.mxu0 %v173
    %634 = vmatprep.subr.mxu0 %v171
    %635 = vmatpush1.msra.mxu0 %v170
    %636 = vmatprep.subr.mxu0 %v168
    %637 = vmatpush1.msra.mxu0 %v167
    %638 = vmatprep.subr.mxu0 %v165
    %639 = vmatpush1.msra.mxu0 %v164
    %640 = vmatprep.subr.mxu0 %v162
    %641 = vmatpush1.msra.mxu0 %v161
    %642 = vmatprep.subr.mxu0 %v159
    %643 = vmatpush1.msra.mxu0 %v158
    %644 = vmatprep.subr.mxu0 %v156
    %645 = vmatpush1.msra.mxu0 %v155
    %646 = vmatprep.subr.mxu0 %v153
    %647 = vmatpush1.msra.mxu0 %v152
    %648 = vmatprep.subr.mxu0 %v150
    %649 = vmatpush1.msra.mxu0 %v149
    %650 = vmatprep.subr.mxu0 %v147
    %651 = vmatpush1.msra.mxu0 %v146
    %652 = vmatprep.subr.mxu0 %v144
    %653 = vmatpush1.msra.mxu0 %v143
    %654 = vmatprep.subr.mxu0 %v141
    %655 = vmatpush1.msra.mxu0 %v140
    %656 = vmatprep.subr.mxu0 %v138
    %657 = vmatpush1.msra.mxu0 %v137
    %658 = vmatprep.subr.mxu0 %v135
    %659 = vmatpush1.msra.mxu0 %v134
    %660 = vmatprep.subr.mxu0 0.0
    %661 = vmatpush2.msra.mxu0 0.0
    %662 = vmatprep.subr.mxu0 0.0
    %663 = vmatpush2.msra.mxu0 0.0
    %664 = vmatprep.subr.mxu0 0.0
    %665 = vmatpush2.msra.mxu0 0.0
    %666 = vmatprep.subr.mxu0 0.0
    %667 = vmatpush2.msra.mxu0 0.0
    %668 = vmatprep.subr.mxu0 0.0
    %669 = vmatpush2.msra.mxu0 0.0
    %670 = vmatprep.subr.mxu0 0.0
    %671 = vmatpush2.msra.mxu0 0.0
    %672 = vmatprep.subr.mxu0 0.0
    %673 = vmatpush2.msra.mxu0 0.0
    %674 = vmatprep.subr.mxu0 0.0
    %675 = vmatpush2.msra.mxu0 0.0
    %676 = vmatprep.subr.mxu0 0.0
    %677 = vmatpush2.msra.mxu0 0.0
    %678 = vmatprep.subr.mxu0 0.0
    %679 = vmatpush2.msra.mxu0 0.0
    %680 = vmatprep.subr.mxu0 0.0
    %681 = vmatpush2.msra.mxu0 0.0
    %682 = vmatprep.subr.mxu0 0.0
    %683 = vmatpush2.msra.mxu0 0.0
    %684 = vmatprep.subr.mxu0 0.0
    %685 = vmatpush2.msra.mxu0 0.0
    %686 = vmatprep.subr.mxu0 0.0
    %687 = vmatpush2.msra.mxu0 0.0
    %688 = vmatprep.subr.mxu0 0.0
    %689 = vmatpush2.msra.mxu0 0.0
    %690 = vmatprep.subr.mxu0 0.0
    %691 = vmatpush2.msra.mxu0 0.0
    %692 = vmatprep.mubr.f32.mxu0 0.0
    %693 = vmatmul.mubr.f32.gmra.mxu0 %v622
    %v694 = vpop.f32.mrf.mxu0
    %v695 = vadd.f32 0.0, %v694
    %v696 = vpop.f32.mrf.mxu0
    %v697 = vadd.f32 0.0, %v696
    %698 = vdwg.mxu0
    %699 = vmatprep.subr.mxu0 0.0
    %700 = vmatpush1.msra.mxu0 %v181
    %701 = vmatprep.subr.mxu0 0.0
    %702 = vmatpush1.msra.mxu0 %v178
    %703 = vmatprep.subr.mxu0 0.0
    %704 = vmatpush1.msra.mxu0 %v175
    %705 = vmatprep.subr.mxu0 0.0
    %706 = vmatpush1.msra.mxu0 %v172
    %707 = vmatprep.subr.mxu0 0.0
    %708 = vmatpush1.msra.mxu0 %v169
    %709 = vmatprep.subr.mxu0 0.0
    %710 = vmatpush1.msra.mxu0 %v166
    %711 = vmatprep.subr.mxu0 0.0
    %712 = vmatpush1.msra.mxu0 %v163
    %713 = vmatprep.subr.mxu0 0.0
    %714 = vmatpush1.msra.mxu0 %v160
    %715 = vmatprep.subr.mxu0 0.0
    %716 = vmatpush1.msra.mxu0 %v157
    %717 = vmatprep.subr.mxu0 0.0
    %718 = vmatpush1.msra.mxu0 %v154
    %719 = vmatprep.subr.mxu0 0.0
    %720 = vmatpush1.msra.mxu0 %v151
    %721 = vmatprep.subr.mxu0 0.0
    %722 = vmatpush1.msra.mxu0 %v148
    %723 = vmatprep.subr.mxu0 0.0
    %724 = vmatpush1.msra.mxu0 %v145
    %725 = vmatprep.subr.mxu0 0.0
    %726 = vmatpush1.msra.mxu0 %v142
    %727 = vmatprep.subr.mxu0 0.0
    %728 = vmatpush1.msra.mxu0 %v139
    %729 = vmatprep.subr.mxu0 0.0
    %730 = vmatpush1.msra.mxu0 %v136
    %731 = vmatprep.subr.mxu0 0.0
    %732 = vmatpush2.msra.mxu0 0.0
    %733 = vmatprep.subr.mxu0 0.0
    %734 = vmatpush2.msra.mxu0 0.0
    %735 = vmatprep.subr.mxu0 0.0
    %736 = vmatpush2.msra.mxu0 0.0
    %737 = vmatprep.subr.mxu0 0.0
    %738 = vmatpush2.msra.mxu0 0.0
    %739 = vmatprep.subr.mxu0 0.0
    %740 = vmatpush2.msra.mxu0 0.0
    %741 = vmatprep.subr.mxu0 0.0
    %742 = vmatpush2.msra.mxu0 0.0
    %743 = vmatprep.subr.mxu0 0.0
    %744 = vmatpush2.msra.mxu0 0.0
    %745 = vmatprep.subr.mxu0 0.0
    %746 = vmatpush2.msra.mxu0 0.0
    %747 = vmatprep.subr.mxu0 0.0
    %748 = vmatpush2.msra.mxu0 0.0
    %749 = vmatprep.subr.mxu0 0.0
    %750 = vmatpush2.msra.mxu0 0.0
    %751 = vmatprep.subr.mxu0 0.0
    %752 = vmatpush2.msra.mxu0 0.0
    %753 = vmatprep.subr.mxu0 0.0
    %754 = vmatpush2.msra.mxu0 0.0
    %755 = vmatprep.subr.mxu0 0.0
    %756 = vmatpush2.msra.mxu0 0.0
    %757 = vmatprep.subr.mxu0 0.0
    %758 = vmatpush2.msra.mxu0 0.0
    %759 = vmatprep.subr.mxu0 0.0
    %760 = vmatpush2.msra.mxu0 0.0
    %761 = vmatprep.subr.mxu0 0.0
    %762 = vmatpush2.msra.mxu0 0.0
    %763 = vmatprep.mubr.f32.mxu0 0.0
    %764 = vmatmul.mubr.f32.gmra.mxu0 %v622
    %v765 = vpop.f32.mrf.mxu0
    %v766 = vadd.f32 0.0, %v765
    %v767 = vpop.f32.mrf.mxu0
    %768 = vdwg.mxu0
    %v769 = vadd.f32 %v625, %v695
    %v770 = vxor.u32 %v769, 2147483648
    %v771 = vmul.f32 %v770, 1.442695
    %v772 = vpow.pop %v771
    %v773 = vadd.f32 %v772, 1.0
    %v774 = vrcp.pop %v773
    %v775 = vmul.f32 1.0, %v774
    %v776 = vadd.f32 %v626, %v697
    %v777 = vxor.u32 %v776, 2147483648
    %v778 = vmul.f32 %v777, 1.442695
    %v779 = vpow.pop %v778
    %v780 = vadd.f32 %v779, 1.0
    %v781 = vrcp.pop %v780
    %v782 = vmul.f32 1.0, %v781
    %v783 = vadd.f32 %v766, %v188
    %v784 = vmul.f32 %v775, %v783
    %v785 = vadd.f32 %v627, %v784
    %v786 = vtanh.pop %v785
    %v787 = vsub.f32 1.0, %v782
    %v788 = vmul.f32 %v787, %v786
    %v789 = vmul.f32 %v782, %v622
    %v790 = vadd.f32 %v788, %v789
    %s791 = scalar_lea.vmem [#allocation12], 8
    %792 = vst [vmem:[%s791] sm:$0xff] %v790
    %s793 = scalar_lea.vmem [#allocation2], 48
    %v794 = vld [vmem:[%s793] sm:$0xff]
    %v795 = vld [vmem:[%s793 + $0x8] sm:$0xff]
    %v796 = vld [vmem:[%s793 + $0x10] sm:$0xff]
    %797 = vmatprep.subr.mxu0 %v180
    %798 = vmatpush1.msra.mxu0 %v179
    %799 = vmatprep.subr.mxu0 %v177
    %800 = vmatpush1.msra.mxu0 %v176
    %801 = vmatprep.subr.mxu0 %v174
    %802 = vmatpush1.msra.mxu0 %v173
    %803 = vmatprep.subr.mxu0 %v171
    %804 = vmatpush1.msra.mxu0 %v170
    %805 = vmatprep.subr.mxu0 %v168
    %806 = vmatpush1.msra.mxu0 %v167
    %807 = vmatprep.subr.mxu0 %v165
    %808 = vmatpush1.msra.mxu0 %v164
    %809 = vmatprep.subr.mxu0 %v162
    %810 = vmatpush1.msra.mxu0 %v161
    %811 = vmatprep.subr.mxu0 %v159
    %812 = vmatpush1.msra.mxu0 %v158
    %813 = vmatprep.subr.mxu0 %v156
    %814 = vmatpush1.msra.mxu0 %v155
    %815 = vmatprep.subr.mxu0 %v153
    %816 = vmatpush1.msra.mxu0 %v152
    %817 = vmatprep.subr.mxu0 %v150
    %818 = vmatpush1.msra.mxu0 %v149
    %819 = vmatprep.subr.mxu0 %v147
    %820 = vmatpush1.msra.mxu0 %v146
    %821 = vmatprep.subr.mxu0 %v144
    %822 = vmatpush1.msra.mxu0 %v143
    %823 = vmatprep.subr.mxu0 %v141
    %824 = vmatpush1.msra.mxu0 %v140
    %825 = vmatprep.subr.mxu0 %v138
    %826 = vmatpush1.msra.mxu0 %v137
    %827 = vmatprep.subr.mxu0 %v135
    %828 = vmatpush1.msra.mxu0 %v134
    %829 = vmatprep.subr.mxu0 0.0
    %830 = vmatpush2.msra.mxu0 0.0
    %831 = vmatprep.subr.mxu0 0.0
    %832 = vmatpush2.msra.mxu0 0.0
    %833 = vmatprep.subr.mxu0 0.0
    %834 = vmatpush2.msra.mxu0 0.0
    %835 = vmatprep.subr.mxu0 0.0
    %836 = vmatpush2.msra.mxu0 0.0
    %837 = vmatprep.subr.mxu0 0.0
    %838 = vmatpush2.msra.mxu0 0.0
    %839 = vmatprep.subr.mxu0 0.0
    %840 = vmatpush2.msra.mxu0 0.0
    %841 = vmatprep.subr.mxu0 0.0
    %842 = vmatpush2.msra.mxu0 0.0
    %843 = vmatprep.subr.mxu0 0.0
    %844 = vmatpush2.msra.mxu0 0.0
    %845 = vmatprep.subr.mxu0 0.0
    %846 = vmatpush2.msra.mxu0 0.0
    %847 = vmatprep.subr.mxu0 0.0
    %848 = vmatpush2.msra.mxu0 0.0
    %849 = vmatprep.subr.mxu0 0.0
    %850 = vmatpush2.msra.mxu0 0.0
    %851 = vmatprep.subr.mxu0 0.0
    %852 = vmatpush2.msra.mxu0 0.0
    %853 = vmatprep.subr.mxu0 0.0
    %854 = vmatpush2.msra.mxu0 0.0
    %855 = vmatprep.subr.mxu0 0.0
    %856 = vmatpush2.msra.mxu0 0.0
    %857 = vmatprep.subr.mxu0 0.0
    %858 = vmatpush2.msra.mxu0 0.0
    %859 = vmatprep.subr.mxu0 0.0
    %860 = vmatpush2.msra.mxu0 0.0
    %861 = vmatprep.mubr.f32.mxu0 0.0
    %862 = vmatmul.mubr.f32.gmra.mxu0 %v790
    %v863 = vpop.f32.mrf.mxu0
    %v864 = vadd.f32 0.0, %v863
    %v865 = vpop.f32.mrf.mxu0
    %v866 = vadd.f32 0.0, %v865
    %867 = vdwg.mxu0
    %868 = vmatprep.subr.mxu0 0.0
    %869 = vmatpush1.msra.mxu0 %v181
    %870 = vmatprep.subr.mxu0 0.0
    %871 = vmatpush1.msra.mxu0 %v178
    %872 = vmatprep.subr.mxu0 0.0
    %873 = vmatpush1.msra.mxu0 %v175
    %874 = vmatprep.subr.mxu0 0.0
    %875 = vmatpush1.msra.mxu0 %v172
    %876 = vmatprep.subr.mxu0 0.0
    %877 = vmatpush1.msra.mxu0 %v169
    %878 = vmatprep.subr.mxu0 0.0
    %879 = vmatpush1.msra.mxu0 %v166
    %880 = vmatprep.subr.mxu0 0.0
    %881 = vmatpush1.msra.mxu0 %v163
    %882 = vmatprep.subr.mxu0 0.0
    %883 = vmatpush1.msra.mxu0 %v160
    %884 = vmatprep.subr.mxu0 0.0
    %885 = vmatpush1.msra.mxu0 %v157
    %886 = vmatprep.subr.mxu0 0.0
    %887 = vmatpush1.msra.mxu0 %v154
    %888 = vmatprep.subr.mxu0 0.0
    %889 = vmatpush1.msra.mxu0 %v151
    %890 = vmatprep.subr.mxu0 0.0
    %891 = vmatpush1.msra.mxu0 %v148
    %892 = vmatprep.subr.mxu0 0.0
    %893 = vmatpush1.msra.mxu0 %v145
    %894 = vmatprep.subr.mxu0 0.0
    %895 = vmatpush1.msra.mxu0 %v142
    %896 = vmatprep.subr.mxu0 0.0
    %897 = vmatpush1.msra.mxu0 %v139
    %898 = vmatprep.subr.mxu0 0.0
    %899 = vmatpush1.msra.mxu0 %v136
    %900 = vmatprep.subr.mxu0 0.0
    %901 = vmatpush2.msra.mxu0 0.0
    %902 = vmatprep.subr.mxu0 0.0
    %903 = vmatpush2.msra.mxu0 0.0
    %904 = vmatprep.subr.mxu0 0.0
    %905 = vmatpush2.msra.mxu0 0.0
    %906 = vmatprep.subr.mxu0 0.0
    %907 = vmatpush2.msra.mxu0 0.0
    %908 = vmatprep.subr.mxu0 0.0
    %909 = vmatpush2.msra.mxu0 0.0
    %910 = vmatprep.subr.mxu0 0.0
    %911 = vmatpush2.msra.mxu0 0.0
    %912 = vmatprep.subr.mxu0 0.0
    %913 = vmatpush2.msra.mxu0 0.0
    %914 = vmatprep.subr.mxu0 0.0
    %915 = vmatpush2.msra.mxu0 0.0
    %916 = vmatprep.subr.mxu0 0.0
    %917 = vmatpush2.msra.mxu0 0.0
    %918 = vmatprep.subr.mxu0 0.0
    %919 = vmatpush2.msra.mxu0 0.0
    %920 = vmatprep.subr.mxu0 0.0
    %921 = vmatpush2.msra.mxu0 0.0
    %922 = vmatprep.subr.mxu0 0.0
    %923 = vmatpush2.msra.mxu0 0.0
    %924 = vmatprep.subr.mxu0 0.0
    %925 = vmatpush2.msra.mxu0 0.0
    %926 = vmatprep.subr.mxu0 0.0
    %927 = vmatpush2.msra.mxu0 0.0
    %928 = vmatprep.subr.mxu0 0.0
    %929 = vmatpush2.msra.mxu0 0.0
    %930 = vmatprep.subr.mxu0 0.0
    %931 = vmatpush2.msra.mxu0 0.0
    %932 = vmatprep.mubr.f32.mxu0 0.0
    %933 = vmatmul.mubr.f32.gmra.mxu0 %v790
    %v934 = vpop.f32.mrf.mxu0
    %v935 = vadd.f32 0.0, %v934
    %v936 = vpop.f32.mrf.mxu0
    %937 = vdwg.mxu0
    %v938 = vadd.f32 %v794, %v864
    %v939 = vxor.u32 %v938, 2147483648
    %v940 = vmul.f32 %v939, 1.442695
    %v941 = vpow.pop %v940
    %v942 = vadd.f32 %v941, 1.0
    %v943 = vrcp.pop %v942
    %v944 = vmul.f32 1.0, %v943
    %v945 = vadd.f32 %v795, %v866
    %v946 = vxor.u32 %v945, 2147483648
    %v947 = vmul.f32 %v946, 1.442695
    %v948 = vpow.pop %v947
    %v949 = vadd.f32 %v948, 1.0
    %v950 = vrcp.pop %v949
    %v951 = vmul.f32 1.0, %v950
    %v952 = vadd.f32 %v935, %v188
    %v953 = vmul.f32 %v944, %v952
    %v954 = vadd.f32 %v796, %v953
    %v955 = vtanh.pop %v954
    %v956 = vsub.f32 1.0, %v951
    %v957 = vmul.f32 %v956, %v955
    %v958 = vmul.f32 %v951, %v790
    %v959 = vadd.f32 %v957, %v958
    %s960 = scalar_lea.vmem [#allocation12], 16
    %961 = vst [vmem:[%s960] sm:$0xff] %v959
    %s962 = scalar_lea.vmem [#allocation2], 72
    %v963 = vld [vmem:[%s962] sm:$0xff]
    %v964 = vld [vmem:[%s962 + $0x8] sm:$0xff]
    %v965 = vld [vmem:[%s962 + $0x10] sm:$0xff]
    %966 = vmatprep.subr.mxu0 %v180
    %967 = vmatpush1.msra.mxu0 %v179
    %968 = vmatprep.subr.mxu0 %v177
    %969 = vmatpush1.msra.mxu0 %v176
    %970 = vmatprep.subr.mxu0 %v174
    %971 = vmatpush1.msra.mxu0 %v173
    %972 = vmatprep.subr.mxu0 %v171
    %973 = vmatpush1.msra.mxu0 %v170
    %974 = vmatprep.subr.mxu0 %v168
    %975 = vmatpush1.msra.mxu0 %v167
    %976 = vmatprep.subr.mxu0 %v165
    %977 = vmatpush1.msra.mxu0 %v164
    %978 = vmatprep.subr.mxu0 %v162
    %979 = vmatpush1.msra.mxu0 %v161
    %980 = vmatprep.subr.mxu0 %v159
    %981 = vmatpush1.msra.mxu0 %v158
    %982 = vmatprep.subr.mxu0 %v156
    %983 = vmatpush1.msra.mxu0 %v155
    %984 = vmatprep.subr.mxu0 %v153
    %985 = vmatpush1.msra.mxu0 %v152
    %986 = vmatprep.subr.mxu0 %v150
    %987 = vmatpush1.msra.mxu0 %v149
    %988 = vmatprep.subr.mxu0 %v147
    %989 = vmatpush1.msra.mxu0 %v146
    %990 = vmatprep.subr.mxu0 %v144
    %991 = vmatpush1.msra.mxu0 %v143
    %992 = vmatprep.subr.mxu0 %v141
    %993 = vmatpush1.msra.mxu0 %v140
    %994 = vmatprep.subr.mxu0 %v138
    %995 = vmatpush1.msra.mxu0 %v137
    %996 = vmatprep.subr.mxu0 %v135
    %997 = vmatpush1.msra.mxu0 %v134
    %998 = vmatprep.subr.mxu0 0.0
    %999 = vmatpush2.msra.mxu0 0.0
    %1000 = vmatprep.subr.mxu0 0.0
    %1001 = vmatpush2.msra.mxu0 0.0
    %1002 = vmatprep.subr.mxu0 0.0
    %1003 = vmatpush2.msra.mxu0 0.0
    %1004 = vmatprep.subr.mxu0 0.0
    %1005 = vmatpush2.msra.mxu0 0.0
    %1006 = vmatprep.subr.mxu0 0.0
    %1007 = vmatpush2.msra.mxu0 0.0
    %1008 = vmatprep.subr.mxu0 0.0
    %1009 = vmatpush2.msra.mxu0 0.0
    %1010 = vmatprep.subr.mxu0 0.0
    %1011 = vmatpush2.msra.mxu0 0.0
    %1012 = vmatprep.subr.mxu0 0.0
    %1013 = vmatpush2.msra.mxu0 0.0
    %1014 = vmatprep.subr.mxu0 0.0
    %1015 = vmatpush2.msra.mxu0 0.0
    %1016 = vmatprep.subr.mxu0 0.0
    %1017 = vmatpush2.msra.mxu0 0.0
    %1018 = vmatprep.subr.mxu0 0.0
    %1019 = vmatpush2.msra.mxu0 0.0
    %1020 = vmatprep.subr.mxu0 0.0
    %1021 = vmatpush2.msra.mxu0 0.0
    %1022 = vmatprep.subr.mxu0 0.0
    %1023 = vmatpush2.msra.mxu0 0.0
    %1024 = vmatprep.subr.mxu0 0.0
    %1025 = vmatpush2.msra.mxu0 0.0
    %1026 = vmatprep.subr.mxu0 0.0
    %1027 = vmatpush2.msra.mxu0 0.0
    %1028 = vmatprep.subr.mxu0 0.0
    %1029 = vmatpush2.msra.mxu0 0.0
    %1030 = vmatprep.mubr.f32.mxu0 0.0
    %1031 = vmatmul.mubr.f32.gmra.mxu0 %v959
    %v1032 = vpop.f32.mrf.mxu0
    %v1033 = vadd.f32 0.0, %v1032
    %v1034 = vpop.f32.mrf.mxu0
    %v1035 = vadd.f32 0.0, %v1034
    %1036 = vdwg.mxu0
    %1037 = vmatprep.subr.mxu0 0.0
    %1038 = vmatpush1.msra.mxu0 %v181
    %1039 = vmatprep.subr.mxu0 0.0
    %1040 = vmatpush1.msra.mxu0 %v178
    %1041 = vmatprep.subr.mxu0 0.0
    %1042 = vmatpush1.msra.mxu0 %v175
    %1043 = vmatprep.subr.mxu0 0.0
    %1044 = vmatpush1.msra.mxu0 %v172
    %1045 = vmatprep.subr.mxu0 0.0
    %1046 = vmatpush1.msra.mxu0 %v169
    %1047 = vmatprep.subr.mxu0 0.0
    %1048 = vmatpush1.msra.mxu0 %v166
    %1049 = vmatprep.subr.mxu0 0.0
    %1050 = vmatpush1.msra.mxu0 %v163
    %1051 = vmatprep.subr.mxu0 0.0
    %1052 = vmatpush1.msra.mxu0 %v160
    %1053 = vmatprep.subr.mxu0 0.0
    %1054 = vmatpush1.msra.mxu0 %v157
    %1055 = vmatprep.subr.mxu0 0.0
    %1056 = vmatpush1.msra.mxu0 %v154
    %1057 = vmatprep.subr.mxu0 0.0
    %1058 = vmatpush1.msra.mxu0 %v151
    %1059 = vmatprep.subr.mxu0 0.0
    %1060 = vmatpush1.msra.mxu0 %v148
    %1061 = vmatprep.subr.mxu0 0.0
    %1062 = vmatpush1.msra.mxu0 %v145
    %1063 = vmatprep.subr.mxu0 0.0
    %1064 = vmatpush1.msra.mxu0 %v142
    %1065 = vmatprep.subr.mxu0 0.0
    %1066 = vmatpush1.msra.mxu0 %v139
    %1067 = vmatprep.subr.mxu0 0.0
    %1068 = vmatpush1.msra.mxu0 %v136
    %1069 = vmatprep.subr.mxu0 0.0
    %1070 = vmatpush2.msra.mxu0 0.0
    %1071 = vmatprep.subr.mxu0 0.0
    %1072 = vmatpush2.msra.mxu0 0.0
    %1073 = vmatprep.subr.mxu0 0.0
    %1074 = vmatpush2.msra.mxu0 0.0
    %1075 = vmatprep.subr.mxu0 0.0
    %1076 = vmatpush2.msra.mxu0 0.0
    %1077 = vmatprep.subr.mxu0 0.0
    %1078 = vmatpush2.msra.mxu0 0.0
    %1079 = vmatprep.subr.mxu0 0.0
    %1080 = vmatpush2.msra.mxu0 0.0
    %1081 = vmatprep.subr.mxu0 0.0
    %1082 = vmatpush2.msra.mxu0 0.0
    %1083 = vmatprep.subr.mxu0 0.0
    %1084 = vmatpush2.msra.mxu0 0.0
    %1085 = vmatprep.subr.mxu0 0.0
    %1086 = vmatpush2.msra.mxu0 0.0
    %1087 = vmatprep.subr.mxu0 0.0
    %1088 = vmatpush2.msra.mxu0 0.0
    %1089 = vmatprep.subr.mxu0 0.0
    %1090 = vmatpush2.msra.mxu0 0.0
    %1091 = vmatprep.subr.mxu0 0.0
    %1092 = vmatpush2.msra.mxu0 0.0
    %1093 = vmatprep.subr.mxu0 0.0
    %1094 = vmatpush2.msra.mxu0 0.0
    %1095 = vmatprep.subr.mxu0 0.0
    %1096 = vmatpush2.msra.mxu0 0.0
    %1097 = vmatprep.subr.mxu0 0.0
    %1098 = vmatpush2.msra.mxu0 0.0
    %1099 = vmatprep.subr.mxu0 0.0
    %1100 = vmatpush2.msra.mxu0 0.0
    %1101 = vmatprep.mubr.f32.mxu0 0.0
    %1102 = vmatmul.mubr.f32.gmra.mxu0 %v959
    %v1103 = vpop.f32.mrf.mxu0
    %v1104 = vadd.f32 0.0, %v1103
    %v1105 = vpop.f32.mrf.mxu0
    %1106 = vdwg.mxu0
    %v1107 = vadd.f32 %v963, %v1033
    %v1108 = vxor.u32 %v1107, 2147483648
    %v1109 = vmul.f32 %v1108, 1.442695
    %v1110 = vpow.pop %v1109
    %v1111 = vadd.f32 %v1110, 1.0
    %v1112 = vrcp.pop %v1111
    %v1113 = vmul.f32 1.0, %v1112
    %v1114 = vadd.f32 %v964, %v1035
    %v1115 = vxor.u32 %v1114, 2147483648
    %v1116 = vmul.f32 %v1115, 1.442695
    %v1117 = vpow.pop %v1116
    %v1118 = vadd.f32 %v1117, 1.0
    %v1119 = vrcp.pop %v1118
    %v1120 = vmul.f32 1.0, %v1119
    %v1121 = vadd.f32 %v1104, %v188
    %v1122 = vmul.f32 %v1113, %v1121
    %v1123 = vadd.f32 %v965, %v1122
    %v1124 = vtanh.pop %v1123
    %v1125 = vsub.f32 1.0, %v1120
    %v1126 = vmul.f32 %v1125, %v1124
    %v1127 = vmul.f32 %v1120, %v959
    %v1128 = vadd.f32 %v1126, %v1127
    %s1129 = scalar_lea.vmem [#allocation12], 24
    %1130 = vst [vmem:[%s1129] sm:$0xff] %v1128
    %s1131 = scalar_lea.vmem [#allocation2], 96
    %v1132 = vld [vmem:[%s1131] sm:$0xff]
    %v1133 = vld [vmem:[%s1131 + $0x8] sm:$0xff]
    %v1134 = vld [vmem:[%s1131 + $0x10] sm:$0xff]
    %1135 = vmatprep.subr.mxu0 %v180
    %1136 = vmatpush1.msra.mxu0 %v179
    %1137 = vmatprep.subr.mxu0 %v177
    %1138 = vmatpush1.msra.mxu0 %v176
    %1139 = vmatprep.subr.mxu0 %v174
    %1140 = vmatpush1.msra.mxu0 %v173
    %1141 = vmatprep.subr.mxu0 %v171
    %1142 = vmatpush1.msra.mxu0 %v170
    %1143 = vmatprep.subr.mxu0 %v168
    %1144 = vmatpush1.msra.mxu0 %v167
    %1145 = vmatprep.subr.mxu0 %v165
    %1146 = vmatpush1.msra.mxu0 %v164
    %1147 = vmatprep.subr.mxu0 %v162
    %1148 = vmatpush1.msra.mxu0 %v161
    %1149 = vmatprep.subr.mxu0 %v159
    %1150 = vmatpush1.msra.mxu0 %v158
    %1151 = vmatprep.subr.mxu0 %v156
    %1152 = vmatpush1.msra.mxu0 %v155
    %1153 = vmatprep.subr.mxu0 %v153
    %1154 = vmatpush1.msra.mxu0 %v152
    %1155 = vmatprep.subr.mxu0 %v150
    %1156 = vmatpush1.msra.mxu0 %v149
    %1157 = vmatprep.subr.mxu0 %v147
    %1158 = vmatpush1.msra.mxu0 %v146
    %1159 = vmatprep.subr.mxu0 %v144
    %1160 = vmatpush1.msra.mxu0 %v143
    %1161 = vmatprep.subr.mxu0 %v141
    %1162 = vmatpush1.msra.mxu0 %v140
    %1163 = vmatprep.subr.mxu0 %v138
    %1164 = vmatpush1.msra.mxu0 %v137
    %1165 = vmatprep.subr.mxu0 %v135
    %1166 = vmatpush1.msra.mxu0 %v134
    %1167 = vmatprep.subr.mxu0 0.0
    %1168 = vmatpush2.msra.mxu0 0.0
    %1169 = vmatprep.subr.mxu0 0.0
    %1170 = vmatpush2.msra.mxu0 0.0
    %1171 = vmatprep.subr.mxu0 0.0
    %1172 = vmatpush2.msra.mxu0 0.0
    %1173 = vmatprep.subr.mxu0 0.0
    %1174 = vmatpush2.msra.mxu0 0.0
    %1175 = vmatprep.subr.mxu0 0.0
    %1176 = vmatpush2.msra.mxu0 0.0
    %1177 = vmatprep.subr.mxu0 0.0
    %1178 = vmatpush2.msra.mxu0 0.0
    %1179 = vmatprep.subr.mxu0 0.0
    %1180 = vmatpush2.msra.mxu0 0.0
    %1181 = vmatprep.subr.mxu0 0.0
    %1182 = vmatpush2.msra.mxu0 0.0
    %1183 = vmatprep.subr.mxu0 0.0
    %1184 = vmatpush2.msra.mxu0 0.0
    %1185 = vmatprep.subr.mxu0 0.0
    %1186 = vmatpush2.msra.mxu0 0.0
    %1187 = vmatprep.subr.mxu0 0.0
    %1188 = vmatpush2.msra.mxu0 0.0
    %1189 = vmatprep.subr.mxu0 0.0
    %1190 = vmatpush2.msra.mxu0 0.0
    %1191 = vmatprep.subr.mxu0 0.0
    %1192 = vmatpush2.msra.mxu0 0.0
    %1193 = vmatprep.subr.mxu0 0.0
    %1194 = vmatpush2.msra.mxu0 0.0
    %1195 = vmatprep.subr.mxu0 0.0
    %1196 = vmatpush2.msra.mxu0 0.0
    %1197 = vmatprep.subr.mxu0 0.0
    %1198 = vmatpush2.msra.mxu0 0.0
    %1199 = vmatprep.mubr.f32.mxu0 0.0
    %1200 = vmatmul.mubr.f32.gmra.mxu0 %v1128
    %v1201 = vpop.f32.mrf.mxu0
    %v1202 = vadd.f32 0.0, %v1201
    %v1203 = vpop.f32.mrf.mxu0
    %v1204 = vadd.f32 0.0, %v1203
    %1205 = vdwg.mxu0
    %1206 = vmatprep.subr.mxu0 0.0
    %1207 = vmatpush1.msra.mxu0 %v181
    %1208 = vmatprep.subr.mxu0 0.0
    %1209 = vmatpush1.msra.mxu0 %v178
    %1210 = vmatprep.subr.mxu0 0.0
    %1211 = vmatpush1.msra.mxu0 %v175
    %1212 = vmatprep.subr.mxu0 0.0
    %1213 = vmatpush1.msra.mxu0 %v172
    %1214 = vmatprep.subr.mxu0 0.0
    %1215 = vmatpush1.msra.mxu0 %v169
    %1216 = vmatprep.subr.mxu0 0.0
    %1217 = vmatpush1.msra.mxu0 %v166
    %1218 = vmatprep.subr.mxu0 0.0
    %1219 = vmatpush1.msra.mxu0 %v163
    %1220 = vmatprep.subr.mxu0 0.0
    %1221 = vmatpush1.msra.mxu0 %v160
    %1222 = vmatprep.subr.mxu0 0.0
    %1223 = vmatpush1.msra.mxu0 %v157
    %1224 = vmatprep.subr.mxu0 0.0
    %1225 = vmatpush1.msra.mxu0 %v154
    %1226 = vmatprep.subr.mxu0 0.0
    %1227 = vmatpush1.msra.mxu0 %v151
    %1228 = vmatprep.subr.mxu0 0.0
    %1229 = vmatpush1.msra.mxu0 %v148
    %1230 = vmatprep.subr.mxu0 0.0
    %1231 = vmatpush1.msra.mxu0 %v145
    %1232 = vmatprep.subr.mxu0 0.0
    %1233 = vmatpush1.msra.mxu0 %v142
    %1234 = vmatprep.subr.mxu0 0.0
    %1235 = vmatpush1.msra.mxu0 %v139
    %1236 = vmatprep.subr.mxu0 0.0
    %1237 = vmatpush1.msra.mxu0 %v136
    %1238 = vmatprep.subr.mxu0 0.0
    %1239 = vmatpush2.msra.mxu0 0.0
    %1240 = vmatprep.subr.mxu0 0.0
    %1241 = vmatpush2.msra.mxu0 0.0
    %1242 = vmatprep.subr.mxu0 0.0
    %1243 = vmatpush2.msra.mxu0 0.0
    %1244 = vmatprep.subr.mxu0 0.0
    %1245 = vmatpush2.msra.mxu0 0.0
    %1246 = vmatprep.subr.mxu0 0.0
    %1247 = vmatpush2.msra.mxu0 0.0
    %1248 = vmatprep.subr.mxu0 0.0
    %1249 = vmatpush2.msra.mxu0 0.0
    %1250 = vmatprep.subr.mxu0 0.0
    %1251 = vmatpush2.msra.mxu0 0.0
    %1252 = vmatprep.subr.mxu0 0.0
    %1253 = vmatpush2.msra.mxu0 0.0
    %1254 = vmatprep.subr.mxu0 0.0
    %1255 = vmatpush2.msra.mxu0 0.0
    %1256 = vmatprep.subr.mxu0 0.0
    %1257 = vmatpush2.msra.mxu0 0.0
    %1258 = vmatprep.subr.mxu0 0.0
    %1259 = vmatpush2.msra.mxu0 0.0
    %1260 = vmatprep.subr.mxu0 0.0
    %1261 = vmatpush2.msra.mxu0 0.0
    %1262 = vmatprep.subr.mxu0 0.0
    %1263 = vmatpush2.msra.mxu0 0.0
    %1264 = vmatprep.subr.mxu0 0.0
    %1265 = vmatpush2.msra.mxu0 0.0
    %1266 = vmatprep.subr.mxu0 0.0
    %1267 = vmatpush2.msra.mxu0 0.0
    %1268 = vmatprep.subr.mxu0 0.0
    %1269 = vmatpush2.msra.mxu0 0.0
    %1270 = vmatprep.mubr.f32.mxu0 0.0
    %1271 = vmatmul.mubr.f32.gmra.mxu0 %v1128
    %v1272 = vpop.f32.mrf.mxu0
    %v1273 = vadd.f32 0.0, %v1272
    %v1274 = vpop.f32.mrf.mxu0
    %1275 = vdwg.mxu0
    %v1276 = vadd.f32 %v1132, %v1202
    %v1277 = vxor.u32 %v1276, 2147483648
    %v1278 = vmul.f32 %v1277, 1.442695
    %v1279 = vpow.pop %v1278
    %v1280 = vadd.f32 %v1279, 1.0
    %v1281 = vrcp.pop %v1280
    %v1282 = vmul.f32 1.0, %v1281
    %v1283 = vadd.f32 %v1133, %v1204
    %v1284 = vxor.u32 %v1283, 2147483648
    %v1285 = vmul.f32 %v1284, 1.442695
    %v1286 = vpow.pop %v1285
    %v1287 = vadd.f32 %v1286, 1.0
    %v1288 = vrcp.pop %v1287
    %v1289 = vmul.f32 1.0, %v1288
    %v1290 = vadd.f32 %v1273, %v188
    %v1291 = vmul.f32 %v1282, %v1290
    %v1292 = vadd.f32 %v1134, %v1291
    %v1293 = vtanh.pop %v1292
    %v1294 = vsub.f32 1.0, %v1289
    %v1295 = vmul.f32 %v1294, %v1293
    %v1296 = vmul.f32 %v1289, %v1128
    %v1297 = vadd.f32 %v1295, %v1296
    %s1298 = scalar_lea.vmem [#allocation12], 32
    %1299 = vst [vmem:[%s1298] sm:$0xff] %v1297
    %s1300 = scalar_lea.vmem [#allocation2], 120
    %v1301 = vld [vmem:[%s1300] sm:$0xff]
    %v1302 = vld [vmem:[%s1300 + $0x8] sm:$0xff]
    %v1303 = vld [vmem:[%s1300 + $0x10] sm:$0xff]
    %1304 = vmatprep.subr.mxu0 %v180
    %1305 = vmatpush1.msra.mxu0 %v179
    %1306 = vmatprep.subr.mxu0 %v177
    %1307 = vmatpush1.msra.mxu0 %v176
    %1308 = vmatprep.subr.mxu0 %v174
    %1309 = vmatpush1.msra.mxu0 %v173
    %1310 = vmatprep.subr.mxu0 %v171
    %1311 = vmatpush1.msra.mxu0 %v170
    %1312 = vmatprep.subr.mxu0 %v168
    %1313 = vmatpush1.msra.mxu0 %v167
    %1314 = vmatprep.subr.mxu0 %v165
    %1315 = vmatpush1.msra.mxu0 %v164
    %1316 = vmatprep.subr.mxu0 %v162
    %1317 = vmatpush1.msra.mxu0 %v161
    %1318 = vmatprep.subr.mxu0 %v159
    %1319 = vmatpush1.msra.mxu0 %v158
    %1320 = vmatprep.subr.mxu0 %v156
    %1321 = vmatpush1.msra.mxu0 %v155
    %1322 = vmatprep.subr.mxu0 %v153
    %1323 = vmatpush1.msra.mxu0 %v152
    %1324 = vmatprep.subr.mxu0 %v150
    %1325 = vmatpush1.msra.mxu0 %v149
    %1326 = vmatprep.subr.mxu0 %v147
    %1327 = vmatpush1.msra.mxu0 %v146
    %1328 = vmatprep.subr.mxu0 %v144
    %1329 = vmatpush1.msra.mxu0 %v143
    %1330 = vmatprep.subr.mxu0 %v141
    %1331 = vmatpush1.msra.mxu0 %v140
    %1332 = vmatprep.subr.mxu0 %v138
    %1333 = vmatpush1.msra.mxu0 %v137
    %1334 = vmatprep.subr.mxu0 %v135
    %1335 = vmatpush1.msra.mxu0 %v134
    %1336 = vmatprep.subr.mxu0 0.0
    %1337 = vmatpush2.msra.mxu0 0.0
    %1338 = vmatprep.subr.mxu0 0.0
    %1339 = vmatpush2.msra.mxu0 0.0
    %1340 = vmatprep.subr.mxu0 0.0
    %1341 = vmatpush2.msra.mxu0 0.0
    %1342 = vmatprep.subr.mxu0 0.0
    %1343 = vmatpush2.msra.mxu0 0.0
    %1344 = vmatprep.subr.mxu0 0.0
    %1345 = vmatpush2.msra.mxu0 0.0
    %1346 = vmatprep.subr.mxu0 0.0
    %1347 = vmatpush2.msra.mxu0 0.0
    %1348 = vmatprep.subr.mxu0 0.0
    %1349 = vmatpush2.msra.mxu0 0.0
    %1350 = vmatprep.subr.mxu0 0.0
    %1351 = vmatpush2.msra.mxu0 0.0
    %1352 = vmatprep.subr.mxu0 0.0
    %1353 = vmatpush2.msra.mxu0 0.0
    %1354 = vmatprep.subr.mxu0 0.0
    %1355 = vmatpush2.msra.mxu0 0.0
    %1356 = vmatprep.subr.mxu0 0.0
    %1357 = vmatpush2.msra.mxu0 0.0
    %1358 = vmatprep.subr.mxu0 0.0
    %1359 = vmatpush2.msra.mxu0 0.0
    %1360 = vmatprep.subr.mxu0 0.0
    %1361 = vmatpush2.msra.mxu0 0.0
    %1362 = vmatprep.subr.mxu0 0.0
    %1363 = vmatpush2.msra.mxu0 0.0
    %1364 = vmatprep.subr.mxu0 0.0
    %1365 = vmatpush2.msra.mxu0 0.0
    %1366 = vmatprep.subr.mxu0 0.0
    %1367 = vmatpush2.msra.mxu0 0.0
    %1368 = vmatprep.mubr.f32.mxu0 0.0
    %1369 = vmatmul.mubr.f32.gmra.mxu0 %v1297
    %v1370 = vpop.f32.mrf.mxu0
    %v1371 = vadd.f32 0.0, %v1370
    %v1372 = vpop.f32.mrf.mxu0
    %v1373 = vadd.f32 0.0, %v1372
    %1374 = vdwg.mxu0
    %1375 = vmatprep.subr.mxu0 0.0
    %1376 = vmatpush1.msra.mxu0 %v181
    %1377 = vmatprep.subr.mxu0 0.0
    %1378 = vmatpush1.msra.mxu0 %v178
    %1379 = vmatprep.subr.mxu0 0.0
    %1380 = vmatpush1.msra.mxu0 %v175
    %1381 = vmatprep.subr.mxu0 0.0
    %1382 = vmatpush1.msra.mxu0 %v172
    %1383 = vmatprep.subr.mxu0 0.0
    %1384 = vmatpush1.msra.mxu0 %v169
    %1385 = vmatprep.subr.mxu0 0.0
    %1386 = vmatpush1.msra.mxu0 %v166
    %1387 = vmatprep.subr.mxu0 0.0
    %1388 = vmatpush1.msra.mxu0 %v163
    %1389 = vmatprep.subr.mxu0 0.0
    %1390 = vmatpush1.msra.mxu0 %v160
    %1391 = vmatprep.subr.mxu0 0.0
    %1392 = vmatpush1.msra.mxu0 %v157
    %1393 = vmatprep.subr.mxu0 0.0
    %1394 = vmatpush1.msra.mxu0 %v154
    %1395 = vmatprep.subr.mxu0 0.0
    %1396 = vmatpush1.msra.mxu0 %v151
    %1397 = vmatprep.subr.mxu0 0.0
    %1398 = vmatpush1.msra.mxu0 %v148
    %1399 = vmatprep.subr.mxu0 0.0
    %1400 = vmatpush1.msra.mxu0 %v145
    %1401 = vmatprep.subr.mxu0 0.0
    %1402 = vmatpush1.msra.mxu0 %v142
    %1403 = vmatprep.subr.mxu0 0.0
    %1404 = vmatpush1.msra.mxu0 %v139
    %1405 = vmatprep.subr.mxu0 0.0
    %1406 = vmatpush1.msra.mxu0 %v136
    %1407 = vmatprep.subr.mxu0 0.0
    %1408 = vmatpush2.msra.mxu0 0.0
    %1409 = vmatprep.subr.mxu0 0.0
    %1410 = vmatpush2.msra.mxu0 0.0
    %1411 = vmatprep.subr.mxu0 0.0
    %1412 = vmatpush2.msra.mxu0 0.0
    %1413 = vmatprep.subr.mxu0 0.0
    %1414 = vmatpush2.msra.mxu0 0.0
    %1415 = vmatprep.subr.mxu0 0.0
    %1416 = vmatpush2.msra.mxu0 0.0
    %1417 = vmatprep.subr.mxu0 0.0
    %1418 = vmatpush2.msra.mxu0 0.0
    %1419 = vmatprep.subr.mxu0 0.0
    %1420 = vmatpush2.msra.mxu0 0.0
    %1421 = vmatprep.subr.mxu0 0.0
    %1422 = vmatpush2.msra.mxu0 0.0
    %1423 = vmatprep.subr.mxu0 0.0
    %1424 = vmatpush2.msra.mxu0 0.0
    %1425 = vmatprep.subr.mxu0 0.0
    %1426 = vmatpush2.msra.mxu0 0.0
    %1427 = vmatprep.subr.mxu0 0.0
    %1428 = vmatpush2.msra.mxu0 0.0
    %1429 = vmatprep.subr.mxu0 0.0
    %1430 = vmatpush2.msra.mxu0 0.0
    %1431 = vmatprep.subr.mxu0 0.0
    %1432 = vmatpush2.msra.mxu0 0.0
    %1433 = vmatprep.subr.mxu0 0.0
    %1434 = vmatpush2.msra.mxu0 0.0
    %1435 = vmatprep.subr.mxu0 0.0
    %1436 = vmatpush2.msra.mxu0 0.0
    %1437 = vmatprep.subr.mxu0 0.0
    %1438 = vmatpush2.msra.mxu0 0.0
    %1439 = vmatprep.mubr.f32.mxu0 0.0
    %1440 = vmatmul.mubr.f32.gmra.mxu0 %v1297
    %v1441 = vpop.f32.mrf.mxu0
    %v1442 = vadd.f32 0.0, %v1441
    %v1443 = vpop.f32.mrf.mxu0
    %1444 = vdwg.mxu0
    %v1445 = vadd.f32 %v1301, %v1371
    %v1446 = vxor.u32 %v1445, 2147483648
    %v1447 = vmul.f32 %v1446, 1.442695
    %v1448 = vpow.pop %v1447
    %v1449 = vadd.f32 %v1448, 1.0
    %v1450 = vrcp.pop %v1449
    %v1451 = vmul.f32 1.0, %v1450
    %v1452 = vadd.f32 %v1302, %v1373
    %v1453 = vxor.u32 %v1452, 2147483648
    %v1454 = vmul.f32 %v1453, 1.442695
    %v1455 = vpow.pop %v1454
    %v1456 = vadd.f32 %v1455, 1.0
    %v1457 = vrcp.pop %v1456
    %v1458 = vmul.f32 1.0, %v1457
    %v1459 = vadd.f32 %v1442, %v188
    %v1460 = vmul.f32 %v1451, %v1459
    %v1461 = vadd.f32 %v1303, %v1460
    %v1462 = vtanh.pop %v1461
    %v1463 = vsub.f32 1.0, %v1458
    %v1464 = vmul.f32 %v1463, %v1462
    %v1465 = vmul.f32 %v1458, %v1297
    %v1466 = vadd.f32 %v1464, %v1465
    %s1467 = scalar_lea.vmem [#allocation12], 40
    %1468 = vst [vmem:[%s1467] sm:$0xff] %v1466
    %s1469 = scalar_lea.vmem [#allocation2], 144
    %v1470 = vld [vmem:[%s1469] sm:$0xff]
    %v1471 = vld [vmem:[%s1469 + $0x8] sm:$0xff]
    %v1472 = vld [vmem:[%s1469 + $0x10] sm:$0xff]
    %1473 = vmatprep.subr.mxu0 %v180
    %1474 = vmatpush1.msra.mxu0 %v179
    %1475 = vmatprep.subr.mxu0 %v177
    %1476 = vmatpush1.msra.mxu0 %v176
    %1477 = vmatprep.subr.mxu0 %v174
    %1478 = vmatpush1.msra.mxu0 %v173
    %1479 = vmatprep.subr.mxu0 %v171
    %1480 = vmatpush1.msra.mxu0 %v170
    %1481 = vmatprep.subr.mxu0 %v168
    %1482 = vmatpush1.msra.mxu0 %v167
    %1483 = vmatprep.subr.mxu0 %v165
    %1484 = vmatpush1.msra.mxu0 %v164
    %1485 = vmatprep.subr.mxu0 %v162
    %1486 = vmatpush1.msra.mxu0 %v161
    %1487 = vmatprep.subr.mxu0 %v159
    %1488 = vmatpush1.msra.mxu0 %v158
    %1489 = vmatprep.subr.mxu0 %v156
    %1490 = vmatpush1.msra.mxu0 %v155
    %1491 = vmatprep.subr.mxu0 %v153
    %1492 = vmatpush1.msra.mxu0 %v152
    %1493 = vmatprep.subr.mxu0 %v150
    %1494 = vmatpush1.msra.mxu0 %v149
    %1495 = vmatprep.subr.mxu0 %v147
    %1496 = vmatpush1.msra.mxu0 %v146
    %1497 = vmatprep.subr.mxu0 %v144
    %1498 = vmatpush1.msra.mxu0 %v143
    %1499 = vmatprep.subr.mxu0 %v141
    %1500 = vmatpush1.msra.mxu0 %v140
    %1501 = vmatprep.subr.mxu0 %v138
    %1502 = vmatpush1.msra.mxu0 %v137
    %1503 = vmatprep.subr.mxu0 %v135
    %1504 = vmatpush1.msra.mxu0 %v134
    %1505 = vmatprep.subr.mxu0 0.0
    %1506 = vmatpush2.msra.mxu0 0.0
    %1507 = vmatprep.subr.mxu0 0.0
    %1508 = vmatpush2.msra.mxu0 0.0
    %1509 = vmatprep.subr.mxu0 0.0
    %1510 = vmatpush2.msra.mxu0 0.0
    %1511 = vmatprep.subr.mxu0 0.0
    %1512 = vmatpush2.msra.mxu0 0.0
    %1513 = vmatprep.subr.mxu0 0.0
    %1514 = vmatpush2.msra.mxu0 0.0
    %1515 = vmatprep.subr.mxu0 0.0
    %1516 = vmatpush2.msra.mxu0 0.0
    %1517 = vmatprep.subr.mxu0 0.0
    %1518 = vmatpush2.msra.mxu0 0.0
    %1519 = vmatprep.subr.mxu0 0.0
    %1520 = vmatpush2.msra.mxu0 0.0
    %1521 = vmatprep.subr.mxu0 0.0
    %1522 = vmatpush2.msra.mxu0 0.0
    %1523 = vmatprep.subr.mxu0 0.0
    %1524 = vmatpush2.msra.mxu0 0.0
    %1525 = vmatprep.subr.mxu0 0.0
    %1526 = vmatpush2.msra.mxu0 0.0
    %1527 = vmatprep.subr.mxu0 0.0
    %1528 = vmatpush2.msra.mxu0 0.0
    %1529 = vmatprep.subr.mxu0 0.0
    %1530 = vmatpush2.msra.mxu0 0.0
    %1531 = vmatprep.subr.mxu0 0.0
    %1532 = vmatpush2.msra.mxu0 0.0
    %1533 = vmatprep.subr.mxu0 0.0
    %1534 = vmatpush2.msra.mxu0 0.0
    %1535 = vmatprep.subr.mxu0 0.0
    %1536 = vmatpush2.msra.mxu0 0.0
    %1537 = vmatprep.mubr.f32.mxu0 0.0
    %1538 = vmatmul.mubr.f32.gmra.mxu0 %v1466
    %v1539 = vpop.f32.mrf.mxu0
    %v1540 = vadd.f32 0.0, %v1539
    %v1541 = vpop.f32.mrf.mxu0
    %v1542 = vadd.f32 0.0, %v1541
    %1543 = vdwg.mxu0
    %1544 = vmatprep.subr.mxu0 0.0
    %1545 = vmatpush1.msra.mxu0 %v181
    %1546 = vmatprep.subr.mxu0 0.0
    %1547 = vmatpush1.msra.mxu0 %v178
    %1548 = vmatprep.subr.mxu0 0.0
    %1549 = vmatpush1.msra.mxu0 %v175
    %1550 = vmatprep.subr.mxu0 0.0
    %1551 = vmatpush1.msra.mxu0 %v172
    %1552 = vmatprep.subr.mxu0 0.0
    %1553 = vmatpush1.msra.mxu0 %v169
    %1554 = vmatprep.subr.mxu0 0.0
    %1555 = vmatpush1.msra.mxu0 %v166
    %1556 = vmatprep.subr.mxu0 0.0
    %1557 = vmatpush1.msra.mxu0 %v163
    %1558 = vmatprep.subr.mxu0 0.0
    %1559 = vmatpush1.msra.mxu0 %v160
    %1560 = vmatprep.subr.mxu0 0.0
    %1561 = vmatpush1.msra.mxu0 %v157
    %1562 = vmatprep.subr.mxu0 0.0
    %1563 = vmatpush1.msra.mxu0 %v154
    %1564 = vmatprep.subr.mxu0 0.0
    %1565 = vmatpush1.msra.mxu0 %v151
    %1566 = vmatprep.subr.mxu0 0.0
    %1567 = vmatpush1.msra.mxu0 %v148
    %1568 = vmatprep.subr.mxu0 0.0
    %1569 = vmatpush1.msra.mxu0 %v145
    %1570 = vmatprep.subr.mxu0 0.0
    %1571 = vmatpush1.msra.mxu0 %v142
    %1572 = vmatprep.subr.mxu0 0.0
    %1573 = vmatpush1.msra.mxu0 %v139
    %1574 = vmatprep.subr.mxu0 0.0
    %1575 = vmatpush1.msra.mxu0 %v136
    %1576 = vmatprep.subr.mxu0 0.0
    %1577 = vmatpush2.msra.mxu0 0.0
    %1578 = vmatprep.subr.mxu0 0.0
    %1579 = vmatpush2.msra.mxu0 0.0
    %1580 = vmatprep.subr.mxu0 0.0
    %1581 = vmatpush2.msra.mxu0 0.0
    %1582 = vmatprep.subr.mxu0 0.0
    %1583 = vmatpush2.msra.mxu0 0.0
    %1584 = vmatprep.subr.mxu0 0.0
    %1585 = vmatpush2.msra.mxu0 0.0
    %1586 = vmatprep.subr.mxu0 0.0
    %1587 = vmatpush2.msra.mxu0 0.0
    %1588 = vmatprep.subr.mxu0 0.0
    %1589 = vmatpush2.msra.mxu0 0.0
    %1590 = vmatprep.subr.mxu0 0.0
    %1591 = vmatpush2.msra.mxu0 0.0
    %1592 = vmatprep.subr.mxu0 0.0
    %1593 = vmatpush2.msra.mxu0 0.0
    %1594 = vmatprep.subr.mxu0 0.0
    %1595 = vmatpush2.msra.mxu0 0.0
    %1596 = vmatprep.subr.mxu0 0.0
    %1597 = vmatpush2.msra.mxu0 0.0
    %1598 = vmatprep.subr.mxu0 0.0
    %1599 = vmatpush2.msra.mxu0 0.0
    %1600 = vmatprep.subr.mxu0 0.0
    %1601 = vmatpush2.msra.mxu0 0.0
    %1602 = vmatprep.subr.mxu0 0.0
    %1603 = vmatpush2.msra.mxu0 0.0
    %1604 = vmatprep.subr.mxu0 0.0
    %1605 = vmatpush2.msra.mxu0 0.0
    %1606 = vmatprep.subr.mxu0 0.0
    %1607 = vmatpush2.msra.mxu0 0.0
    %1608 = vmatprep.mubr.f32.mxu0 0.0
    %1609 = vmatmul.mubr.f32.gmra.mxu0 %v1466
    %v1610 = vpop.f32.mrf.mxu0
    %v1611 = vadd.f32 0.0, %v1610
    %v1612 = vpop.f32.mrf.mxu0
    %1613 = vdwg.mxu0
    %v1614 = vadd.f32 %v1470, %v1540
    %v1615 = vxor.u32 %v1614, 2147483648
    %v1616 = vmul.f32 %v1615, 1.442695
    %v1617 = vpow.pop %v1616
    %v1618 = vadd.f32 %v1617, 1.0
    %v1619 = vrcp.pop %v1618
    %v1620 = vmul.f32 1.0, %v1619
    %v1621 = vadd.f32 %v1471, %v1542
    %v1622 = vxor.u32 %v1621, 2147483648
    %v1623 = vmul.f32 %v1622, 1.442695
    %v1624 = vpow.pop %v1623
    %v1625 = vadd.f32 %v1624, 1.0
    %v1626 = vrcp.pop %v1625
    %v1627 = vmul.f32 1.0, %v1626
    %v1628 = vadd.f32 %v1611, %v188
    %v1629 = vmul.f32 %v1620, %v1628
    %v1630 = vadd.f32 %v1472, %v1629
    %v1631 = vtanh.pop %v1630
    %v1632 = vsub.f32 1.0, %v1627
    %v1633 = vmul.f32 %v1632, %v1631
    %v1634 = vmul.f32 %v1627, %v1466
    %v1635 = vadd.f32 %v1633, %v1634
    %s1636 = scalar_lea.vmem [#allocation12], 48
    %1637 = vst [vmem:[%s1636] sm:$0xff] %v1635
    %s1638 = scalar_lea.vmem [#allocation2], 168
    %v1639 = vld [vmem:[%s1638] sm:$0xff]
    %v1640 = vld [vmem:[%s1638 + $0x8] sm:$0xff]
    %v1641 = vld [vmem:[%s1638 + $0x10] sm:$0xff]
    %1642 = vmatprep.subr.mxu0 %v180
    %1643 = vmatpush1.msra.mxu0 %v179
    %1644 = vmatprep.subr.mxu0 %v177
    %1645 = vmatpush1.msra.mxu0 %v176
    %1646 = vmatprep.subr.mxu0 %v174
    %1647 = vmatpush1.msra.mxu0 %v173
    %1648 = vmatprep.subr.mxu0 %v171
    %1649 = vmatpush1.msra.mxu0 %v170
    %1650 = vmatprep.subr.mxu0 %v168
    %1651 = vmatpush1.msra.mxu0 %v167
    %1652 = vmatprep.subr.mxu0 %v165
    %1653 = vmatpush1.msra.mxu0 %v164
    %1654 = vmatprep.subr.mxu0 %v162
    %1655 = vmatpush1.msra.mxu0 %v161
    %1656 = vmatprep.subr.mxu0 %v159
    %1657 = vmatpush1.msra.mxu0 %v158
    %1658 = vmatprep.subr.mxu0 %v156
    %1659 = vmatpush1.msra.mxu0 %v155
    %1660 = vmatprep.subr.mxu0 %v153
    %1661 = vmatpush1.msra.mxu0 %v152
    %1662 = vmatprep.subr.mxu0 %v150
    %1663 = vmatpush1.msra.mxu0 %v149
    %1664 = vmatprep.subr.mxu0 %v147
    %1665 = vmatpush1.msra.mxu0 %v146
    %1666 = vmatprep.subr.mxu0 %v144
    %1667 = vmatpush1.msra.mxu0 %v143
    %1668 = vmatprep.subr.mxu0 %v141
    %1669 = vmatpush1.msra.mxu0 %v140
    %1670 = vmatprep.subr.mxu0 %v138
    %1671 = vmatpush1.msra.mxu0 %v137
    %1672 = vmatprep.subr.mxu0 %v135
    %1673 = vmatpush1.msra.mxu0 %v134
    %1674 = vmatprep.subr.mxu0 0.0
    %1675 = vmatpush2.msra.mxu0 0.0
    %1676 = vmatprep.subr.mxu0 0.0
    %1677 = vmatpush2.msra.mxu0 0.0
    %1678 = vmatprep.subr.mxu0 0.0
    %1679 = vmatpush2.msra.mxu0 0.0
    %1680 = vmatprep.subr.mxu0 0.0
    %1681 = vmatpush2.msra.mxu0 0.0
    %1682 = vmatprep.subr.mxu0 0.0
    %1683 = vmatpush2.msra.mxu0 0.0
    %1684 = vmatprep.subr.mxu0 0.0
    %1685 = vmatpush2.msra.mxu0 0.0
    %1686 = vmatprep.subr.mxu0 0.0
    %1687 = vmatpush2.msra.mxu0 0.0
    %1688 = vmatprep.subr.mxu0 0.0
    %1689 = vmatpush2.msra.mxu0 0.0
    %1690 = vmatprep.subr.mxu0 0.0
    %1691 = vmatpush2.msra.mxu0 0.0
    %1692 = vmatprep.subr.mxu0 0.0
    %1693 = vmatpush2.msra.mxu0 0.0
    %1694 = vmatprep.subr.mxu0 0.0
    %1695 = vmatpush2.msra.mxu0 0.0
    %1696 = vmatprep.subr.mxu0 0.0
    %1697 = vmatpush2.msra.mxu0 0.0
    %1698 = vmatprep.subr.mxu0 0.0
    %1699 = vmatpush2.msra.mxu0 0.0
    %1700 = vmatprep.subr.mxu0 0.0
    %1701 = vmatpush2.msra.mxu0 0.0
    %1702 = vmatprep.subr.mxu0 0.0
    %1703 = vmatpush2.msra.mxu0 0.0
    %1704 = vmatprep.subr.mxu0 0.0
    %1705 = vmatpush2.msra.mxu0 0.0
    %1706 = vmatprep.mubr.f32.mxu0 0.0
    %1707 = vmatmul.mubr.f32.gmra.mxu0 %v1635
    %v1708 = vpop.f32.mrf.mxu0
    %v1709 = vadd.f32 0.0, %v1708
    %v1710 = vpop.f32.mrf.mxu0
    %v1711 = vadd.f32 0.0, %v1710
    %1712 = vdwg.mxu0
    %1713 = vmatprep.subr.mxu0 0.0
    %1714 = vmatpush1.msra.mxu0 %v181
    %1715 = vmatprep.subr.mxu0 0.0
    %1716 = vmatpush1.msra.mxu0 %v178
    %1717 = vmatprep.subr.mxu0 0.0
    %1718 = vmatpush1.msra.mxu0 %v175
    %1719 = vmatprep.subr.mxu0 0.0
    %1720 = vmatpush1.msra.mxu0 %v172
    %1721 = vmatprep.subr.mxu0 0.0
    %1722 = vmatpush1.msra.mxu0 %v169
    %1723 = vmatprep.subr.mxu0 0.0
    %1724 = vmatpush1.msra.mxu0 %v166
    %1725 = vmatprep.subr.mxu0 0.0
    %1726 = vmatpush1.msra.mxu0 %v163
    %1727 = vmatprep.subr.mxu0 0.0
    %1728 = vmatpush1.msra.mxu0 %v160
    %1729 = vmatprep.subr.mxu0 0.0
    %1730 = vmatpush1.msra.mxu0 %v157
    %1731 = vmatprep.subr.mxu0 0.0
    %1732 = vmatpush1.msra.mxu0 %v154
    %1733 = vmatprep.subr.mxu0 0.0
    %1734 = vmatpush1.msra.mxu0 %v151
    %1735 = vmatprep.subr.mxu0 0.0
    %1736 = vmatpush1.msra.mxu0 %v148
    %1737 = vmatprep.subr.mxu0 0.0
    %1738 = vmatpush1.msra.mxu0 %v145
    %1739 = vmatprep.subr.mxu0 0.0
    %1740 = vmatpush1.msra.mxu0 %v142
    %1741 = vmatprep.subr.mxu0 0.0
    %1742 = vmatpush1.msra.mxu0 %v139
    %1743 = vmatprep.subr.mxu0 0.0
    %1744 = vmatpush1.msra.mxu0 %v136
    %1745 = vmatprep.subr.mxu0 0.0
    %1746 = vmatpush2.msra.mxu0 0.0
    %1747 = vmatprep.subr.mxu0 0.0
    %1748 = vmatpush2.msra.mxu0 0.0
    %1749 = vmatprep.subr.mxu0 0.0
    %1750 = vmatpush2.msra.mxu0 0.0
    %1751 = vmatprep.subr.mxu0 0.0
    %1752 = vmatpush2.msra.mxu0 0.0
    %1753 = vmatprep.subr.mxu0 0.0
    %1754 = vmatpush2.msra.mxu0 0.0
    %1755 = vmatprep.subr.mxu0 0.0
    %1756 = vmatpush2.msra.mxu0 0.0
    %1757 = vmatprep.subr.mxu0 0.0
    %1758 = vmatpush2.msra.mxu0 0.0
    %1759 = vmatprep.subr.mxu0 0.0
    %1760 = vmatpush2.msra.mxu0 0.0
    %1761 = vmatprep.subr.mxu0 0.0
    %1762 = vmatpush2.msra.mxu0 0.0
    %1763 = vmatprep.subr.mxu0 0.0
    %1764 = vmatpush2.msra.mxu0 0.0
    %1765 = vmatprep.subr.mxu0 0.0
    %1766 = vmatpush2.msra.mxu0 0.0
    %1767 = vmatprep.subr.mxu0 0.0
    %1768 = vmatpush2.msra.mxu0 0.0
    %1769 = vmatprep.subr.mxu0 0.0
    %1770 = vmatpush2.msra.mxu0 0.0
    %1771 = vmatprep.subr.mxu0 0.0
    %1772 = vmatpush2.msra.mxu0 0.0
    %1773 = vmatprep.subr.mxu0 0.0
    %1774 = vmatpush2.msra.mxu0 0.0
    %1775 = vmatprep.subr.mxu0 0.0
    %1776 = vmatpush2.msra.mxu0 0.0
    %1777 = vmatprep.mubr.f32.mxu0 0.0
    %1778 = vmatmul.mubr.f32.gmra.mxu0 %v1635
    %v1779 = vpop.f32.mrf.mxu0
    %v1780 = vadd.f32 0.0, %v1779
    %v1781 = vpop.f32.mrf.mxu0
    %1782 = vdwg.mxu0
    %v1783 = vadd.f32 %v1639, %v1709
    %v1784 = vxor.u32 %v1783, 2147483648
    %v1785 = vmul.f32 %v1784, 1.442695
    %v1786 = vpow.pop %v1785
    %v1787 = vadd.f32 %v1786, 1.0
    %v1788 = vrcp.pop %v1787
    %v1789 = vmul.f32 1.0, %v1788
    %v1790 = vadd.f32 %v1640, %v1711
    %v1791 = vxor.u32 %v1790, 2147483648
    %v1792 = vmul.f32 %v1791, 1.442695
    %v1793 = vpow.pop %v1792
    %v1794 = vadd.f32 %v1793, 1.0
    %v1795 = vrcp.pop %v1794
    %v1796 = vmul.f32 1.0, %v1795
    %v1797 = vadd.f32 %v1780, %v188
    %v1798 = vmul.f32 %v1789, %v1797
    %v1799 = vadd.f32 %v1641, %v1798
    %v1800 = vtanh.pop %v1799
    %v1801 = vsub.f32 1.0, %v1796
    %v1802 = vmul.f32 %v1801, %v1800
    %v1803 = vmul.f32 %v1796, %v1635
    %v1804 = vadd.f32 %v1802, %v1803
    %s1805 = scalar_lea.vmem [#allocation12], 56
    %1806 = vst [vmem:[%s1805] sm:$0xff] %v1804
    %1807 = vst [vmem:[#allocation3] sm:$0xff] %v1804
    // Predicated region
    $region46: #{tpu_custom_call.1} parent=1 // pred_check
      %p1808 = pneg %p80
    $region47: #{tpu_custom_call.1} parent=1 // pred_check_branch
      %1810 = sbr.rel (%p1808) target = $region49
    $region48: #{tpu_custom_call.1} parent=1 // pred_region
      %v1811 = vld [vmem:[#allocation3] sm:$0xff]
      %1812 = vst [vmem:[#allocation13] sm:$0xff] %v1811
    $region49: #{tpu_custom_call.1} parent=1 // pred_fallthru
      _
    // Predicated region
    $region50: #{tpu_custom_call.1} parent=1 // pred_check
      _
    $region51: #{tpu_custom_call.1} parent=1 // pred_check_branch
      %1814 = sbr.rel (0) target = $region53
    $region52: #{tpu_custom_call.1} parent=1 // pred_region
      %s1816 = ssub.s32 1024, 1024
      %1817 = vsyncadd [#allocation6], %s1816
      %s1818 = sshll.u32 [#allocation12], 4
      %s1819 = int_to_ptr.vmem [resolvable:$true] %s1818
      %1824 = dma.vmem_to_hbm [thread:$0]  %s1819, 1024, %s6, [#allocation6], 128, 128, 8
    $region53: #{tpu_custom_call.1} parent=1 // pred_fallthru
      _
    // Predicated region
    $region54: #{tpu_custom_call.1} parent=1 // pred_check
      _
    $region55: #{tpu_custom_call.1} parent=1 // pred_check_branch
      %1826 = sbr.rel (0) target = $region57
    $region56: #{tpu_custom_call.1} parent=1 // pred_region
      %s1828 = ssub.s32 128, 128
      %1829 = vsyncadd [#allocation14], %s1828
      %s1831 = sshll.u32 [#allocation13], 4
      %s1832 = int_to_ptr.vmem [resolvable:$true] %s1831
      %1834 = dma.vmem_to_hbm [thread:$0]  %s1832, 128, %s7, [#allocation14]
    $region57: #{tpu_custom_call.1} parent=1 // pred_fallthru
      _
    // Predicated region
    $region58: #{tpu_custom_call.1} parent=1 // pred_check
      _
    $region59: #{tpu_custom_call.1} parent=1 // pred_check_branch
      %1836 = sbr.rel (0) target = $region61
    $region60: #{tpu_custom_call.1} parent=1 // pred_region
      %1837 = dma.done [#allocation6], 1024
    $region61: #{tpu_custom_call.1} parent=1 // pred_fallthru
      _
    // Predicated region
    $region62: #{tpu_custom_call.1} parent=1 // pred_check
      _
    $region63: #{tpu_custom_call.1} parent=1 // pred_check_branch
      %1839 = sbr.rel (0) target = $region65
    $region64: #{tpu_custom_call.1} parent=1 // pred_region
      %1840 = dma.done [#allocation14], 128
    $region65: #{tpu_custom_call.1} parent=1 // pred_fallthru
      _
    %1841 = vsyncpa [#allocation5], 1
    %1842 = vsyncpa [#allocation8], 1
    %1843 = vsyncpa [#allocation11], 1
    %1844 = vsyncpa [#allocation6], 1
    %1845 = vsyncpa [#allocation14], 1

// kernel: tpu_custom_call.1
$region0: #{tpu_custom_call.1}
  #allocation0 [shape = 'u32[]', space=smem, size = 0x4, offset = 0x4, fixed_abs, tag = 'smem constant byte address 0x4 - core index']
  #allocation1 [shape = 'u32[144,128]{1,0:T(1,128)}', space=vmem, size = 0x12000, scoped, tag = 'internal scratch']
  #allocation2 [shape = 'f32[16,8,384]{2,1,0:T(8,128)}', space=vmem, size = 0x30000, scoped, tag = 'scratch operand']
  #allocation3 [shape = 'f32[8,128]{1,0:T(8,128)}', space=vmem, size = 0x1000, scoped, tag = 'scratch operand']
  %s0 = inlined_call_operand.hbm [shape: f32[8,128], index: 0, kind: input, shape index: {}]
  %s1 = inlined_call_operand.hbm [shape: f32[8,8,128], index: 1, kind: input, shape index: {}]
  %s2 = inlined_call_operand.hbm [shape: f32[128,384], index: 2, kind: input, shape index: {}]
  %s3 = inlined_call_operand.hbm [shape: f32[128,384], index: 3, kind: input, shape index: {}]
  %s4 = inlined_call_operand.vmem [shape: f32[1,384], index: 4, kind: input, shape index: {}]
  %s5 = inlined_call_operand.vmem [shape: f32[1,128], index: 5, kind: input, shape index: {}]
  %s6 = inlined_call_operand.hbm [shape: f32[8,8,128], index: 6, kind: output, shape index: {0}]
  %s7 = inlined_call_operand.hbm [shape: f32[8,128], index: 7, kind: output, shape index: {1}]
  %8 = xla_tuple %s6, %s7
  %s9 = sld [smem:[#allocation0]]
  $region66: #{tpu_custom_call.1} parent=0
    _
  %s11 = ssub.s32 1, %s9
  %s12 = scalar_select 0, %s11, %s9
  $region1: #{tpu_custom_call.1} parent=0
    #allocation4 [shape = 'u8[4096]{0}', space=vmem, size = 0x1000, scoped, tag = 'input window, operand 0, single buffered']
    #allocation5 [shape = 's32[1]{0}', space=sflag, size = 0x4, scoped, tag = 'scoped memory for tpu_custom_call.1']
    #allocation6 [shape = 's32[1]{0}', space=sflag, size = 0x4, scoped, tag = 'scoped memory for tpu_custom_call.1']
    #allocation7 [shape = 'u8[32768]{0}', space=vmem, size = 0x8000, scoped, tag = 'input window, operand 1, single buffered']
    #allocation8 [shape = 's32[1]{0}', space=sflag, size = 0x4, scoped, tag = 'scoped memory for tpu_custom_call.1']
    #allocation9 [shape = 'u8[196608]{0}', space=vmem, size = 0x30000, scoped, tag = 'input window, operand 2, single buffered']
    #allocation10 [shape = 'u8[196608]{0}', space=vmem, size = 0x30000, scoped, tag = 'input window, operand 3, single buffered']
    #allocation11 [shape = 's32[1]{0}', space=sflag, size = 0x4, scoped, tag = 'scoped memory for tpu_custom_call.1']
    #allocation12 [shape = 'u8[32768]{0}', space=vmem, size = 0x8000, scoped, tag = 'output window, operand 0, single buffered']
    #allocation13 [shape = 'u8[4096]{0}', space=vmem, size = 0x1000, scoped, tag = 'output window, operand 1, single buffered']
    #allocation14 [shape = 's32[1]{0}', space=sflag, size = 0x4, scoped, tag = 'scoped memory for tpu_custom_call.1']
    %13 = vsyncpa [#allocation5], 0
    %14 = vsyncpa [#allocation8], 0
    %15 = vsyncpa [#allocation11], 0
    %16 = vsyncpa [#allocation6], 0
    %17 = vsyncpa [#allocation14], 0
    // Predicated region
    $region2: #{tpu_custom_call.1} parent=1 // pred_check
      _
    $region3: #{tpu_custom_call.1} parent=1 // pred_check_branch
      %19 = sbr.rel (0) target = $region5
    $region4: #{tpu_custom_call.1} parent=1 // pred_region
      %s21 = ssub.s32 128, 128
      %22 = vsyncadd [#allocation5], %s21
      %s24 = sshll.u32 [#allocation4], 4
      %s25 = int_to_ptr.vmem [resolvable:$true] %s24
      %27 = dma.hbm_to_vmem [thread:$0]  %s0, 128, %s25, [#allocation5]
    $region5: #{tpu_custom_call.1} parent=1 // pred_fallthru
      _
    // Predicated region
    $region6: #{tpu_custom_call.1} parent=1 // pred_check
      _
    $region7: #{tpu_custom_call.1} parent=1 // pred_check_branch
      %29 = sbr.rel (0) target = $region9
    $region8: #{tpu_custom_call.1} parent=1 // pred_region
      %s31 = ssub.s32 1024, 1024
      %32 = vsyncadd [#allocation8], %s31
      %s33 = sshll.u32 [#allocation7], 4
      %s34 = int_to_ptr.vmem [resolvable:$true] %s33
      %39 = dma.hbm_to_vmem [thread:$0]  %s1, 1024, %s34, [#allocation8], 128, 128, 8
    $region9: #{tpu_custom_call.1} parent=1 // pred_fallthru
      _
    // Predicated region
    $region10: #{tpu_custom_call.1} parent=1 // pred_check
      _
    $region11: #{tpu_custom_call.1} parent=1 // pred_check_branch
      %41 = sbr.rel (0) target = $region13
    $region12: #{tpu_custom_call.1} parent=1 // pred_region
      %s43 = ssub.s32 6144, 6144
      %44 = vsyncadd [#allocation8], %s43
      %s45 = sshll.u32 [#allocation9], 4
      %s46 = int_to_ptr.vmem [resolvable:$true] %s45
      %51 = dma.hbm_to_vmem [thread:$0]  %s2, 6144, %s46, [#allocation8], 384, 384, 24
    $region13: #{tpu_custom_call.1} parent=1 // pred_fallthru
      _
    // Predicated region
    $region14: #{tpu_custom_call.1} parent=1 // pred_check
      _
    $region15: #{tpu_custom_call.1} parent=1 // pred_check_branch
      %53 = sbr.rel (0) target = $region17
    $region16: #{tpu_custom_call.1} parent=1 // pred_region
      %s55 = ssub.s32 6144, 6144
      %56 = vsyncadd [#allocation11], %s55
      %s57 = sshll.u32 [#allocation10], 4
      %s58 = int_to_ptr.vmem [resolvable:$true] %s57
      %63 = dma.hbm_to_vmem [thread:$0]  %s3, 6144, %s58, [#allocation11], 384, 384, 24
    $region17: #{tpu_custom_call.1} parent=1 // pred_fallthru
      _
    // Predicated region
    $region18: #{tpu_custom_call.1} parent=1 // pred_check
      _
    $region19: #{tpu_custom_call.1} parent=1 // pred_check_branch
      %65 = sbr.rel (0) target = $region21
    $region20: #{tpu_custom_call.1} parent=1 // pred_region
      _
    $region21: #{tpu_custom_call.1} parent=1 // pred_fallthru
      _
    // Predicated region
    $region22: #{tpu_custom_call.1} parent=1 // pred_check
      _
    $region23: #{tpu_custom_call.1} parent=1 // pred_check_branch
      %67 = sbr.rel (0) target = $region25
    $region24: #{tpu_custom_call.1} parent=1 // pred_region
      _
    $region25: #{tpu_custom_call.1} parent=1 // pred_fallthru
      _
    // Predicated region
    $region26: #{tpu_custom_call.1} parent=1 // pred_check
      _
    $region27: #{tpu_custom_call.1} parent=1 // pred_check_branch
      %69 = sbr.rel (0) target = $region29
    $region28: #{tpu_custom_call.1} parent=1 // pred_region
      %70 = dma.done [#allocation5], 128
    $region29: #{tpu_custom_call.1} parent=1 // pred_fallthru
      _
    // Predicated region
    $region30: #{tpu_custom_call.1} parent=1 // pred_check
      _
    $region31: #{tpu_custom_call.1} parent=1 // pred_check_branch
      %72 = sbr.rel (0) target = $region33
    $region32: #{tpu_custom_call.1} parent=1 // pred_region
      %73 = dma.done [#allocation8], 1024
    $region33: #{tpu_custom_call.1} parent=1 // pred_fallthru
      _
    // Predicated region
    $region34: #{tpu_custom_call.1} parent=1 // pred_check
      _
    $region35: #{tpu_custom_call.1} parent=1 // pred_check_branch
      %75 = sbr.rel (0) target = $region37
    $region36: #{tpu_custom_call.1} parent=1 // pred_region
      %76 = dma.done [#allocation8], 6144
    $region37: #{tpu_custom_call.1} parent=1 // pred_fallthru
      _
    // Predicated region
    $region38: #{tpu_custom_call.1} parent=1 // pred_check
      _
    $region39: #{tpu_custom_call.1} parent=1 // pred_check_branch
      %78 = sbr.rel (0) target = $region41
    $region40: #{tpu_custom_call.1} parent=1 // pred_region
      %79 = dma.done [#allocation11], 6144
    $region41: #{tpu_custom_call.1} parent=1 // pred_fallthru
      _
    %p80 = scmp.eq.s32.totalorder 0, 0
    // Predicated region
    $region42: #{tpu_custom_call.1} parent=1 // pred_check
      %p81 = pneg %p80
    $region43: #{tpu_custom_call.1} parent=1 // pred_check_branch
      %83 = sbr.rel (%p81) target = $region45
    $region44: #{tpu_custom_call.1} parent=1 // pred_region
      %v84 = vld [vmem:[#allocation4] sm:$0xff]
      %85 = vst [vmem:[#allocation3] sm:$0xff] %v84
    $region45: #{tpu_custom_call.1} parent=1 // pred_fallthru
      _
    %v86 = vld [vmem:[#allocation9] sm:$0xff]
    %v87 = vld [vmem:[#allocation9 + $0x8] sm:$0xff]
    %v88 = vld [vmem:[#allocation9 + $0x10] sm:$0xff]
    %v89 = vld [vmem:[#allocation9 + $0x18] sm:$0xff]
    %v90 = vld [vmem:[#allocation9 + $0x20] sm:$0xff]
    %v91 = vld [vmem:[#allocation9 + $0x28] sm:$0xff]
    %v92 = vld [vmem:[#allocation9 + $0x30] sm:$0xff]
    %v93 = vld [vmem:[#allocation9 + $0x38] sm:$0xff]
    %v94 = vld [vmem:[#allocation9 + $0x40] sm:$0xff]
    %v95 = vld [vmem:[#allocation9 + $0x48] sm:$0xff]
    %v96 = vld [vmem:[#allocation9 + $0x50] sm:$0xff]
    %v97 = vld [vmem:[#allocation9 + $0x58] sm:$0xff]
    %v98 = vld [vmem:[#allocation9 + $0x60] sm:$0xff]
    %v99 = vld [vmem:[#allocation9 + $0x68] sm:$0xff]
    %v100 = vld [vmem:[#allocation9 + $0x70] sm:$0xff]
    %v101 = vld [vmem:[#allocation9 + $0x78] sm:$0xff]
    %v102 = vld [vmem:[#allocation9 + $0x80] sm:$0xff]
    %v103 = vld [vmem:[#allocation9 + $0x88] sm:$0xff]
    %v104 = vld [vmem:[#allocation9 + $0x90] sm:$0xff]
    %v105 = vld [vmem:[#allocation9 + $0x98] sm:$0xff]
    %v106 = vld [vmem:[#allocation9 + $0xa0] sm:$0xff]
    %v107 = vld [vmem:[#allocation9 + $0xa8] sm:$0xff]
    %v108 = vld [vmem:[#allocation9 + $0xb0] sm:$0xff]
    %v109 = vld [vmem:[#allocation9 + $0xb8] sm:$0xff]
    %v110 = vld [vmem:[#allocation9 + $0xc0] sm:$0xff]
    %v111 = vld [vmem:[#allocation9 + $0xc8] sm:$0xff]
    %v112 = vld [vmem:[#allocation9 + $0xd0] sm:$0xff]
    %v113 = vld [vmem:[#allocation9 + $0xd8] sm:$0xff]
    %v114 = vld [vmem:[#allocation9 + $0xe0] sm:$0xff]
    %v115 = vld [vmem:[#allocation9 + $0xe8] sm:$0xff]
    %v116 = vld [vmem:[#allocation9 + $0xf0] sm:$0xff]
    %v117 = vld [vmem:[#allocation9 + $0xf8] sm:$0xff]
    %v118 = vld [vmem:[#allocation9 + $0x100] sm:$0xff]
    %v119 = vld [vmem:[#allocation9 + $0x108] sm:$0xff]
    %v120 = vld [vmem:[#allocation9 + $0x110] sm:$0xff]
    %v121 = vld [vmem:[#allocation9 + $0x118] sm:$0xff]
    %v122 = vld [vmem:[#allocation9 + $0x120] sm:$0xff]
    %v123 = vld [vmem:[#allocation9 + $0x128] sm:$0xff]
    %v124 = vld [vmem:[#allocation9 + $0x130] sm:$0xff]
    %v125 = vld [vmem:[#allocation9 + $0x138] sm:$0xff]
    %v126 = vld [vmem:[#allocation9 + $0x140] sm:$0xff]
    %v127 = vld [vmem:[#allocation9 + $0x148] sm:$0xff]
    %v128 = vld [vmem:[#allocation9 + $0x150] sm:$0xff]
    %v129 = vld [vmem:[#allocation9 + $0x158] sm:$0xff]
    %v130 = vld [vmem:[#allocation9 + $0x160] sm:$0xff]
    %v131 = vld [vmem:[#allocation9 + $0x168] sm:$0xff]
    %v132 = vld [vmem:[#allocation9 + $0x170] sm:$0xff]
    %v133 = vld [vmem:[#allocation9 + $0x178] sm:$0xff]
    %v134 = vld [vmem:[#allocation10] sm:$0xff]
    %v135 = vld [vmem:[#allocation10 + $0x8] sm:$0xff]
    %v136 = vld [vmem:[#allocation10 + $0x10] sm:$0xff]
    %v137 = vld [vmem:[#allocation10 + $0x18] sm:$0xff]
    %v138 = vld [vmem:[#allocation10 + $0x20] sm:$0xff]
    %v139 = vld [vmem:[#allocation10 + $0x28] sm:$0xff]
    %v140 = vld [vmem:[#allocation10 + $0x30] sm:$0xff]
    %v141 = vld [vmem:[#allocation10 + $0x38] sm:$0xff]
    %v142 = vld [vmem:[#allocation10 + $0x40] sm:$0xff]
    %v143 = vld [vmem:[#allocation10 + $0x48] sm:$0xff]
    %v144 = vld [vmem:[#allocation10 + $0x50] sm:$0xff]
    %v145 = vld [vmem:[#allocation10 + $0x58] sm:$0xff]
    %v146 = vld [vmem:[#allocation10 + $0x60] sm:$0xff]
    %v147 = vld [vmem:[#allocation10 + $0x68] sm:$0xff]
    %v148 = vld [vmem:[#allocation10 + $0x70] sm:$0xff]
    %v149 = vld [vmem:[#allocation10 + $0x78] sm:$0xff]
    %v150 = vld [vmem:[#allocation10 + $0x80] sm:$0xff]
    %v151 = vld [vmem:[#allocation10 + $0x88] sm:$0xff]
    %v152 = vld [vmem:[#allocation10 + $0x90] sm:$0xff]
    %v153 = vld [vmem:[#allocation10 + $0x98] sm:$0xff]
    %v154 = vld [vmem:[#allocation10 + $0xa0] sm:$0xff]
    %v155 = vld [vmem:[#allocation10 + $0xa8] sm:$0xff]
    %v156 = vld [vmem:[#allocation10 + $0xb0] sm:$0xff]
    %v157 = vld [vmem:[#allocation10 + $0xb8] sm:$0xff]
    %v158 = vld [vmem:[#allocation10 + $0xc0] sm:$0xff]
    %v159 = vld [vmem:[#allocation10 + $0xc8] sm:$0xff]
    %v160 = vld [vmem:[#allocation10 + $0xd0] sm:$0xff]
    %v161 = vld [vmem:[#allocation10 + $0xd8] sm:$0xff]
    %v162 = vld [vmem:[#allocation10 + $0xe0] sm:$0xff]
    %v163 = vld [vmem:[#allocation10 + $0xe8] sm:$0xff]
    %v164 = vld [vmem:[#allocation10 + $0xf0] sm:$0xff]
    %v165 = vld [vmem:[#allocation10 + $0xf8] sm:$0xff]
    %v166 = vld [vmem:[#allocation10 + $0x100] sm:$0xff]
    %v167 = vld [vmem:[#allocation10 + $0x108] sm:$0xff]
    %v168 = vld [vmem:[#allocation10 + $0x110] sm:$0xff]
    %v169 = vld [vmem:[#allocation10 + $0x118] sm:$0xff]
    %v170 = vld [vmem:[#allocation10 + $0x120] sm:$0xff]
    %v171 = vld [vmem:[#allocation10 + $0x128] sm:$0xff]
    %v172 = vld [vmem:[#allocation10 + $0x130] sm:$0xff]
    %v173 = vld [vmem:[#allocation10 + $0x138] sm:$0xff]
    %v174 = vld [vmem:[#allocation10 + $0x140] sm:$0xff]
    %v175 = vld [vmem:[#allocation10 + $0x148] sm:$0xff]
    %v176 = vld [vmem:[#allocation10 + $0x150] sm:$0xff]
    %v177 = vld [vmem:[#allocation10 + $0x158] sm:$0xff]
    %v178 = vld [vmem:[#allocation10 + $0x160] sm:$0xff]
    %v179 = vld [vmem:[#allocation10 + $0x168] sm:$0xff]
    %v180 = vld [vmem:[#allocation10 + $0x170] sm:$0xff]
    %v181 = vld [vmem:[#allocation10 + $0x178] sm:$0xff]
    %v182 = vld [vmem:[%s4] sm:$0x7]
    %v183 = vld [vmem:[%s5] sm:$0x1]
    %v185 = vlaneseq
    %v186 = vshrl.u32 %v185, 7
    %v187 = vsub.s32 0, %v186
    %v188 = vrot.slane %v183, %v187
    %v190 = vld [vmem:[#allocation7] sm:$0xff]
    %v191 = vld [vmem:[#allocation7 + $0x8] sm:$0xff]
    %v192 = vld [vmem:[#allocation7 + $0x10] sm:$0xff]
    %v193 = vld [vmem:[#allocation7 + $0x18] sm:$0xff]
    %v194 = vld [vmem:[#allocation7 + $0x20] sm:$0xff]
    %v195 = vld [vmem:[#allocation7 + $0x28] sm:$0xff]
    %v196 = vld [vmem:[#allocation7 + $0x30] sm:$0xff]
    %v197 = vld [vmem:[#allocation7 + $0x38] sm:$0xff]
    %v199 = vlaneseq
    %v200 = vshrl.u32 %v199, 7
    %v201 = vsub.s32 0, %v200
    %v202 = vrot.slane %v182, %v201
    %v203 = vlaneseq
    %v204 = vshrl.u32 %v203, 7
    %v205 = vsub.s32 1, %v204
    %v206 = vrot.slane %v182, %v205
    %v207 = vlaneseq
    %v208 = vshrl.u32 %v207, 7
    %v209 = vsub.s32 2, %v208
    %v210 = vrot.slane %v182, %v209
    %214 = vmatprep.subr.mxu0 %v132
    %215 = vmatpush1.msra.mxu0 %v131
    %216 = vmatprep.subr.mxu0 %v129
    %217 = vmatpush1.msra.mxu0 %v128
    %218 = vmatprep.subr.mxu0 %v126
    %219 = vmatpush1.msra.mxu0 %v125
    %220 = vmatprep.subr.mxu0 %v123
    %221 = vmatpush1.msra.mxu0 %v122
    %222 = vmatprep.subr.mxu0 %v120
    %223 = vmatpush1.msra.mxu0 %v119
    %224 = vmatprep.subr.mxu0 %v117
    %225 = vmatpush1.msra.mxu0 %v116
    %226 = vmatprep.subr.mxu0 %v114
    %227 = vmatpush1.msra.mxu0 %v113
    %228 = vmatprep.subr.mxu0 %v111
    %229 = vmatpush1.msra.mxu0 %v110
    %230 = vmatprep.subr.mxu0 %v108
    %231 = vmatpush1.msra.mxu0 %v107
    %232 = vmatprep.subr.mxu0 %v105
    %233 = vmatpush1.msra.mxu0 %v104
    %234 = vmatprep.subr.mxu0 %v102
    %235 = vmatpush1.msra.mxu0 %v101
    %236 = vmatprep.subr.mxu0 %v99
    %237 = vmatpush1.msra.mxu0 %v98
    %238 = vmatprep.subr.mxu0 %v96
    %239 = vmatpush1.msra.mxu0 %v95
    %240 = vmatprep.subr.mxu0 %v93
    %241 = vmatpush1.msra.mxu0 %v92
    %242 = vmatprep.subr.mxu0 %v90
    %243 = vmatpush1.msra.mxu0 %v89
    %244 = vmatprep.subr.mxu0 %v87
    %245 = vmatpush1.msra.mxu0 %v86
    %246 = vmatprep.subr.mxu0 0.0
    %247 = vmatpush2.msra.mxu0 0.0
    %248 = vmatprep.subr.mxu0 0.0
    %249 = vmatpush2.msra.mxu0 0.0
    %250 = vmatprep.subr.mxu0 0.0
    %251 = vmatpush2.msra.mxu0 0.0
    %252 = vmatprep.subr.mxu0 0.0
    %253 = vmatpush2.msra.mxu0 0.0
    %254 = vmatprep.subr.mxu0 0.0
    %255 = vmatpush2.msra.mxu0 0.0
    %256 = vmatprep.subr.mxu0 0.0
    %257 = vmatpush2.msra.mxu0 0.0
    %258 = vmatprep.subr.mxu0 0.0
    %259 = vmatpush2.msra.mxu0 0.0
    %260 = vmatprep.subr.mxu0 0.0
    %261 = vmatpush2.msra.mxu0 0.0
    %262 = vmatprep.subr.mxu0 0.0
    %263 = vmatpush2.msra.mxu0 0.0
    %264 = vmatprep.subr.mxu0 0.0
    %265 = vmatpush2.msra.mxu0 0.0
    %266 = vmatprep.subr.mxu0 0.0
    %267 = vmatpush2.msra.mxu0 0.0
    %268 = vmatprep.subr.mxu0 0.0
    %269 = vmatpush2.msra.mxu0 0.0
    %270 = vmatprep.subr.mxu0 0.0
    %271 = vmatpush2.msra.mxu0 0.0
    %272 = vmatprep.subr.mxu0 0.0
    %273 = vmatpush2.msra.mxu0 0.0
    %274 = vmatprep.subr.mxu0 0.0
    %275 = vmatpush2.msra.mxu0 0.0
    %276 = vmatprep.subr.mxu0 0.0
    %277 = vmatpush2.msra.mxu0 0.0
    %278 = vmatprep.mubr.f32.mxu0 0.0
    %279 = vmatmul.mubr.f32.gmra.mxu0 %v190
    %v280 = vpop.f32.mrf.mxu0
    %v281 = vadd.f32 %v202, %v280
    %v282 = vpop.f32.mrf.mxu0
    %v283 = vadd.f32 %v206, %v282
    %284 = vmatprep.mubr.f32.mxu0 0.0
    %285 = vmatmul.mubr.f32.gmra.mxu0 %v191
    %v286 = vpop.f32.mrf.mxu0
    %v287 = vadd.f32 %v202, %v286
    %v288 = vpop.f32.mrf.mxu0
    %v289 = vadd.f32 %v206, %v288
    %290 = vmatprep.mubr.f32.mxu0 0.0
    %291 = vmatmul.mubr.f32.gmra.mxu0 %v192
    %v292 = vpop.f32.mrf.mxu0
    %v293 = vadd.f32 %v202, %v292
    %v294 = vpop.f32.mrf.mxu0
    %v295 = vadd.f32 %v206, %v294
    %296 = vmatprep.mubr.f32.mxu0 0.0
    %297 = vmatmul.mubr.f32.gmra.mxu0 %v193
    %v298 = vpop.f32.mrf.mxu0
    %v299 = vadd.f32 %v202, %v298
    %v300 = vpop.f32.mrf.mxu0
    %v301 = vadd.f32 %v206, %v300
    %302 = vmatprep.mubr.f32.mxu0 0.0
    %303 = vmatmul.mubr.f32.gmra.mxu0 %v194
    %v304 = vpop.f32.mrf.mxu0
    %v305 = vadd.f32 %v202, %v304
    %v306 = vpop.f32.mrf.mxu0
    %v307 = vadd.f32 %v206, %v306
    %308 = vmatprep.mubr.f32.mxu0 0.0
    %309 = vmatmul.mubr.f32.gmra.mxu0 %v195
    %v310 = vpop.f32.mrf.mxu0
    %v311 = vadd.f32 %v202, %v310
    %v312 = vpop.f32.mrf.mxu0
    %v313 = vadd.f32 %v206, %v312
    %314 = vmatprep.mubr.f32.mxu0 0.0
    %315 = vmatmul.mubr.f32.gmra.mxu0 %v196
    %v316 = vpop.f32.mrf.mxu0
    %v317 = vadd.f32 %v202, %v316
    %v318 = vpop.f32.mrf.mxu0
    %v319 = vadd.f32 %v206, %v318
    %320 = vmatprep.mubr.f32.mxu0 0.0
    %321 = vmatmul.mubr.f32.gmra.mxu0 %v197
    %v322 = vpop.f32.mrf.mxu0
    %v323 = vadd.f32 %v202, %v322
    %v324 = vpop.f32.mrf.mxu0
    %v325 = vadd.f32 %v206, %v324
    %326 = vdwg.mxu0
    %327 = vmatprep.subr.mxu0 0.0
    %328 = vmatpush1.msra.mxu0 %v133
    %329 = vmatprep.subr.mxu0 0.0
    %330 = vmatpush1.msra.mxu0 %v130
    %331 = vmatprep.subr.mxu0 0.0
    %332 = vmatpush1.msra.mxu0 %v127
    %333 = vmatprep.subr.mxu0 0.0
    %334 = vmatpush1.msra.mxu0 %v124
    %335 = vmatprep.subr.mxu0 0.0
    %336 = vmatpush1.msra.mxu0 %v121
    %337 = vmatprep.subr.mxu0 0.0
    %338 = vmatpush1.msra.mxu0 %v118
    %339 = vmatprep.subr.mxu0 0.0
    %340 = vmatpush1.msra.mxu0 %v115
    %341 = vmatprep.subr.mxu0 0.0
    %342 = vmatpush1.msra.mxu0 %v112
    %343 = vmatprep.subr.mxu0 0.0
    %344 = vmatpush1.msra.mxu0 %v109
    %345 = vmatprep.subr.mxu0 0.0
    %346 = vmatpush1.msra.mxu0 %v106
    %347 = vmatprep.subr.mxu0 0.0
    %348 = vmatpush1.msra.mxu0 %v103
    %349 = vmatprep.subr.mxu0 0.0
    %350 = vmatpush1.msra.mxu0 %v100
    %351 = vmatprep.subr.mxu0 0.0
    %352 = vmatpush1.msra.mxu0 %v97
    %353 = vmatprep.subr.mxu0 0.0
    %354 = vmatpush1.msra.mxu0 %v94
    %355 = vmatprep.subr.mxu0 0.0
    %356 = vmatpush1.msra.mxu0 %v91
    %357 = vmatprep.subr.mxu0 0.0
    %358 = vmatpush1.msra.mxu0 %v88
    %359 = vmatprep.subr.mxu0 0.0
    %360 = vmatpush2.msra.mxu0 0.0
    %361 = vmatprep.subr.mxu0 0.0
    %362 = vmatpush2.msra.mxu0 0.0
    %363 = vmatprep.subr.mxu0 0.0
    %364 = vmatpush2.msra.mxu0 0.0
    %365 = vmatprep.subr.mxu0 0.0
    %366 = vmatpush2.msra.mxu0 0.0
    %367 = vmatprep.subr.mxu0 0.0
    %368 = vmatpush2.msra.mxu0 0.0
    %369 = vmatprep.subr.mxu0 0.0
    %370 = vmatpush2.msra.mxu0 0.0
    %371 = vmatprep.subr.mxu0 0.0
    %372 = vmatpush2.msra.mxu0 0.0
    %373 = vmatprep.subr.mxu0 0.0
    %374 = vmatpush2.msra.mxu0 0.0
    %375 = vmatprep.subr.mxu0 0.0
    %376 = vmatpush2.msra.mxu0 0.0
    %377 = vmatprep.subr.mxu0 0.0
    %378 = vmatpush2.msra.mxu0 0.0
    %379 = vmatprep.subr.mxu0 0.0
    %380 = vmatpush2.msra.mxu0 0.0
    %381 = vmatprep.subr.mxu0 0.0
    %382 = vmatpush2.msra.mxu0 0.0
    %383 = vmatprep.subr.mxu0 0.0
    %384 = vmatpush2.msra.mxu0 0.0
    %385 = vmatprep.subr.mxu0 0.0
    %386 = vmatpush2.msra.mxu0 0.0
    %387 = vmatprep.subr.mxu0 0.0
    %388 = vmatpush2.msra.mxu0 0.0
    %389 = vmatprep.subr.mxu0 0.0
    %390 = vmatpush2.msra.mxu0 0.0
    %391 = vmatprep.mubr.f32.mxu0 0.0
    %392 = vmatmul.mubr.f32.gmra.mxu0 %v190
    %v393 = vpop.f32.mrf.mxu0
    %v394 = vadd.f32 %v210, %v393
    %v395 = vpop.f32.mrf.mxu0
    %396 = vmatprep.mubr.f32.mxu0 0.0
    %397 = vmatmul.mubr.f32.gmra.mxu0 %v191
    %v398 = vpop.f32.mrf.mxu0
    %v399 = vadd.f32 %v210, %v398
    %v400 = vpop.f32.mrf.mxu0
    %401 = vmatprep.mubr.f32.mxu0 0.0
    %402 = vmatmul.mubr.f32.gmra.mxu0 %v192
    %v403 = vpop.f32.mrf.mxu0
    %v404 = vadd.f32 %v210, %v403
    %v405 = vpop.f32.mrf.mxu0
    %406 = vmatprep.mubr.f32.mxu0 0.0
    %407 = vmatmul.mubr.f32.gmra.mxu0 %v193
    %v408 = vpop.f32.mrf.mxu0
    %v409 = vadd.f32 %v210, %v408
    %v410 = vpop.f32.mrf.mxu0
    %411 = vmatprep.mubr.f32.mxu0 0.0
    %412 = vmatmul.mubr.f32.gmra.mxu0 %v194
    %v413 = vpop.f32.mrf.mxu0
    %v414 = vadd.f32 %v210, %v413
    %v415 = vpop.f32.mrf.mxu0
    %416 = vmatprep.mubr.f32.mxu0 0.0
    %417 = vmatmul.mubr.f32.gmra.mxu0 %v195
    %v418 = vpop.f32.mrf.mxu0
    %v419 = vadd.f32 %v210, %v418
    %v420 = vpop.f32.mrf.mxu0
    %421 = vmatprep.mubr.f32.mxu0 0.0
    %422 = vmatmul.mubr.f32.gmra.mxu0 %v196
    %v423 = vpop.f32.mrf.mxu0
    %v424 = vadd.f32 %v210, %v423
    %v425 = vpop.f32.mrf.mxu0
    %426 = vmatprep.mubr.f32.mxu0 0.0
    %427 = vmatmul.mubr.f32.gmra.mxu0 %v197
    %v428 = vpop.f32.mrf.mxu0
    %v429 = vadd.f32 %v210, %v428
    %v430 = vpop.f32.mrf.mxu0
    %431 = vdwg.mxu0
    %432 = vst [vmem:[#allocation2] sm:$0xff] %v281
    %433 = vst [vmem:[#allocation2 + $0x8] sm:$0xff] %v283
    %434 = vst [vmem:[#allocation2 + $0x10] sm:$0xff] %v394
    %435 = vst [vmem:[#allocation2 + $0x18] sm:$0xff] %v287
    %436 = vst [vmem:[#allocation2 + $0x20] sm:$0xff] %v289
    %437 = vst [vmem:[#allocation2 + $0x28] sm:$0xff] %v399
    %438 = vst [vmem:[#allocation2 + $0x30] sm:$0xff] %v293
    %439 = vst [vmem:[#allocation2 + $0x38] sm:$0xff] %v295
    %440 = vst [vmem:[#allocation2 + $0x40] sm:$0xff] %v404
    %441 = vst [vmem:[#allocation2 + $0x48] sm:$0xff] %v299
    %442 = vst [vmem:[#allocation2 + $0x50] sm:$0xff] %v301
    %443 = vst [vmem:[#allocation2 + $0x58] sm:$0xff] %v409
    %444 = vst [vmem:[#allocation2 + $0x60] sm:$0xff] %v305
    %445 = vst [vmem:[#allocation2 + $0x68] sm:$0xff] %v307
    %446 = vst [vmem:[#allocation2 + $0x70] sm:$0xff] %v414
    %447 = vst [vmem:[#allocation2 + $0x78] sm:$0xff] %v311
    %448 = vst [vmem:[#allocation2 + $0x80] sm:$0xff] %v313
    %449 = vst [vmem:[#allocation2 + $0x88] sm:$0xff] %v419
    %450 = vst [vmem:[#allocation2 + $0x90] sm:$0xff] %v317
    %451 = vst [vmem:[#allocation2 + $0x98] sm:$0xff] %v319
    %452 = vst [vmem:[#allocation2 + $0xa0] sm:$0xff] %v424
    %453 = vst [vmem:[#allocation2 + $0xa8] sm:$0xff] %v323
    %454 = vst [vmem:[#allocation2 + $0xb0] sm:$0xff] %v325
    %455 = vst [vmem:[#allocation2 + $0xb8] sm:$0xff] %v429
    %v456 = vld [vmem:[#allocation3] sm:$0xff]
    %v457 = vld [vmem:[#allocation2] sm:$0xff]
    %v458 = vld [vmem:[#allocation2 + $0x8] sm:$0xff]
    %v459 = vld [vmem:[#allocation2 + $0x10] sm:$0xff]
    %460 = vmatprep.subr.mxu0 %v180
    %461 = vmatpush1.msra.mxu0 %v179
    %462 = vmatprep.subr.mxu0 %v177
    %463 = vmatpush1.msra.mxu0 %v176
    %464 = vmatprep.subr.mxu0 %v174
    %465 = vmatpush1.msra.mxu0 %v173
    %466 = vmatprep.subr.mxu0 %v171
    %467 = vmatpush1.msra.mxu0 %v170
    %468 = vmatprep.subr.mxu0 %v168
    %469 = vmatpush1.msra.mxu0 %v167
    %470 = vmatprep.subr.mxu0 %v165
    %471 = vmatpush1.msra.mxu0 %v164
    %472 = vmatprep.subr.mxu0 %v162
    %473 = vmatpush1.msra.mxu0 %v161
    %474 = vmatprep.subr.mxu0 %v159
    %475 = vmatpush1.msra.mxu0 %v158
    %476 = vmatprep.subr.mxu0 %v156
    %477 = vmatpush1.msra.mxu0 %v155
    %478 = vmatprep.subr.mxu0 %v153
    %479 = vmatpush1.msra.mxu0 %v152
    %480 = vmatprep.subr.mxu0 %v150
    %481 = vmatpush1.msra.mxu0 %v149
    %482 = vmatprep.subr.mxu0 %v147
    %483 = vmatpush1.msra.mxu0 %v146
    %484 = vmatprep.subr.mxu0 %v144
    %485 = vmatpush1.msra.mxu0 %v143
    %486 = vmatprep.subr.mxu0 %v141
    %487 = vmatpush1.msra.mxu0 %v140
    %488 = vmatprep.subr.mxu0 %v138
    %489 = vmatpush1.msra.mxu0 %v137
    %490 = vmatprep.subr.mxu0 %v135
    %491 = vmatpush1.msra.mxu0 %v134
    %492 = vmatprep.subr.mxu0 0.0
    %493 = vmatpush2.msra.mxu0 0.0
    %494 = vmatprep.subr.mxu0 0.0
    %495 = vmatpush2.msra.mxu0 0.0
    %496 = vmatprep.subr.mxu0 0.0
    %497 = vmatpush2.msra.mxu0 0.0
    %498 = vmatprep.subr.mxu0 0.0
    %499 = vmatpush2.msra.mxu0 0.0
    %500 = vmatprep.subr.mxu0 0.0
    %501 = vmatpush2.msra.mxu0 0.0
    %502 = vmatprep.subr.mxu0 0.0
    %503 = vmatpush2.msra.mxu0 0.0
    %504 = vmatprep.subr.mxu0 0.0
    %505 = vmatpush2.msra.mxu0 0.0
    %506 = vmatprep.subr.mxu0 0.0
    %507 = vmatpush2.msra.mxu0 0.0
    %508 = vmatprep.subr.mxu0 0.0
    %509 = vmatpush2.msra.mxu0 0.0
    %510 = vmatprep.subr.mxu0 0.0
    %511 = vmatpush2.msra.mxu0 0.0
    %512 = vmatprep.subr.mxu0 0.0
    %513 = vmatpush2.msra.mxu0 0.0
    %514 = vmatprep.subr.mxu0 0.0
    %515 = vmatpush2.msra.mxu0 0.0
    %516 = vmatprep.subr.mxu0 0.0
    %517 = vmatpush2.msra.mxu0 0.0
    %518 = vmatprep.subr.mxu0 0.0
    %519 = vmatpush2.msra.mxu0 0.0
    %520 = vmatprep.subr.mxu0 0.0
    %521 = vmatpush2.msra.mxu0 0.0
    %522 = vmatprep.subr.mxu0 0.0
    %523 = vmatpush2.msra.mxu0 0.0
    %524 = vmatprep.mubr.f32.mxu0 0.0
    %525 = vmatmul.mubr.f32.gmra.mxu0 %v456
    %v526 = vpop.f32.mrf.mxu0
    %v527 = vadd.f32 0.0, %v526
    %v528 = vpop.f32.mrf.mxu0
    %v529 = vadd.f32 0.0, %v528
    %530 = vdwg.mxu0
    %531 = vmatprep.subr.mxu0 0.0
    %532 = vmatpush1.msra.mxu0 %v181
    %533 = vmatprep.subr.mxu0 0.0
    %534 = vmatpush1.msra.mxu0 %v178
    %535 = vmatprep.subr.mxu0 0.0
    %536 = vmatpush1.msra.mxu0 %v175
    %537 = vmatprep.subr.mxu0 0.0
    %538 = vmatpush1.msra.mxu0 %v172
    %539 = vmatprep.subr.mxu0 0.0
    %540 = vmatpush1.msra.mxu0 %v169
    %541 = vmatprep.subr.mxu0 0.0
    %542 = vmatpush1.msra.mxu0 %v166
    %543 = vmatprep.subr.mxu0 0.0
    %544 = vmatpush1.msra.mxu0 %v163
    %545 = vmatprep.subr.mxu0 0.0
    %546 = vmatpush1.msra.mxu0 %v160
    %547 = vmatprep.subr.mxu0 0.0
    %548 = vmatpush1.msra.mxu0 %v157
    %549 = vmatprep.subr.mxu0 0.0
    %550 = vmatpush1.msra.mxu0 %v154
    %551 = vmatprep.subr.mxu0 0.0
    %552 = vmatpush1.msra.mxu0 %v151
    %553 = vmatprep.subr.mxu0 0.0
    %554 = vmatpush1.msra.mxu0 %v148
    %555 = vmatprep.subr.mxu0 0.0
    %556 = vmatpush1.msra.mxu0 %v145
    %557 = vmatprep.subr.mxu0 0.0
    %558 = vmatpush1.msra.mxu0 %v142
    %559 = vmatprep.subr.mxu0 0.0
    %560 = vmatpush1.msra.mxu0 %v139
    %561 = vmatprep.subr.mxu0 0.0
    %562 = vmatpush1.msra.mxu0 %v136
    %563 = vmatprep.subr.mxu0 0.0
    %564 = vmatpush2.msra.mxu0 0.0
    %565 = vmatprep.subr.mxu0 0.0
    %566 = vmatpush2.msra.mxu0 0.0
    %567 = vmatprep.subr.mxu0 0.0
    %568 = vmatpush2.msra.mxu0 0.0
    %569 = vmatprep.subr.mxu0 0.0
    %570 = vmatpush2.msra.mxu0 0.0
    %571 = vmatprep.subr.mxu0 0.0
    %572 = vmatpush2.msra.mxu0 0.0
    %573 = vmatprep.subr.mxu0 0.0
    %574 = vmatpush2.msra.mxu0 0.0
    %575 = vmatprep.subr.mxu0 0.0
    %576 = vmatpush2.msra.mxu0 0.0
    %577 = vmatprep.subr.mxu0 0.0
    %578 = vmatpush2.msra.mxu0 0.0
    %579 = vmatprep.subr.mxu0 0.0
    %580 = vmatpush2.msra.mxu0 0.0
    %581 = vmatprep.subr.mxu0 0.0
    %582 = vmatpush2.msra.mxu0 0.0
    %583 = vmatprep.subr.mxu0 0.0
    %584 = vmatpush2.msra.mxu0 0.0
    %585 = vmatprep.subr.mxu0 0.0
    %586 = vmatpush2.msra.mxu0 0.0
    %587 = vmatprep.subr.mxu0 0.0
    %588 = vmatpush2.msra.mxu0 0.0
    %589 = vmatprep.subr.mxu0 0.0
    %590 = vmatpush2.msra.mxu0 0.0
    %591 = vmatprep.subr.mxu0 0.0
    %592 = vmatpush2.msra.mxu0 0.0
    %593 = vmatprep.subr.mxu0 0.0
    %594 = vmatpush2.msra.mxu0 0.0
    %595 = vmatprep.mubr.f32.mxu0 0.0
    %596 = vmatmul.mubr.f32.gmra.mxu0 %v456
    %v597 = vpop.f32.mrf.mxu0
    %v598 = vadd.f32 0.0, %v597
    %v599 = vpop.f32.mrf.mxu0
    %600 = vdwg.mxu0
    %v601 = vadd.f32 %v457, %v527
    %v602 = vxor.u32 %v601, 2147483648
    %v603 = vmul.f32 %v602, 1.442695
    %v604 = vpow.pop %v603
    %v605 = vadd.f32 %v604, 1.0
    %v606 = vrcp.pop %v605
    %v607 = vmul.f32 1.0, %v606
    %v608 = vadd.f32 %v458, %v529
    %v609 = vxor.u32 %v608, 2147483648
    %v610 = vmul.f32 %v609, 1.442695
    %v611 = vpow.pop %v610
    %v612 = vadd.f32 %v611, 1.0
    %v613 = vrcp.pop %v612
    %v614 = vmul.f32 1.0, %v613
    %v615 = vadd.f32 %v598, %v188
    %v616 = vmul.f32 %v607, %v615
    %v617 = vadd.f32 %v459, %v616
    %v618 = vtanh.pop %v617
    %v619 = vsub.f32 1.0, %v614
    %v620 = vmul.f32 %v619, %v618
    %v621 = vmul.f32 %v614, %v456
    %v622 = vadd.f32 %v620, %v621
    %623 = vst [vmem:[#allocation12] sm:$0xff] %v622
    %s624 = scalar_lea.vmem [#allocation2], 24
    %v625 = vld [vmem:[%s624] sm:$0xff]
    %v626 = vld [vmem:[%s624 + $0x8] sm:$0xff]
    %v627 = vld [vmem:[%s624 + $0x10] sm:$0xff]
    %628 = vmatprep.subr.mxu0 %v180
    %629 = vmatpush1.msra.mxu0 %v179
    %630 = vmatprep.subr.mxu0 %v177
    %631 = vmatpush1.msra.mxu0 %v176
    %632 = vmatprep.subr.mxu0 %v174
    %633 = vmatpush1.msra.mxu0 %v173
    %634 = vmatprep.subr.mxu0 %v171
    %635 = vmatpush1.msra.mxu0 %v170
    %636 = vmatprep.subr.mxu0 %v168
    %637 = vmatpush1.msra.mxu0 %v167
    %638 = vmatprep.subr.mxu0 %v165
    %639 = vmatpush1.msra.mxu0 %v164
    %640 = vmatprep.subr.mxu0 %v162
    %641 = vmatpush1.msra.mxu0 %v161
    %642 = vmatprep.subr.mxu0 %v159
    %643 = vmatpush1.msra.mxu0 %v158
    %644 = vmatprep.subr.mxu0 %v156
    %645 = vmatpush1.msra.mxu0 %v155
    %646 = vmatprep.subr.mxu0 %v153
    %647 = vmatpush1.msra.mxu0 %v152
    %648 = vmatprep.subr.mxu0 %v150
    %649 = vmatpush1.msra.mxu0 %v149
    %650 = vmatprep.subr.mxu0 %v147
    %651 = vmatpush1.msra.mxu0 %v146
    %652 = vmatprep.subr.mxu0 %v144
    %653 = vmatpush1.msra.mxu0 %v143
    %654 = vmatprep.subr.mxu0 %v141
    %655 = vmatpush1.msra.mxu0 %v140
    %656 = vmatprep.subr.mxu0 %v138
    %657 = vmatpush1.msra.mxu0 %v137
    %658 = vmatprep.subr.mxu0 %v135
    %659 = vmatpush1.msra.mxu0 %v134
    %660 = vmatprep.subr.mxu0 0.0
    %661 = vmatpush2.msra.mxu0 0.0
    %662 = vmatprep.subr.mxu0 0.0
    %663 = vmatpush2.msra.mxu0 0.0
    %664 = vmatprep.subr.mxu0 0.0
    %665 = vmatpush2.msra.mxu0 0.0
    %666 = vmatprep.subr.mxu0 0.0
    %667 = vmatpush2.msra.mxu0 0.0
    %668 = vmatprep.subr.mxu0 0.0
    %669 = vmatpush2.msra.mxu0 0.0
    %670 = vmatprep.subr.mxu0 0.0
    %671 = vmatpush2.msra.mxu0 0.0
    %672 = vmatprep.subr.mxu0 0.0
    %673 = vmatpush2.msra.mxu0 0.0
    %674 = vmatprep.subr.mxu0 0.0
    %675 = vmatpush2.msra.mxu0 0.0
    %676 = vmatprep.subr.mxu0 0.0
    %677 = vmatpush2.msra.mxu0 0.0
    %678 = vmatprep.subr.mxu0 0.0
    %679 = vmatpush2.msra.mxu0 0.0
    %680 = vmatprep.subr.mxu0 0.0
    %681 = vmatpush2.msra.mxu0 0.0
    %682 = vmatprep.subr.mxu0 0.0
    %683 = vmatpush2.msra.mxu0 0.0
    %684 = vmatprep.subr.mxu0 0.0
    %685 = vmatpush2.msra.mxu0 0.0
    %686 = vmatprep.subr.mxu0 0.0
    %687 = vmatpush2.msra.mxu0 0.0
    %688 = vmatprep.subr.mxu0 0.0
    %689 = vmatpush2.msra.mxu0 0.0
    %690 = vmatprep.subr.mxu0 0.0
    %691 = vmatpush2.msra.mxu0 0.0
    %692 = vmatprep.mubr.f32.mxu0 0.0
    %693 = vmatmul.mubr.f32.gmra.mxu0 %v622
    %v694 = vpop.f32.mrf.mxu0
    %v695 = vadd.f32 0.0, %v694
    %v696 = vpop.f32.mrf.mxu0
    %v697 = vadd.f32 0.0, %v696
    %698 = vdwg.mxu0
    %699 = vmatprep.subr.mxu0 0.0
    %700 = vmatpush1.msra.mxu0 %v181
    %701 = vmatprep.subr.mxu0 0.0
    %702 = vmatpush1.msra.mxu0 %v178
    %703 = vmatprep.subr.mxu0 0.0
    %704 = vmatpush1.msra.mxu0 %v175
    %705 = vmatprep.subr.mxu0 0.0
    %706 = vmatpush1.msra.mxu0 %v172
    %707 = vmatprep.subr.mxu0 0.0
    %708 = vmatpush1.msra.mxu0 %v169
    %709 = vmatprep.subr.mxu0 0.0
    %710 = vmatpush1.msra.mxu0 %v166
    %711 = vmatprep.subr.mxu0 0.0
    %712 = vmatpush1.msra.mxu0 %v163
    %713 = vmatprep.subr.mxu0 0.0
    %714 = vmatpush1.msra.mxu0 %v160
    %715 = vmatprep.subr.mxu0 0.0
    %716 = vmatpush1.msra.mxu0 %v157
    %717 = vmatprep.subr.mxu0 0.0
    %718 = vmatpush1.msra.mxu0 %v154
    %719 = vmatprep.subr.mxu0 0.0
    %720 = vmatpush1.msra.mxu0 %v151
    %721 = vmatprep.subr.mxu0 0.0
    %722 = vmatpush1.msra.mxu0 %v148
    %723 = vmatprep.subr.mxu0 0.0
    %724 = vmatpush1.msra.mxu0 %v145
    %725 = vmatprep.subr.mxu0 0.0
    %726 = vmatpush1.msra.mxu0 %v142
    %727 = vmatprep.subr.mxu0 0.0
    %728 = vmatpush1.msra.mxu0 %v139
    %729 = vmatprep.subr.mxu0 0.0
    %730 = vmatpush1.msra.mxu0 %v136
    %731 = vmatprep.subr.mxu0 0.0
    %732 = vmatpush2.msra.mxu0 0.0
    %733 = vmatprep.subr.mxu0 0.0
    %734 = vmatpush2.msra.mxu0 0.0
    %735 = vmatprep.subr.mxu0 0.0
    %736 = vmatpush2.msra.mxu0 0.0
    %737 = vmatprep.subr.mxu0 0.0
    %738 = vmatpush2.msra.mxu0 0.0
    %739 = vmatprep.subr.mxu0 0.0
    %740 = vmatpush2.msra.mxu0 0.0
    %741 = vmatprep.subr.mxu0 0.0
    %742 = vmatpush2.msra.mxu0 0.0
    %743 = vmatprep.subr.mxu0 0.0
    %744 = vmatpush2.msra.mxu0 0.0
    %745 = vmatprep.subr.mxu0 0.0
    %746 = vmatpush2.msra.mxu0 0.0
    %747 = vmatprep.subr.mxu0 0.0
    %748 = vmatpush2.msra.mxu0 0.0
    %749 = vmatprep.subr.mxu0 0.0
    %750 = vmatpush2.msra.mxu0 0.0
    %751 = vmatprep.subr.mxu0 0.0
    %752 = vmatpush2.msra.mxu0 0.0
    %753 = vmatprep.subr.mxu0 0.0
    %754 = vmatpush2.msra.mxu0 0.0
    %755 = vmatprep.subr.mxu0 0.0
    %756 = vmatpush2.msra.mxu0 0.0
    %757 = vmatprep.subr.mxu0 0.0
    %758 = vmatpush2.msra.mxu0 0.0
    %759 = vmatprep.subr.mxu0 0.0
    %760 = vmatpush2.msra.mxu0 0.0
    %761 = vmatprep.subr.mxu0 0.0
    %762 = vmatpush2.msra.mxu0 0.0
    %763 = vmatprep.mubr.f32.mxu0 0.0
    %764 = vmatmul.mubr.f32.gmra.mxu0 %v622
    %v765 = vpop.f32.mrf.mxu0
    %v766 = vadd.f32 0.0, %v765
    %v767 = vpop.f32.mrf.mxu0
    %768 = vdwg.mxu0
    %v769 = vadd.f32 %v625, %v695
    %v770 = vxor.u32 %v769, 2147483648
    %v771 = vmul.f32 %v770, 1.442695
    %v772 = vpow.pop %v771
    %v773 = vadd.f32 %v772, 1.0
    %v774 = vrcp.pop %v773
    %v775 = vmul.f32 1.0, %v774
    %v776 = vadd.f32 %v626, %v697
    %v777 = vxor.u32 %v776, 2147483648
    %v778 = vmul.f32 %v777, 1.442695
    %v779 = vpow.pop %v778
    %v780 = vadd.f32 %v779, 1.0
    %v781 = vrcp.pop %v780
    %v782 = vmul.f32 1.0, %v781
    %v783 = vadd.f32 %v766, %v188
    %v784 = vmul.f32 %v775, %v783
    %v785 = vadd.f32 %v627, %v784
    %v786 = vtanh.pop %v785
    %v787 = vsub.f32 1.0, %v782
    %v788 = vmul.f32 %v787, %v786
    %v789 = vmul.f32 %v782, %v622
    %v790 = vadd.f32 %v788, %v789
    %s791 = scalar_lea.vmem [#allocation12], 8
    %792 = vst [vmem:[%s791] sm:$0xff] %v790
    %s793 = scalar_lea.vmem [#allocation2], 48
    %v794 = vld [vmem:[%s793] sm:$0xff]
    %v795 = vld [vmem:[%s793 + $0x8] sm:$0xff]
    %v796 = vld [vmem:[%s793 + $0x10] sm:$0xff]
    %797 = vmatprep.subr.mxu0 %v180
    %798 = vmatpush1.msra.mxu0 %v179
    %799 = vmatprep.subr.mxu0 %v177
    %800 = vmatpush1.msra.mxu0 %v176
    %801 = vmatprep.subr.mxu0 %v174
    %802 = vmatpush1.msra.mxu0 %v173
    %803 = vmatprep.subr.mxu0 %v171
    %804 = vmatpush1.msra.mxu0 %v170
    %805 = vmatprep.subr.mxu0 %v168
    %806 = vmatpush1.msra.mxu0 %v167
    %807 = vmatprep.subr.mxu0 %v165
    %808 = vmatpush1.msra.mxu0 %v164
    %809 = vmatprep.subr.mxu0 %v162
    %810 = vmatpush1.msra.mxu0 %v161
    %811 = vmatprep.subr.mxu0 %v159
    %812 = vmatpush1.msra.mxu0 %v158
    %813 = vmatprep.subr.mxu0 %v156
    %814 = vmatpush1.msra.mxu0 %v155
    %815 = vmatprep.subr.mxu0 %v153
    %816 = vmatpush1.msra.mxu0 %v152
    %817 = vmatprep.subr.mxu0 %v150
    %818 = vmatpush1.msra.mxu0 %v149
    %819 = vmatprep.subr.mxu0 %v147
    %820 = vmatpush1.msra.mxu0 %v146
    %821 = vmatprep.subr.mxu0 %v144
    %822 = vmatpush1.msra.mxu0 %v143
    %823 = vmatprep.subr.mxu0 %v141
    %824 = vmatpush1.msra.mxu0 %v140
    %825 = vmatprep.subr.mxu0 %v138
    %826 = vmatpush1.msra.mxu0 %v137
    %827 = vmatprep.subr.mxu0 %v135
    %828 = vmatpush1.msra.mxu0 %v134
    %829 = vmatprep.subr.mxu0 0.0
    %830 = vmatpush2.msra.mxu0 0.0
    %831 = vmatprep.subr.mxu0 0.0
    %832 = vmatpush2.msra.mxu0 0.0
    %833 = vmatprep.subr.mxu0 0.0
    %834 = vmatpush2.msra.mxu0 0.0
    %835 = vmatprep.subr.mxu0 0.0
    %836 = vmatpush2.msra.mxu0 0.0
    %837 = vmatprep.subr.mxu0 0.0
    %838 = vmatpush2.msra.mxu0 0.0
    %839 = vmatprep.subr.mxu0 0.0
    %840 = vmatpush2.msra.mxu0 0.0
    %841 = vmatprep.subr.mxu0 0.0
    %842 = vmatpush2.msra.mxu0 0.0
    %843 = vmatprep.subr.mxu0 0.0
    %844 = vmatpush2.msra.mxu0 0.0
    %845 = vmatprep.subr.mxu0 0.0
    %846 = vmatpush2.msra.mxu0 0.0
    %847 = vmatprep.subr.mxu0 0.0
    %848 = vmatpush2.msra.mxu0 0.0
    %849 = vmatprep.subr.mxu0 0.0
    %850 = vmatpush2.msra.mxu0 0.0
    %851 = vmatprep.subr.mxu0 0.0
    %852 = vmatpush2.msra.mxu0 0.0
    %853 = vmatprep.subr.mxu0 0.0
    %854 = vmatpush2.msra.mxu0 0.0
    %855 = vmatprep.subr.mxu0 0.0
    %856 = vmatpush2.msra.mxu0 0.0
    %857 = vmatprep.subr.mxu0 0.0
    %858 = vmatpush2.msra.mxu0 0.0
    %859 = vmatprep.subr.mxu0 0.0
    %860 = vmatpush2.msra.mxu0 0.0
    %861 = vmatprep.mubr.f32.mxu0 0.0
    %862 = vmatmul.mubr.f32.gmra.mxu0 %v790
    %v863 = vpop.f32.mrf.mxu0
    %v864 = vadd.f32 0.0, %v863
    %v865 = vpop.f32.mrf.mxu0
    %v866 = vadd.f32 0.0, %v865
    %867 = vdwg.mxu0
    %868 = vmatprep.subr.mxu0 0.0
    %869 = vmatpush1.msra.mxu0 %v181
    %870 = vmatprep.subr.mxu0 0.0
    %871 = vmatpush1.msra.mxu0 %v178
    %872 = vmatprep.subr.mxu0 0.0
    %873 = vmatpush1.msra.mxu0 %v175
    %874 = vmatprep.subr.mxu0 0.0
    %875 = vmatpush1.msra.mxu0 %v172
    %876 = vmatprep.subr.mxu0 0.0
    %877 = vmatpush1.msra.mxu0 %v169
    %878 = vmatprep.subr.mxu0 0.0
    %879 = vmatpush1.msra.mxu0 %v166
    %880 = vmatprep.subr.mxu0 0.0
    %881 = vmatpush1.msra.mxu0 %v163
    %882 = vmatprep.subr.mxu0 0.0
    %883 = vmatpush1.msra.mxu0 %v160
    %884 = vmatprep.subr.mxu0 0.0
    %885 = vmatpush1.msra.mxu0 %v157
    %886 = vmatprep.subr.mxu0 0.0
    %887 = vmatpush1.msra.mxu0 %v154
    %888 = vmatprep.subr.mxu0 0.0
    %889 = vmatpush1.msra.mxu0 %v151
    %890 = vmatprep.subr.mxu0 0.0
    %891 = vmatpush1.msra.mxu0 %v148
    %892 = vmatprep.subr.mxu0 0.0
    %893 = vmatpush1.msra.mxu0 %v145
    %894 = vmatprep.subr.mxu0 0.0
    %895 = vmatpush1.msra.mxu0 %v142
    %896 = vmatprep.subr.mxu0 0.0
    %897 = vmatpush1.msra.mxu0 %v139
    %898 = vmatprep.subr.mxu0 0.0
    %899 = vmatpush1.msra.mxu0 %v136
    %900 = vmatprep.subr.mxu0 0.0
    %901 = vmatpush2.msra.mxu0 0.0
    %902 = vmatprep.subr.mxu0 0.0
    %903 = vmatpush2.msra.mxu0 0.0
    %904 = vmatprep.subr.mxu0 0.0
    %905 = vmatpush2.msra.mxu0 0.0
    %906 = vmatprep.subr.mxu0 0.0
    %907 = vmatpush2.msra.mxu0 0.0
    %908 = vmatprep.subr.mxu0 0.0
    %909 = vmatpush2.msra.mxu0 0.0
    %910 = vmatprep.subr.mxu0 0.0
    %911 = vmatpush2.msra.mxu0 0.0
    %912 = vmatprep.subr.mxu0 0.0
    %913 = vmatpush2.msra.mxu0 0.0
    %914 = vmatprep.subr.mxu0 0.0
    %915 = vmatpush2.msra.mxu0 0.0
    %916 = vmatprep.subr.mxu0 0.0
    %917 = vmatpush2.msra.mxu0 0.0
    %918 = vmatprep.subr.mxu0 0.0
    %919 = vmatpush2.msra.mxu0 0.0
    %920 = vmatprep.subr.mxu0 0.0
    %921 = vmatpush2.msra.mxu0 0.0
    %922 = vmatprep.subr.mxu0 0.0
    %923 = vmatpush2.msra.mxu0 0.0
    %924 = vmatprep.subr.mxu0 0.0
    %925 = vmatpush2.msra.mxu0 0.0
    %926 = vmatprep.subr.mxu0 0.0
    %927 = vmatpush2.msra.mxu0 0.0
    %928 = vmatprep.subr.mxu0 0.0
    %929 = vmatpush2.msra.mxu0 0.0
    %930 = vmatprep.subr.mxu0 0.0
    %931 = vmatpush2.msra.mxu0 0.0
    %932 = vmatprep.mubr.f32.mxu0 0.0
    %933 = vmatmul.mubr.f32.gmra.mxu0 %v790
    %v934 = vpop.f32.mrf.mxu0
    %v935 = vadd.f32 0.0, %v934
    %v936 = vpop.f32.mrf.mxu0
    %937 = vdwg.mxu0
    %v938 = vadd.f32 %v794, %v864
    %v939 = vxor.u32 %v938, 2147483648
    %v940 = vmul.f32 %v939, 1.442695
    %v941 = vpow.pop %v940
    %v942 = vadd.f32 %v941, 1.0
    %v943 = vrcp.pop %v942
    %v944 = vmul.f32 1.0, %v943
    %v945 = vadd.f32 %v795, %v866
    %v946 = vxor.u32 %v945, 2147483648
    %v947 = vmul.f32 %v946, 1.442695
    %v948 = vpow.pop %v947
    %v949 = vadd.f32 %v948, 1.0
    %v950 = vrcp.pop %v949
    %v951 = vmul.f32 1.0, %v950
    %v952 = vadd.f32 %v935, %v188
    %v953 = vmul.f32 %v944, %v952
    %v954 = vadd.f32 %v796, %v953
    %v955 = vtanh.pop %v954
    %v956 = vsub.f32 1.0, %v951
    %v957 = vmul.f32 %v956, %v955
    %v958 = vmul.f32 %v951, %v790
    %v959 = vadd.f32 %v957, %v958
    %s960 = scalar_lea.vmem [#allocation12], 16
    %961 = vst [vmem:[%s960] sm:$0xff] %v959
    %s962 = scalar_lea.vmem [#allocation2], 72
    %v963 = vld [vmem:[%s962] sm:$0xff]
    %v964 = vld [vmem:[%s962 + $0x8] sm:$0xff]
    %v965 = vld [vmem:[%s962 + $0x10] sm:$0xff]
    %966 = vmatprep.subr.mxu0 %v180
    %967 = vmatpush1.msra.mxu0 %v179
    %968 = vmatprep.subr.mxu0 %v177
    %969 = vmatpush1.msra.mxu0 %v176
    %970 = vmatprep.subr.mxu0 %v174
    %971 = vmatpush1.msra.mxu0 %v173
    %972 = vmatprep.subr.mxu0 %v171
    %973 = vmatpush1.msra.mxu0 %v170
    %974 = vmatprep.subr.mxu0 %v168
    %975 = vmatpush1.msra.mxu0 %v167
    %976 = vmatprep.subr.mxu0 %v165
    %977 = vmatpush1.msra.mxu0 %v164
    %978 = vmatprep.subr.mxu0 %v162
    %979 = vmatpush1.msra.mxu0 %v161
    %980 = vmatprep.subr.mxu0 %v159
    %981 = vmatpush1.msra.mxu0 %v158
    %982 = vmatprep.subr.mxu0 %v156
    %983 = vmatpush1.msra.mxu0 %v155
    %984 = vmatprep.subr.mxu0 %v153
    %985 = vmatpush1.msra.mxu0 %v152
    %986 = vmatprep.subr.mxu0 %v150
    %987 = vmatpush1.msra.mxu0 %v149
    %988 = vmatprep.subr.mxu0 %v147
    %989 = vmatpush1.msra.mxu0 %v146
    %990 = vmatprep.subr.mxu0 %v144
    %991 = vmatpush1.msra.mxu0 %v143
    %992 = vmatprep.subr.mxu0 %v141
    %993 = vmatpush1.msra.mxu0 %v140
    %994 = vmatprep.subr.mxu0 %v138
    %995 = vmatpush1.msra.mxu0 %v137
    %996 = vmatprep.subr.mxu0 %v135
    %997 = vmatpush1.msra.mxu0 %v134
    %998 = vmatprep.subr.mxu0 0.0
    %999 = vmatpush2.msra.mxu0 0.0
    %1000 = vmatprep.subr.mxu0 0.0
    %1001 = vmatpush2.msra.mxu0 0.0
    %1002 = vmatprep.subr.mxu0 0.0
    %1003 = vmatpush2.msra.mxu0 0.0
    %1004 = vmatprep.subr.mxu0 0.0
    %1005 = vmatpush2.msra.mxu0 0.0
    %1006 = vmatprep.subr.mxu0 0.0
    %1007 = vmatpush2.msra.mxu0 0.0
    %1008 = vmatprep.subr.mxu0 0.0
    %1009 = vmatpush2.msra.mxu0 0.0
    %1010 = vmatprep.subr.mxu0 0.0
    %1011 = vmatpush2.msra.mxu0 0.0
    %1012 = vmatprep.subr.mxu0 0.0
    %1013 = vmatpush2.msra.mxu0 0.0
    %1014 = vmatprep.subr.mxu0 0.0
    %1015 = vmatpush2.msra.mxu0 0.0
    %1016 = vmatprep.subr.mxu0 0.0
    %1017 = vmatpush2.msra.mxu0 0.0
    %1018 = vmatprep.subr.mxu0 0.0
    %1019 = vmatpush2.msra.mxu0 0.0
    %1020 = vmatprep.subr.mxu0 0.0
    %1021 = vmatpush2.msra.mxu0 0.0
    %1022 = vmatprep.subr.mxu0 0.0
    %1023 = vmatpush2.msra.mxu0 0.0
    %1024 = vmatprep.subr.mxu0 0.0
    %1025 = vmatpush2.msra.mxu0 0.0
    %1026 = vmatprep.subr.mxu0 0.0
    %1027 = vmatpush2.msra.mxu0 0.0
    %1028 = vmatprep.subr.mxu0 0.0
    %1029 = vmatpush2.msra.mxu0 0.0
    %1030 = vmatprep.mubr.f32.mxu0 0.0
    %1031 = vmatmul.mubr.f32.gmra.mxu0 %v959
    %v1032 = vpop.f32.mrf.mxu0
    %v1033 = vadd.f32 0.0, %v1032
    %v1034 = vpop.f32.mrf.mxu0
    %v1035 = vadd.f32 0.0, %v1034
    %1036 = vdwg.mxu0
    %1037 = vmatprep.subr.mxu0 0.0
    %1038 = vmatpush1.msra.mxu0 %v181
    %1039 = vmatprep.subr.mxu0 0.0
    %1040 = vmatpush1.msra.mxu0 %v178
    %1041 = vmatprep.subr.mxu0 0.0
    %1042 = vmatpush1.msra.mxu0 %v175
    %1043 = vmatprep.subr.mxu0 0.0
    %1044 = vmatpush1.msra.mxu0 %v172
    %1045 = vmatprep.subr.mxu0 0.0
    %1046 = vmatpush1.msra.mxu0 %v169
    %1047 = vmatprep.subr.mxu0 0.0
    %1048 = vmatpush1.msra.mxu0 %v166
    %1049 = vmatprep.subr.mxu0 0.0
    %1050 = vmatpush1.msra.mxu0 %v163
    %1051 = vmatprep.subr.mxu0 0.0
    %1052 = vmatpush1.msra.mxu0 %v160
    %1053 = vmatprep.subr.mxu0 0.0
    %1054 = vmatpush1.msra.mxu0 %v157
    %1055 = vmatprep.subr.mxu0 0.0
    %1056 = vmatpush1.msra.mxu0 %v154
    %1057 = vmatprep.subr.mxu0 0.0
    %1058 = vmatpush1.msra.mxu0 %v151
    %1059 = vmatprep.subr.mxu0 0.0
    %1060 = vmatpush1.msra.mxu0 %v148
    %1061 = vmatprep.subr.mxu0 0.0
    %1062 = vmatpush1.msra.mxu0 %v145
    %1063 = vmatprep.subr.mxu0 0.0
    %1064 = vmatpush1.msra.mxu0 %v142
    %1065 = vmatprep.subr.mxu0 0.0
    %1066 = vmatpush1.msra.mxu0 %v139
    %1067 = vmatprep.subr.mxu0 0.0
    %1068 = vmatpush1.msra.mxu0 %v136
    %1069 = vmatprep.subr.mxu0 0.0
    %1070 = vmatpush2.msra.mxu0 0.0
    %1071 = vmatprep.subr.mxu0 0.0
    %1072 = vmatpush2.msra.mxu0 0.0
    %1073 = vmatprep.subr.mxu0 0.0
    %1074 = vmatpush2.msra.mxu0 0.0
    %1075 = vmatprep.subr.mxu0 0.0
    %1076 = vmatpush2.msra.mxu0 0.0
    %1077 = vmatprep.subr.mxu0 0.0
    %1078 = vmatpush2.msra.mxu0 0.0
    %1079 = vmatprep.subr.mxu0 0.0
    %1080 = vmatpush2.msra.mxu0 0.0
    %1081 = vmatprep.subr.mxu0 0.0
    %1082 = vmatpush2.msra.mxu0 0.0
    %1083 = vmatprep.subr.mxu0 0.0
    %1084 = vmatpush2.msra.mxu0 0.0
    %1085 = vmatprep.subr.mxu0 0.0
    %1086 = vmatpush2.msra.mxu0 0.0
    %1087 = vmatprep.subr.mxu0 0.0
    %1088 = vmatpush2.msra.mxu0 0.0
    %1089 = vmatprep.subr.mxu0 0.0
    %1090 = vmatpush2.msra.mxu0 0.0
    %1091 = vmatprep.subr.mxu0 0.0
    %1092 = vmatpush2.msra.mxu0 0.0
    %1093 = vmatprep.subr.mxu0 0.0
    %1094 = vmatpush2.msra.mxu0 0.0
    %1095 = vmatprep.subr.mxu0 0.0
    %1096 = vmatpush2.msra.mxu0 0.0
    %1097 = vmatprep.subr.mxu0 0.0
    %1098 = vmatpush2.msra.mxu0 0.0
    %1099 = vmatprep.subr.mxu0 0.0
    %1100 = vmatpush2.msra.mxu0 0.0
    %1101 = vmatprep.mubr.f32.mxu0 0.0
    %1102 = vmatmul.mubr.f32.gmra.mxu0 %v959
    %v1103 = vpop.f32.mrf.mxu0
    %v1104 = vadd.f32 0.0, %v1103
    %v1105 = vpop.f32.mrf.mxu0
    %1106 = vdwg.mxu0
    %v1107 = vadd.f32 %v963, %v1033
    %v1108 = vxor.u32 %v1107, 2147483648
    %v1109 = vmul.f32 %v1108, 1.442695
    %v1110 = vpow.pop %v1109
    %v1111 = vadd.f32 %v1110, 1.0
    %v1112 = vrcp.pop %v1111
    %v1113 = vmul.f32 1.0, %v1112
    %v1114 = vadd.f32 %v964, %v1035
    %v1115 = vxor.u32 %v1114, 2147483648
    %v1116 = vmul.f32 %v1115, 1.442695
    %v1117 = vpow.pop %v1116
    %v1118 = vadd.f32 %v1117, 1.0
    %v1119 = vrcp.pop %v1118
    %v1120 = vmul.f32 1.0, %v1119
    %v1121 = vadd.f32 %v1104, %v188
    %v1122 = vmul.f32 %v1113, %v1121
    %v1123 = vadd.f32 %v965, %v1122
    %v1124 = vtanh.pop %v1123
    %v1125 = vsub.f32 1.0, %v1120
    %v1126 = vmul.f32 %v1125, %v1124
    %v1127 = vmul.f32 %v1120, %v959
    %v1128 = vadd.f32 %v1126, %v1127
    %s1129 = scalar_lea.vmem [#allocation12], 24
    %1130 = vst [vmem:[%s1129] sm:$0xff] %v1128
    %s1131 = scalar_lea.vmem [#allocation2], 96
    %v1132 = vld [vmem:[%s1131] sm:$0xff]
    %v1133 = vld [vmem:[%s1131 + $0x8] sm:$0xff]
    %v1134 = vld [vmem:[%s1131 + $0x10] sm:$0xff]
    %1135 = vmatprep.subr.mxu0 %v180
    %1136 = vmatpush1.msra.mxu0 %v179
    %1137 = vmatprep.subr.mxu0 %v177
    %1138 = vmatpush1.msra.mxu0 %v176
    %1139 = vmatprep.subr.mxu0 %v174
    %1140 = vmatpush1.msra.mxu0 %v173
    %1141 = vmatprep.subr.mxu0 %v171
    %1142 = vmatpush1.msra.mxu0 %v170
    %1143 = vmatprep.subr.mxu0 %v168
    %1144 = vmatpush1.msra.mxu0 %v167
    %1145 = vmatprep.subr.mxu0 %v165
    %1146 = vmatpush1.msra.mxu0 %v164
    %1147 = vmatprep.subr.mxu0 %v162
    %1148 = vmatpush1.msra.mxu0 %v161
    %1149 = vmatprep.subr.mxu0 %v159
    %1150 = vmatpush1.msra.mxu0 %v158
    %1151 = vmatprep.subr.mxu0 %v156
    %1152 = vmatpush1.msra.mxu0 %v155
    %1153 = vmatprep.subr.mxu0 %v153
    %1154 = vmatpush1.msra.mxu0 %v152
    %1155 = vmatprep.subr.mxu0 %v150
    %1156 = vmatpush1.msra.mxu0 %v149
    %1157 = vmatprep.subr.mxu0 %v147
    %1158 = vmatpush1.msra.mxu0 %v146
    %1159 = vmatprep.subr.mxu0 %v144
    %1160 = vmatpush1.msra.mxu0 %v143
    %1161 = vmatprep.subr.mxu0 %v141
    %1162 = vmatpush1.msra.mxu0 %v140
    %1163 = vmatprep.subr.mxu0 %v138
    %1164 = vmatpush1.msra.mxu0 %v137
    %1165 = vmatprep.subr.mxu0 %v135
    %1166 = vmatpush1.msra.mxu0 %v134
    %1167 = vmatprep.subr.mxu0 0.0
    %1168 = vmatpush2.msra.mxu0 0.0
    %1169 = vmatprep.subr.mxu0 0.0
    %1170 = vmatpush2.msra.mxu0 0.0
    %1171 = vmatprep.subr.mxu0 0.0
    %1172 = vmatpush2.msra.mxu0 0.0
    %1173 = vmatprep.subr.mxu0 0.0
    %1174 = vmatpush2.msra.mxu0 0.0
    %1175 = vmatprep.subr.mxu0 0.0
    %1176 = vmatpush2.msra.mxu0 0.0
    %1177 = vmatprep.subr.mxu0 0.0
    %1178 = vmatpush2.msra.mxu0 0.0
    %1179 = vmatprep.subr.mxu0 0.0
    %1180 = vmatpush2.msra.mxu0 0.0
    %1181 = vmatprep.subr.mxu0 0.0
    %1182 = vmatpush2.msra.mxu0 0.0
    %1183 = vmatprep.subr.mxu0 0.0
    %1184 = vmatpush2.msra.mxu0 0.0
    %1185 = vmatprep.subr.mxu0 0.0
    %1186 = vmatpush2.msra.mxu0 0.0
    %1187 = vmatprep.subr.mxu0 0.0
    %1188 = vmatpush2.msra.mxu0 0.0
    %1189 = vmatprep.subr.mxu0 0.0
    %1190 = vmatpush2.msra.mxu0 0.0
    %1191 = vmatprep.subr.mxu0 0.0
    %1192 = vmatpush2.msra.mxu0 0.0
    %1193 = vmatprep.subr.mxu0 0.0
    %1194 = vmatpush2.msra.mxu0 0.0
    %1195 = vmatprep.subr.mxu0 0.0
    %1196 = vmatpush2.msra.mxu0 0.0
    %1197 = vmatprep.subr.mxu0 0.0
    %1198 = vmatpush2.msra.mxu0 0.0
    %1199 = vmatprep.mubr.f32.mxu0 0.0
    %1200 = vmatmul.mubr.f32.gmra.mxu0 %v1128
    %v1201 = vpop.f32.mrf.mxu0
    %v1202 = vadd.f32 0.0, %v1201
    %v1203 = vpop.f32.mrf.mxu0
    %v1204 = vadd.f32 0.0, %v1203
    %1205 = vdwg.mxu0
    %1206 = vmatprep.subr.mxu0 0.0
    %1207 = vmatpush1.msra.mxu0 %v181
    %1208 = vmatprep.subr.mxu0 0.0
    %1209 = vmatpush1.msra.mxu0 %v178
    %1210 = vmatprep.subr.mxu0 0.0
    %1211 = vmatpush1.msra.mxu0 %v175
    %1212 = vmatprep.subr.mxu0 0.0
    %1213 = vmatpush1.msra.mxu0 %v172
    %1214 = vmatprep.subr.mxu0 0.0
    %1215 = vmatpush1.msra.mxu0 %v169
    %1216 = vmatprep.subr.mxu0 0.0
    %1217 = vmatpush1.msra.mxu0 %v166
    %1218 = vmatprep.subr.mxu0 0.0
    %1219 = vmatpush1.msra.mxu0 %v163
    %1220 = vmatprep.subr.mxu0 0.0
    %1221 = vmatpush1.msra.mxu0 %v160
    %1222 = vmatprep.subr.mxu0 0.0
    %1223 = vmatpush1.msra.mxu0 %v157
    %1224 = vmatprep.subr.mxu0 0.0
    %1225 = vmatpush1.msra.mxu0 %v154
    %1226 = vmatprep.subr.mxu0 0.0
    %1227 = vmatpush1.msra.mxu0 %v151
    %1228 = vmatprep.subr.mxu0 0.0
    %1229 = vmatpush1.msra.mxu0 %v148
    %1230 = vmatprep.subr.mxu0 0.0
    %1231 = vmatpush1.msra.mxu0 %v145
    %1232 = vmatprep.subr.mxu0 0.0
    %1233 = vmatpush1.msra.mxu0 %v142
    %1234 = vmatprep.subr.mxu0 0.0
    %1235 = vmatpush1.msra.mxu0 %v139
    %1236 = vmatprep.subr.mxu0 0.0
    %1237 = vmatpush1.msra.mxu0 %v136
    %1238 = vmatprep.subr.mxu0 0.0
    %1239 = vmatpush2.msra.mxu0 0.0
    %1240 = vmatprep.subr.mxu0 0.0
    %1241 = vmatpush2.msra.mxu0 0.0
    %1242 = vmatprep.subr.mxu0 0.0
    %1243 = vmatpush2.msra.mxu0 0.0
    %1244 = vmatprep.subr.mxu0 0.0
    %1245 = vmatpush2.msra.mxu0 0.0
    %1246 = vmatprep.subr.mxu0 0.0
    %1247 = vmatpush2.msra.mxu0 0.0
    %1248 = vmatprep.subr.mxu0 0.0
    %1249 = vmatpush2.msra.mxu0 0.0
    %1250 = vmatprep.subr.mxu0 0.0
    %1251 = vmatpush2.msra.mxu0 0.0
    %1252 = vmatprep.subr.mxu0 0.0
    %1253 = vmatpush2.msra.mxu0 0.0
    %1254 = vmatprep.subr.mxu0 0.0
    %1255 = vmatpush2.msra.mxu0 0.0
    %1256 = vmatprep.subr.mxu0 0.0
    %1257 = vmatpush2.msra.mxu0 0.0
    %1258 = vmatprep.subr.mxu0 0.0
    %1259 = vmatpush2.msra.mxu0 0.0
    %1260 = vmatprep.subr.mxu0 0.0
    %1261 = vmatpush2.msra.mxu0 0.0
    %1262 = vmatprep.subr.mxu0 0.0
    %1263 = vmatpush2.msra.mxu0 0.0
    %1264 = vmatprep.subr.mxu0 0.0
    %1265 = vmatpush2.msra.mxu0 0.0
    %1266 = vmatprep.subr.mxu0 0.0
    %1267 = vmatpush2.msra.mxu0 0.0
    %1268 = vmatprep.subr.mxu0 0.0
    %1269 = vmatpush2.msra.mxu0 0.0
    %1270 = vmatprep.mubr.f32.mxu0 0.0
    %1271 = vmatmul.mubr.f32.gmra.mxu0 %v1128
    %v1272 = vpop.f32.mrf.mxu0
    %v1273 = vadd.f32 0.0, %v1272
    %v1274 = vpop.f32.mrf.mxu0
    %1275 = vdwg.mxu0
    %v1276 = vadd.f32 %v1132, %v1202
    %v1277 = vxor.u32 %v1276, 2147483648
    %v1278 = vmul.f32 %v1277, 1.442695
    %v1279 = vpow.pop %v1278
    %v1280 = vadd.f32 %v1279, 1.0
    %v1281 = vrcp.pop %v1280
    %v1282 = vmul.f32 1.0, %v1281
    %v1283 = vadd.f32 %v1133, %v1204
    %v1284 = vxor.u32 %v1283, 2147483648
    %v1285 = vmul.f32 %v1284, 1.442695
    %v1286 = vpow.pop %v1285
    %v1287 = vadd.f32 %v1286, 1.0
    %v1288 = vrcp.pop %v1287
    %v1289 = vmul.f32 1.0, %v1288
    %v1290 = vadd.f32 %v1273, %v188
    %v1291 = vmul.f32 %v1282, %v1290
    %v1292 = vadd.f32 %v1134, %v1291
    %v1293 = vtanh.pop %v1292
    %v1294 = vsub.f32 1.0, %v1289
    %v1295 = vmul.f32 %v1294, %v1293
    %v1296 = vmul.f32 %v1289, %v1128
    %v1297 = vadd.f32 %v1295, %v1296
    %s1298 = scalar_lea.vmem [#allocation12], 32
    %1299 = vst [vmem:[%s1298] sm:$0xff] %v1297
    %s1300 = scalar_lea.vmem [#allocation2], 120
    %v1301 = vld [vmem:[%s1300] sm:$0xff]
    %v1302 = vld [vmem:[%s1300 + $0x8] sm:$0xff]
    %v1303 = vld [vmem:[%s1300 + $0x10] sm:$0xff]
    %1304 = vmatprep.subr.mxu0 %v180
    %1305 = vmatpush1.msra.mxu0 %v179
    %1306 = vmatprep.subr.mxu0 %v177
    %1307 = vmatpush1.msra.mxu0 %v176
    %1308 = vmatprep.subr.mxu0 %v174
    %1309 = vmatpush1.msra.mxu0 %v173
    %1310 = vmatprep.subr.mxu0 %v171
    %1311 = vmatpush1.msra.mxu0 %v170
    %1312 = vmatprep.subr.mxu0 %v168
    %1313 = vmatpush1.msra.mxu0 %v167
    %1314 = vmatprep.subr.mxu0 %v165
    %1315 = vmatpush1.msra.mxu0 %v164
    %1316 = vmatprep.subr.mxu0 %v162
    %1317 = vmatpush1.msra.mxu0 %v161
    %1318 = vmatprep.subr.mxu0 %v159
    %1319 = vmatpush1.msra.mxu0 %v158
    %1320 = vmatprep.subr.mxu0 %v156
    %1321 = vmatpush1.msra.mxu0 %v155
    %1322 = vmatprep.subr.mxu0 %v153
    %1323 = vmatpush1.msra.mxu0 %v152
    %1324 = vmatprep.subr.mxu0 %v150
    %1325 = vmatpush1.msra.mxu0 %v149
    %1326 = vmatprep.subr.mxu0 %v147
    %1327 = vmatpush1.msra.mxu0 %v146
    %1328 = vmatprep.subr.mxu0 %v144
    %1329 = vmatpush1.msra.mxu0 %v143
    %1330 = vmatprep.subr.mxu0 %v141
    %1331 = vmatpush1.msra.mxu0 %v140
    %1332 = vmatprep.subr.mxu0 %v138
    %1333 = vmatpush1.msra.mxu0 %v137
    %1334 = vmatprep.subr.mxu0 %v135
    %1335 = vmatpush1.msra.mxu0 %v134
    %1336 = vmatprep.subr.mxu0 0.0
    %1337 = vmatpush2.msra.mxu0 0.0
    %1338 = vmatprep.subr.mxu0 0.0
    %1339 = vmatpush2.msra.mxu0 0.0
    %1340 = vmatprep.subr.mxu0 0.0
    %1341 = vmatpush2.msra.mxu0 0.0
    %1342 = vmatprep.subr.mxu0 0.0
    %1343 = vmatpush2.msra.mxu0 0.0
    %1344 = vmatprep.subr.mxu0 0.0
    %1345 = vmatpush2.msra.mxu0 0.0
    %1346 = vmatprep.subr.mxu0 0.0
    %1347 = vmatpush2.msra.mxu0 0.0
    %1348 = vmatprep.subr.mxu0 0.0
    %1349 = vmatpush2.msra.mxu0 0.0
    %1350 = vmatprep.subr.mxu0 0.0
    %1351 = vmatpush2.msra.mxu0 0.0
    %1352 = vmatprep.subr.mxu0 0.0
    %1353 = vmatpush2.msra.mxu0 0.0
    %1354 = vmatprep.subr.mxu0 0.0
    %1355 = vmatpush2.msra.mxu0 0.0
    %1356 = vmatprep.subr.mxu0 0.0
    %1357 = vmatpush2.msra.mxu0 0.0
    %1358 = vmatprep.subr.mxu0 0.0
    %1359 = vmatpush2.msra.mxu0 0.0
    %1360 = vmatprep.subr.mxu0 0.0
    %1361 = vmatpush2.msra.mxu0 0.0
    %1362 = vmatprep.subr.mxu0 0.0
    %1363 = vmatpush2.msra.mxu0 0.0
    %1364 = vmatprep.subr.mxu0 0.0
    %1365 = vmatpush2.msra.mxu0 0.0
    %1366 = vmatprep.subr.mxu0 0.0
    %1367 = vmatpush2.msra.mxu0 0.0
    %1368 = vmatprep.mubr.f32.mxu0 0.0
    %1369 = vmatmul.mubr.f32.gmra.mxu0 %v1297
    %v1370 = vpop.f32.mrf.mxu0
    %v1371 = vadd.f32 0.0, %v1370
    %v1372 = vpop.f32.mrf.mxu0
    %v1373 = vadd.f32 0.0, %v1372
    %1374 = vdwg.mxu0
    %1375 = vmatprep.subr.mxu0 0.0
    %1376 = vmatpush1.msra.mxu0 %v181
    %1377 = vmatprep.subr.mxu0 0.0
    %1378 = vmatpush1.msra.mxu0 %v178
    %1379 = vmatprep.subr.mxu0 0.0
    %1380 = vmatpush1.msra.mxu0 %v175
    %1381 = vmatprep.subr.mxu0 0.0
    %1382 = vmatpush1.msra.mxu0 %v172
    %1383 = vmatprep.subr.mxu0 0.0
    %1384 = vmatpush1.msra.mxu0 %v169
    %1385 = vmatprep.subr.mxu0 0.0
    %1386 = vmatpush1.msra.mxu0 %v166
    %1387 = vmatprep.subr.mxu0 0.0
    %1388 = vmatpush1.msra.mxu0 %v163
    %1389 = vmatprep.subr.mxu0 0.0
    %1390 = vmatpush1.msra.mxu0 %v160
    %1391 = vmatprep.subr.mxu0 0.0
    %1392 = vmatpush1.msra.mxu0 %v157
    %1393 = vmatprep.subr.mxu0 0.0
    %1394 = vmatpush1.msra.mxu0 %v154
    %1395 = vmatprep.subr.mxu0 0.0
    %1396 = vmatpush1.msra.mxu0 %v151
    %1397 = vmatprep.subr.mxu0 0.0
    %1398 = vmatpush1.msra.mxu0 %v148
    %1399 = vmatprep.subr.mxu0 0.0
    %1400 = vmatpush1.msra.mxu0 %v145
    %1401 = vmatprep.subr.mxu0 0.0
    %1402 = vmatpush1.msra.mxu0 %v142
    %1403 = vmatprep.subr.mxu0 0.0
    %1404 = vmatpush1.msra.mxu0 %v139
    %1405 = vmatprep.subr.mxu0 0.0
    %1406 = vmatpush1.msra.mxu0 %v136
    %1407 = vmatprep.subr.mxu0 0.0
    %1408 = vmatpush2.msra.mxu0 0.0
    %1409 = vmatprep.subr.mxu0 0.0
    %1410 = vmatpush2.msra.mxu0 0.0
    %1411 = vmatprep.subr.mxu0 0.0
    %1412 = vmatpush2.msra.mxu0 0.0
    %1413 = vmatprep.subr.mxu0 0.0
    %1414 = vmatpush2.msra.mxu0 0.0
    %1415 = vmatprep.subr.mxu0 0.0
    %1416 = vmatpush2.msra.mxu0 0.0
    %1417 = vmatprep.subr.mxu0 0.0
    %1418 = vmatpush2.msra.mxu0 0.0
    %1419 = vmatprep.subr.mxu0 0.0
    %1420 = vmatpush2.msra.mxu0 0.0
    %1421 = vmatprep.subr.mxu0 0.0
    %1422 = vmatpush2.msra.mxu0 0.0
    %1423 = vmatprep.subr.mxu0 0.0
    %1424 = vmatpush2.msra.mxu0 0.0
    %1425 = vmatprep.subr.mxu0 0.0
    %1426 = vmatpush2.msra.mxu0 0.0
    %1427 = vmatprep.subr.mxu0 0.0
    %1428 = vmatpush2.msra.mxu0 0.0
    %1429 = vmatprep.subr.mxu0 0.0
    %1430 = vmatpush2.msra.mxu0 0.0
    %1431 = vmatprep.subr.mxu0 0.0
    %1432 = vmatpush2.msra.mxu0 0.0
    %1433 = vmatprep.subr.mxu0 0.0
    %1434 = vmatpush2.msra.mxu0 0.0
    %1435 = vmatprep.subr.mxu0 0.0
    %1436 = vmatpush2.msra.mxu0 0.0
    %1437 = vmatprep.subr.mxu0 0.0
    %1438 = vmatpush2.msra.mxu0 0.0
    %1439 = vmatprep.mubr.f32.mxu0 0.0
    %1440 = vmatmul.mubr.f32.gmra.mxu0 %v1297
    %v1441 = vpop.f32.mrf.mxu0
    %v1442 = vadd.f32 0.0, %v1441
    %v1443 = vpop.f32.mrf.mxu0
    %1444 = vdwg.mxu0
    %v1445 = vadd.f32 %v1301, %v1371
    %v1446 = vxor.u32 %v1445, 2147483648
    %v1447 = vmul.f32 %v1446, 1.442695
    %v1448 = vpow.pop %v1447
    %v1449 = vadd.f32 %v1448, 1.0
    %v1450 = vrcp.pop %v1449
    %v1451 = vmul.f32 1.0, %v1450
    %v1452 = vadd.f32 %v1302, %v1373
    %v1453 = vxor.u32 %v1452, 2147483648
    %v1454 = vmul.f32 %v1453, 1.442695
    %v1455 = vpow.pop %v1454
    %v1456 = vadd.f32 %v1455, 1.0
    %v1457 = vrcp.pop %v1456
    %v1458 = vmul.f32 1.0, %v1457
    %v1459 = vadd.f32 %v1442, %v188
    %v1460 = vmul.f32 %v1451, %v1459
    %v1461 = vadd.f32 %v1303, %v1460
    %v1462 = vtanh.pop %v1461
    %v1463 = vsub.f32 1.0, %v1458
    %v1464 = vmul.f32 %v1463, %v1462
    %v1465 = vmul.f32 %v1458, %v1297
    %v1466 = vadd.f32 %v1464, %v1465
    %s1467 = scalar_lea.vmem [#allocation12], 40
    %1468 = vst [vmem:[%s1467] sm:$0xff] %v1466
    %s1469 = scalar_lea.vmem [#allocation2], 144
    %v1470 = vld [vmem:[%s1469] sm:$0xff]
    %v1471 = vld [vmem:[%s1469 + $0x8] sm:$0xff]
    %v1472 = vld [vmem:[%s1469 + $0x10] sm:$0xff]
    %1473 = vmatprep.subr.mxu0 %v180
    %1474 = vmatpush1.msra.mxu0 %v179
    %1475 = vmatprep.subr.mxu0 %v177
    %1476 = vmatpush1.msra.mxu0 %v176
    %1477 = vmatprep.subr.mxu0 %v174
    %1478 = vmatpush1.msra.mxu0 %v173
    %1479 = vmatprep.subr.mxu0 %v171
    %1480 = vmatpush1.msra.mxu0 %v170
    %1481 = vmatprep.subr.mxu0 %v168
    %1482 = vmatpush1.msra.mxu0 %v167
    %1483 = vmatprep.subr.mxu0 %v165
    %1484 = vmatpush1.msra.mxu0 %v164
    %1485 = vmatprep.subr.mxu0 %v162
    %1486 = vmatpush1.msra.mxu0 %v161
    %1487 = vmatprep.subr.mxu0 %v159
    %1488 = vmatpush1.msra.mxu0 %v158
    %1489 = vmatprep.subr.mxu0 %v156
    %1490 = vmatpush1.msra.mxu0 %v155
    %1491 = vmatprep.subr.mxu0 %v153
    %1492 = vmatpush1.msra.mxu0 %v152
    %1493 = vmatprep.subr.mxu0 %v150
    %1494 = vmatpush1.msra.mxu0 %v149
    %1495 = vmatprep.subr.mxu0 %v147
    %1496 = vmatpush1.msra.mxu0 %v146
    %1497 = vmatprep.subr.mxu0 %v144
    %1498 = vmatpush1.msra.mxu0 %v143
    %1499 = vmatprep.subr.mxu0 %v141
    %1500 = vmatpush1.msra.mxu0 %v140
    %1501 = vmatprep.subr.mxu0 %v138
    %1502 = vmatpush1.msra.mxu0 %v137
    %1503 = vmatprep.subr.mxu0 %v135
    %1504 = vmatpush1.msra.mxu0 %v134
    %1505 = vmatprep.subr.mxu0 0.0
    %1506 = vmatpush2.msra.mxu0 0.0
    %1507 = vmatprep.subr.mxu0 0.0
    %1508 = vmatpush2.msra.mxu0 0.0
    %1509 = vmatprep.subr.mxu0 0.0
    %1510 = vmatpush2.msra.mxu0 0.0
    %1511 = vmatprep.subr.mxu0 0.0
    %1512 = vmatpush2.msra.mxu0 0.0
    %1513 = vmatprep.subr.mxu0 0.0
    %1514 = vmatpush2.msra.mxu0 0.0
    %1515 = vmatprep.subr.mxu0 0.0
    %1516 = vmatpush2.msra.mxu0 0.0
    %1517 = vmatprep.subr.mxu0 0.0
    %1518 = vmatpush2.msra.mxu0 0.0
    %1519 = vmatprep.subr.mxu0 0.0
    %1520 = vmatpush2.msra.mxu0 0.0
    %1521 = vmatprep.subr.mxu0 0.0
    %1522 = vmatpush2.msra.mxu0 0.0
    %1523 = vmatprep.subr.mxu0 0.0
    %1524 = vmatpush2.msra.mxu0 0.0
    %1525 = vmatprep.subr.mxu0 0.0
    %1526 = vmatpush2.msra.mxu0 0.0
    %1527 = vmatprep.subr.mxu0 0.0
    %1528 = vmatpush2.msra.mxu0 0.0
    %1529 = vmatprep.subr.mxu0 0.0
    %1530 = vmatpush2.msra.mxu0 0.0
    %1531 = vmatprep.subr.mxu0 0.0
    %1532 = vmatpush2.msra.mxu0 0.0
    %1533 = vmatprep.subr.mxu0 0.0
    %1534 = vmatpush2.msra.mxu0 0.0
    %1535 = vmatprep.subr.mxu0 0.0
    %1536 = vmatpush2.msra.mxu0 0.0
    %1537 = vmatprep.mubr.f32.mxu0 0.0
    %1538 = vmatmul.mubr.f32.gmra.mxu0 %v1466
    %v1539 = vpop.f32.mrf.mxu0
    %v1540 = vadd.f32 0.0, %v1539
    %v1541 = vpop.f32.mrf.mxu0
    %v1542 = vadd.f32 0.0, %v1541
    %1543 = vdwg.mxu0
    %1544 = vmatprep.subr.mxu0 0.0
    %1545 = vmatpush1.msra.mxu0 %v181
    %1546 = vmatprep.subr.mxu0 0.0
    %1547 = vmatpush1.msra.mxu0 %v178
    %1548 = vmatprep.subr.mxu0 0.0
    %1549 = vmatpush1.msra.mxu0 %v175
    %1550 = vmatprep.subr.mxu0 0.0
    %1551 = vmatpush1.msra.mxu0 %v172
    %1552 = vmatprep.subr.mxu0 0.0
    %1553 = vmatpush1.msra.mxu0 %v169
    %1554 = vmatprep.subr.mxu0 0.0
    %1555 = vmatpush1.msra.mxu0 %v166
    %1556 = vmatprep.subr.mxu0 0.0
    %1557 = vmatpush1.msra.mxu0 %v163
    %1558 = vmatprep.subr.mxu0 0.0
    %1559 = vmatpush1.msra.mxu0 %v160
    %1560 = vmatprep.subr.mxu0 0.0
    %1561 = vmatpush1.msra.mxu0 %v157
    %1562 = vmatprep.subr.mxu0 0.0
    %1563 = vmatpush1.msra.mxu0 %v154
    %1564 = vmatprep.subr.mxu0 0.0
    %1565 = vmatpush1.msra.mxu0 %v151
    %1566 = vmatprep.subr.mxu0 0.0
    %1567 = vmatpush1.msra.mxu0 %v148
    %1568 = vmatprep.subr.mxu0 0.0
    %1569 = vmatpush1.msra.mxu0 %v145
    %1570 = vmatprep.subr.mxu0 0.0
    %1571 = vmatpush1.msra.mxu0 %v142
    %1572 = vmatprep.subr.mxu0 0.0
    %1573 = vmatpush1.msra.mxu0 %v139
    %1574 = vmatprep.subr.mxu0 0.0
    %1575 = vmatpush1.msra.mxu0 %v136
    %1576 = vmatprep.subr.mxu0 0.0
    %1577 = vmatpush2.msra.mxu0 0.0
    %1578 = vmatprep.subr.mxu0 0.0
    %1579 = vmatpush2.msra.mxu0 0.0
    %1580 = vmatprep.subr.mxu0 0.0
    %1581 = vmatpush2.msra.mxu0 0.0
    %1582 = vmatprep.subr.mxu0 0.0
    %1583 = vmatpush2.msra.mxu0 0.0
    %1584 = vmatprep.subr.mxu0 0.0
    %1585 = vmatpush2.msra.mxu0 0.0
    %1586 = vmatprep.subr.mxu0 0.0
    %1587 = vmatpush2.msra.mxu0 0.0
    %1588 = vmatprep.subr.mxu0 0.0
    %1589 = vmatpush2.msra.mxu0 0.0
    %1590 = vmatprep.subr.mxu0 0.0
    %1591 = vmatpush2.msra.mxu0 0.0
    %1592 = vmatprep.subr.mxu0 0.0
    %1593 = vmatpush2.msra.mxu0 0.0
    %1594 = vmatprep.subr.mxu0 0.0
    %1595 = vmatpush2.msra.mxu0 0.0
    %1596 = vmatprep.subr.mxu0 0.0
    %1597 = vmatpush2.msra.mxu0 0.0
    %1598 = vmatprep.subr.mxu0 0.0
    %1599 = vmatpush2.msra.mxu0 0.0
    %1600 = vmatprep.subr.mxu0 0.0
    %1601 = vmatpush2.msra.mxu0 0.0
    %1602 = vmatprep.subr.mxu0 0.0
    %1603 = vmatpush2.msra.mxu0 0.0
    %1604 = vmatprep.subr.mxu0 0.0
    %1605 = vmatpush2.msra.mxu0 0.0
    %1606 = vmatprep.subr.mxu0 0.0
    %1607 = vmatpush2.msra.mxu0 0.0
    %1608 = vmatprep.mubr.f32.mxu0 0.0
    %1609 = vmatmul.mubr.f32.gmra.mxu0 %v1466
    %v1610 = vpop.f32.mrf.mxu0
    %v1611 = vadd.f32 0.0, %v1610
    %v1612 = vpop.f32.mrf.mxu0
    %1613 = vdwg.mxu0
    %v1614 = vadd.f32 %v1470, %v1540
    %v1615 = vxor.u32 %v1614, 2147483648
    %v1616 = vmul.f32 %v1615, 1.442695
    %v1617 = vpow.pop %v1616
    %v1618 = vadd.f32 %v1617, 1.0
    %v1619 = vrcp.pop %v1618
    %v1620 = vmul.f32 1.0, %v1619
    %v1621 = vadd.f32 %v1471, %v1542
    %v1622 = vxor.u32 %v1621, 2147483648
    %v1623 = vmul.f32 %v1622, 1.442695
    %v1624 = vpow.pop %v1623
    %v1625 = vadd.f32 %v1624, 1.0
    %v1626 = vrcp.pop %v1625
    %v1627 = vmul.f32 1.0, %v1626
    %v1628 = vadd.f32 %v1611, %v188
    %v1629 = vmul.f32 %v1620, %v1628
    %v1630 = vadd.f32 %v1472, %v1629
    %v1631 = vtanh.pop %v1630
    %v1632 = vsub.f32 1.0, %v1627
    %v1633 = vmul.f32 %v1632, %v1631
    %v1634 = vmul.f32 %v1627, %v1466
    %v1635 = vadd.f32 %v1633, %v1634
    %s1636 = scalar_lea.vmem [#allocation12], 48
    %1637 = vst [vmem:[%s1636] sm:$0xff] %v1635
    %s1638 = scalar_lea.vmem [#allocation2], 168
    %v1639 = vld [vmem:[%s1638] sm:$0xff]
    %v1640 = vld [vmem:[%s1638 + $0x8] sm:$0xff]
    %v1641 = vld [vmem:[%s1638 + $0x10] sm:$0xff]
    %1642 = vmatprep.subr.mxu0 %v180
    %1643 = vmatpush1.msra.mxu0 %v179
    %1644 = vmatprep.subr.mxu0 %v177
    %1645 = vmatpush1.msra.mxu0 %v176
    %1646 = vmatprep.subr.mxu0 %v174
    %1647 = vmatpush1.msra.mxu0 %v173
    %1648 = vmatprep.subr.mxu0 %v171
    %1649 = vmatpush1.msra.mxu0 %v170
    %1650 = vmatprep.subr.mxu0 %v168
    %1651 = vmatpush1.msra.mxu0 %v167
    %1652 = vmatprep.subr.mxu0 %v165
    %1653 = vmatpush1.msra.mxu0 %v164
    %1654 = vmatprep.subr.mxu0 %v162
    %1655 = vmatpush1.msra.mxu0 %v161
    %1656 = vmatprep.subr.mxu0 %v159
    %1657 = vmatpush1.msra.mxu0 %v158
    %1658 = vmatprep.subr.mxu0 %v156
    %1659 = vmatpush1.msra.mxu0 %v155
    %1660 = vmatprep.subr.mxu0 %v153
    %1661 = vmatpush1.msra.mxu0 %v152
    %1662 = vmatprep.subr.mxu0 %v150
    %1663 = vmatpush1.msra.mxu0 %v149
    %1664 = vmatprep.subr.mxu0 %v147
    %1665 = vmatpush1.msra.mxu0 %v146
    %1666 = vmatprep.subr.mxu0 %v144
    %1667 = vmatpush1.msra.mxu0 %v143
    %1668 = vmatprep.subr.mxu0 %v141
    %1669 = vmatpush1.msra.mxu0 %v140
    %1670 = vmatprep.subr.mxu0 %v138
    %1671 = vmatpush1.msra.mxu0 %v137
    %1672 = vmatprep.subr.mxu0 %v135
    %1673 = vmatpush1.msra.mxu0 %v134
    %1674 = vmatprep.subr.mxu0 0.0
    %1675 = vmatpush2.msra.mxu0 0.0
    %1676 = vmatprep.subr.mxu0 0.0
    %1677 = vmatpush2.msra.mxu0 0.0
    %1678 = vmatprep.subr.mxu0 0.0
    %1679 = vmatpush2.msra.mxu0 0.0
    %1680 = vmatprep.subr.mxu0 0.0
    %1681 = vmatpush2.msra.mxu0 0.0
    %1682 = vmatprep.subr.mxu0 0.0
    %1683 = vmatpush2.msra.mxu0 0.0
    %1684 = vmatprep.subr.mxu0 0.0
    %1685 = vmatpush2.msra.mxu0 0.0
    %1686 = vmatprep.subr.mxu0 0.0
    %1687 = vmatpush2.msra.mxu0 0.0
    %1688 = vmatprep.subr.mxu0 0.0
    %1689 = vmatpush2.msra.mxu0 0.0
    %1690 = vmatprep.subr.mxu0 0.0
    %1691 = vmatpush2.msra.mxu0 0.0
    %1692 = vmatprep.subr.mxu0 0.0
    %1693 = vmatpush2.msra.mxu0 0.0
    %1694 = vmatprep.subr.mxu0 0.0
    %1695 = vmatpush2.msra.mxu0 0.0
    %1696 = vmatprep.subr.mxu0 0.0
    %1697 = vmatpush2.msra.mxu0 0.0
    %1698 = vmatprep.subr.mxu0 0.0
    %1699 = vmatpush2.msra.mxu0 0.0
    %1700 = vmatprep.subr.mxu0 0.0
    %1701 = vmatpush2.msra.mxu0 0.0
    %1702 = vmatprep.subr.mxu0 0.0
    %1703 = vmatpush2.msra.mxu0 0.0
    %1704 = vmatprep.subr.mxu0 0.0
    %1705 = vmatpush2.msra.mxu0 0.0
    %1706 = vmatprep.mubr.f32.mxu0 0.0
    %1707 = vmatmul.mubr.f32.gmra.mxu0 %v1635
    %v1708 = vpop.f32.mrf.mxu0
    %v1709 = vadd.f32 0.0, %v1708
    %v1710 = vpop.f32.mrf.mxu0
    %v1711 = vadd.f32 0.0, %v1710
    %1712 = vdwg.mxu0
    %1713 = vmatprep.subr.mxu0 0.0
    %1714 = vmatpush1.msra.mxu0 %v181
    %1715 = vmatprep.subr.mxu0 0.0
    %1716 = vmatpush1.msra.mxu0 %v178
    %1717 = vmatprep.subr.mxu0 0.0
    %1718 = vmatpush1.msra.mxu0 %v175
    %1719 = vmatprep.subr.mxu0 0.0
    %1720 = vmatpush1.msra.mxu0 %v172
    %1721 = vmatprep.subr.mxu0 0.0
    %1722 = vmatpush1.msra.mxu0 %v169
    %1723 = vmatprep.subr.mxu0 0.0
    %1724 = vmatpush1.msra.mxu0 %v166
    %1725 = vmatprep.subr.mxu0 0.0
    %1726 = vmatpush1.msra.mxu0 %v163
    %1727 = vmatprep.subr.mxu0 0.0
    %1728 = vmatpush1.msra.mxu0 %v160
    %1729 = vmatprep.subr.mxu0 0.0
    %1730 = vmatpush1.msra.mxu0 %v157
    %1731 = vmatprep.subr.mxu0 0.0
    %1732 = vmatpush1.msra.mxu0 %v154
    %1733 = vmatprep.subr.mxu0 0.0
    %1734 = vmatpush1.msra.mxu0 %v151
    %1735 = vmatprep.subr.mxu0 0.0
    %1736 = vmatpush1.msra.mxu0 %v148
    %1737 = vmatprep.subr.mxu0 0.0
    %1738 = vmatpush1.msra.mxu0 %v145
    %1739 = vmatprep.subr.mxu0 0.0
    %1740 = vmatpush1.msra.mxu0 %v142
    %1741 = vmatprep.subr.mxu0 0.0
    %1742 = vmatpush1.msra.mxu0 %v139
    %1743 = vmatprep.subr.mxu0 0.0
    %1744 = vmatpush1.msra.mxu0 %v136
    %1745 = vmatprep.subr.mxu0 0.0
    %1746 = vmatpush2.msra.mxu0 0.0
    %1747 = vmatprep.subr.mxu0 0.0
    %1748 = vmatpush2.msra.mxu0 0.0
    %1749 = vmatprep.subr.mxu0 0.0
    %1750 = vmatpush2.msra.mxu0 0.0
    %1751 = vmatprep.subr.mxu0 0.0
    %1752 = vmatpush2.msra.mxu0 0.0
    %1753 = vmatprep.subr.mxu0 0.0
    %1754 = vmatpush2.msra.mxu0 0.0
    %1755 = vmatprep.subr.mxu0 0.0
    %1756 = vmatpush2.msra.mxu0 0.0
    %1757 = vmatprep.subr.mxu0 0.0
    %1758 = vmatpush2.msra.mxu0 0.0
    %1759 = vmatprep.subr.mxu0 0.0
    %1760 = vmatpush2.msra.mxu0 0.0
    %1761 = vmatprep.subr.mxu0 0.0
    %1762 = vmatpush2.msra.mxu0 0.0
    %1763 = vmatprep.subr.mxu0 0.0
    %1764 = vmatpush2.msra.mxu0 0.0
    %1765 = vmatprep.subr.mxu0 0.0
    %1766 = vmatpush2.msra.mxu0 0.0
    %1767 = vmatprep.subr.mxu0 0.0
    %1768 = vmatpush2.msra.mxu0 0.0
    %1769 = vmatprep.subr.mxu0 0.0
    %1770 = vmatpush2.msra.mxu0 0.0
    %1771 = vmatprep.subr.mxu0 0.0
    %1772 = vmatpush2.msra.mxu0 0.0
    %1773 = vmatprep.subr.mxu0 0.0
    %1774 = vmatpush2.msra.mxu0 0.0
    %1775 = vmatprep.subr.mxu0 0.0
    %1776 = vmatpush2.msra.mxu0 0.0
    %1777 = vmatprep.mubr.f32.mxu0 0.0
    %1778 = vmatmul.mubr.f32.gmra.mxu0 %v1635
    %v1779 = vpop.f32.mrf.mxu0
    %v1780 = vadd.f32 0.0, %v1779
    %v1781 = vpop.f32.mrf.mxu0
    %1782 = vdwg.mxu0
    %v1783 = vadd.f32 %v1639, %v1709
    %v1784 = vxor.u32 %v1783, 2147483648
    %v1785 = vmul.f32 %v1784, 1.442695
    %v1786 = vpow.pop %v1785
    %v1787 = vadd.f32 %v1786, 1.0
    %v1788 = vrcp.pop %v1787
    %v1789 = vmul.f32 1.0, %v1788
    %v1790 = vadd.f32 %v1640, %v1711
    %v1791 = vxor.u32 %v1790, 2147483648
    %v1792 = vmul.f32 %v1791, 1.442695
    %v1793 = vpow.pop %v1792
    %v1794 = vadd.f32 %v1793, 1.0
    %v1795 = vrcp.pop %v1794
    %v1796 = vmul.f32 1.0, %v1795
    %v1797 = vadd.f32 %v1780, %v188
    %v1798 = vmul.f32 %v1789, %v1797
    %v1799 = vadd.f32 %v1641, %v1798
    %v1800 = vtanh.pop %v1799
    %v1801 = vsub.f32 1.0, %v1796
    %v1802 = vmul.f32 %v1801, %v1800
    %v1803 = vmul.f32 %v1796, %v1635
    %v1804 = vadd.f32 %v1802, %v1803
    %s1805 = scalar_lea.vmem [#allocation12], 56
    %1806 = vst [vmem:[%s1805] sm:$0xff] %v1804
    %1807 = vst [vmem:[#allocation3] sm:$0xff] %v1804
    // Predicated region
    $region46: #{tpu_custom_call.1} parent=1 // pred_check
      %p1808 = pneg %p80
    $region47: #{tpu_custom_call.1} parent=1 // pred_check_branch
      %1810 = sbr.rel (%p1808) target = $region49
    $region48: #{tpu_custom_call.1} parent=1 // pred_region
      %v1811 = vld [vmem:[#allocation3] sm:$0xff]
      %1812 = vst [vmem:[#allocation13] sm:$0xff] %v1811
    $region49: #{tpu_custom_call.1} parent=1 // pred_fallthru
      _
    // Predicated region
    $region50: #{tpu_custom_call.1} parent=1 // pred_check
      _
    $region51: #{tpu_custom_call.1} parent=1 // pred_check_branch
      %1814 = sbr.rel (0) target = $region53
    $region52: #{tpu_custom_call.1} parent=1 // pred_region
      %s1816 = ssub.s32 1024, 1024
      %1817 = vsyncadd [#allocation6], %s1816
      %s1818 = sshll.u32 [#allocation12], 4
      %s1819 = int_to_ptr.vmem [resolvable:$true] %s1818
      %1824 = dma.vmem_to_hbm [thread:$0]  %s1819, 1024, %s6, [#allocation6], 128, 128, 8
    $region53: #{tpu_custom_call.1} parent=1 // pred_fallthru
      _
    // Predicated region
    $region54: #{tpu_custom_call.1} parent=1 // pred_check
      _
    $region55: #{tpu_custom_call.1} parent=1 // pred_check_branch
      %1826 = sbr.rel (0) target = $region57
    $region56: #{tpu_custom_call.1} parent=1 // pred_region
      %s1828 = ssub.s32 128, 128
      %1829 = vsyncadd [#allocation14], %s1828
      %s1831 = sshll.u32 [#allocation13], 4
      %s1832 = int_to_ptr.vmem [resolvable:$true] %s1831
      %1834 = dma.vmem_to_hbm [thread:$0]  %s1832, 128, %s7, [#allocation14]
    $region57: #{tpu_custom_call.1} parent=1 // pred_fallthru
      _
    // Predicated region
    $region58: #{tpu_custom_call.1} parent=1 // pred_check
      _
    $region59: #{tpu_custom_call.1} parent=1 // pred_check_branch
      %1836 = sbr.rel (0) target = $region61
    $region60: #{tpu_custom_call.1} parent=1 // pred_region
      %1837 = dma.done [#allocation6], 1024
    $region61: #{tpu_custom_call.1} parent=1 // pred_fallthru
      _
    // Predicated region
    $region62: #{tpu_custom_call.1} parent=1 // pred_check
      _
    $region63: #{tpu_custom_call.1} parent=1 // pred_check_branch
      %1839 = sbr.rel (0) target = $region65
    $region64: #{tpu_custom_call.1} parent=1 // pred_region
      %1840 = dma.done [#allocation14], 128
    $region65: #{tpu_custom_call.1} parent=1 // pred_fallthru
      _
    %1841 = vsyncpa [#allocation5], 1
    %1842 = vsyncpa [#allocation8], 1
    %1843 = vsyncpa [#allocation11], 1
    %1844 = vsyncpa [#allocation6], 1
    %1845 = vsyncpa [#allocation14], 1

</llo_original>
